<compile_context>
chip_gen: v6e
topology: v6e:2x2x1
jax: 0.10.0
libtpu: 0.0.40
codegen_flags: <defaults>
</compile_context>

<pallas_src>
import functools

import jax
import jax.numpy as jnp
from jax import lax
from jax.experimental import pallas as pl
from jax.experimental.pallas import tpu as pltpu


def _sentence_encoder_kernel(x_ref,
                             wih_f_ref, wih_b_ref, bias_f_ref, bias_b_ref,
                             whh_f_ref, whh_b_ref, bhh_nf_ref, bhh_nb_ref,
                             ln_gf_ref, ln_gb_ref, ln_bf_ref, ln_bb_ref,
                             lin_wf_ref, lin_wb_ref, lin_b_ref,
                             out_ref, hid_ref,
                             *, T, B, H):
    # ---- Hoisted input projections: one MXU push per direction for all T steps.
    # gi_f = x @ Wih_f.T + b_ih_f + [b_hh_f(r), b_hh_f(z), 0]   (likewise backward)
    x2 = x_ref[...]                                              # (T*B, D) bf16
    gi_f = jnp.dot(x2, wih_f_ref[...],
                   preferred_element_type=jnp.float32) + bias_f_ref[...]   # (T*B, 3H)
    gi_b = jnp.dot(x2, wih_b_ref[...],
                   preferred_element_type=jnp.float32) + bias_b_ref[...]   # (T*B, 3H)

    whh_f = whh_f_ref[...]                                       # (H, 3H) f32
    whh_b = whh_b_ref[...]
    bhh_nf = bhh_nf_ref[...]                                     # (1, H) n-gate hidden bias
    bhh_nb = bhh_nb_ref[...]

    # PyTorch GRU cell (gate order r, z, n):
    #   r  = sigmoid(gi_r + gh_r)     (b_ih + b_hh for r/z already folded into gi)
    #   z  = sigmoid(gi_z + gh_z)
    #   n  = tanh(gi_n + r * (gh_n + b_hh_n))
    #   h' = (1 - z) * n + z * h
    def gru_cell(gi, gh, bhh_n, h_prev):
        r = jax.nn.sigmoid(gi[:, 0:H] + gh[:, 0:H])
        z = jax.nn.sigmoid(gi[:, H:2 * H] + gh[:, H:2 * H])
        n = jnp.tanh(gi[:, 2 * H:3 * H] + r * (gh[:, 2 * H:3 * H] + bhh_n))
        return (1.0 - z) * n + z * h_prev

    h_f = jnp.zeros((B, H), jnp.float32)
    h_b = jnp.zeros((B, H), jnp.float32)
    fwd = [None] * T
    bwd = [None] * T

    # T is small & static: fully unrolled, all offsets constant, values live in vregs.
    for i in range(T):
        tf = i
        tb = T - 1 - i
        gi_ft = gi_f[tf * B:(tf + 1) * B, :]                     # (B, 3H)
        gi_bt = gi_b[tb * B:(tb + 1) * B, :]
        # Issue both recurrent matmuls up front (independent chains).
        gh_f = jnp.dot(h_f, whh_f, preferred_element_type=jnp.float32)   # (B, 3H)
        gh_b = jnp.dot(h_b, whh_b, preferred_element_type=jnp.float32)
        h_f = gru_cell(gi_ft, gh_f, bhh_nf, h_f)
        h_b = gru_cell(gi_bt, gh_b, bhh_nb, h_b)
        fwd[tf] = h_f
        bwd[tb] = h_b

    # hidden: (2, B, H) = [forward final (t=T-1), backward final (t=0)] (PyTorch order).
    hid_ref[0] = h_f
    hid_ref[1] = h_b

    f = jnp.concatenate(fwd, axis=0)                             # (T*B, H) f32
    b = jnp.concatenate(bwd, axis=0)

    # ---- LayerNorm over concat(2H) + Linear(2H->H), concat-free. ----
    inv_2h = 1.0 / (2.0 * H)
    mean = (jnp.sum(f, axis=-1, keepdims=True)
            + jnp.sum(b, axis=-1, keepdims=True)) * inv_2h
    df = f - mean
    db = b - mean
    var = (jnp.sum(df * df, axis=-1, keepdims=True)
           + jnp.sum(db * db, axis=-1, keepdims=True)) * inv_2h
    inv = lax.rsqrt(var + 1e-5)
    ynf = df * inv * ln_gf_ref[...] + ln_bf_ref[...]             # (T*B, H)
    ynb = db * inv * ln_gb_ref[...] + ln_bb_ref[...]

    o = (jnp.dot(ynf.astype(jnp.bfloat16), lin_wf_ref[...],
                 preferred_element_type=jnp.float32)
         + jnp.dot(ynb.astype(jnp.bfloat16), lin_wb_ref[...],
                   preferred_element_type=jnp.float32)
         + lin_b_ref[...])
    out_ref[...] = o                                             # (T*B, H)


def sentence_encoder_forward(x, hidden, params):
    # `hidden` intentionally unused (mirrors the PyTorch forward, which calls
    # self.encoder(input) with zero initial state).
    del hidden
    T, B, D = x.shape
    H = params['lin_w'].shape[0]

    def fold_bias(bih, bhh):
        # b_ih (all gates) + b_hh (r, z gates only); the n-gate b_hh stays in-loop.
        return bih + jnp.concatenate(
            [bhh[:, :2 * H], jnp.zeros((1, H), jnp.float32)], axis=1)

    # Host-side weight prep: pre-transpose, fold biases, split per direction/half.
    wih_f_t = params['wih_f'].T.astype(jnp.bfloat16)             # (D, 3H)
    wih_b_t = params['wih_b'].T.astype(jnp.bfloat16)             # (D, 3H)
    bias_f = fold_bias(params['bih_f'], params['bhh_f'])         # (1, 3H) f32
    bias_b = fold_bias(params['bih_b'], params['bhh_b'])         # (1, 3H) f32
    whh_f_t = params['whh_f'].T                                  # (H, 3H) f32
    whh_b_t = params['whh_b'].T                                  # (H, 3H) f32
    bhh_nf = params['bhh_f'][:, 2 * H:]                          # (1, H) f32
    bhh_nb = params['bhh_b'][:, 2 * H:]                          # (1, H) f32
    ln_gf, ln_gb = params['ln_g'][:, :H], params['ln_g'][:, H:]  # (1, H) each
    ln_bf, ln_bb = params['ln_b'][:, :H], params['ln_b'][:, H:]
    lin_wf = params['lin_w'][:, :H].T.astype(jnp.bfloat16)       # (H, H)
    lin_wb = params['lin_w'][:, H:].T.astype(jnp.bfloat16)       # (H, H)

    x2 = x.reshape(T * B, D).astype(jnp.bfloat16)                # time/batch flattened

    args = (x2,
            wih_f_t, wih_b_t, bias_f, bias_b,
            whh_f_t, whh_b_t, bhh_nf, bhh_nb,
            ln_gf, ln_gb, ln_bf, ln_bb,
            lin_wf, lin_wb, params['lin_b'])

    vmem = pl.BlockSpec(memory_space=pltpu.MemorySpace.VMEM)
    kernel = functools.partial(_sentence_encoder_kernel, T=T, B=B, H=H)
    out2, hid = pl.pallas_call(
        kernel,
        out_shape=(jax.ShapeDtypeStruct((T * B, H), jnp.float32),
                   jax.ShapeDtypeStruct((2, B, H), jnp.float32)),
        in_specs=[vmem] * len(args),
        out_specs=(vmem, vmem),
    )(*args)
    return out2.reshape(T, B, H), hid


def sentence_encoder_reference(x, params):
    """Pure-JAX f32 reference (PyTorch bidirectional GRU -> LayerNorm -> Linear)."""
    T, B, D = x.shape
    H = params['lin_w'].shape[0]

    def gru_dir(wih, whh, bih, bhh, xs):
        def cell(h, xt):
            gi = xt @ wih.T + bih
            gh = h @ whh.T + bhh
            r = jax.nn.sigmoid(gi[:, :H] + gh[:, :H])
            z = jax.nn.sigmoid(gi[:, H:2 * H] + gh[:, H:2 * H])
            n = jnp.tanh(gi[:, 2 * H:] + r * gh[:, 2 * H:])
            h_new = (1.0 - z) * n + z * h
            return h_new, h_new
        h0 = jnp.zeros((B, H), jnp.float32)
        return lax.scan(cell, h0, xs)

    hf_fin, f_outs = gru_dir(params['wih_f'], params['whh_f'],
                             params['bih_f'], params['bhh_f'], x)
    hb_fin, b_rev = gru_dir(params['wih_b'], params['whh_b'],
                            params['bih_b'], params['bhh_b'], x[::-1])
    b_outs = b_rev[::-1]
    y = jnp.concatenate([f_outs, b_outs], axis=-1)               # (T, B, 2H)
    mean = y.mean(-1, keepdims=True)
    var = ((y - mean) ** 2).mean(-1, keepdims=True)
    yn = (y - mean) / jnp.sqrt(var + 1e-5) * params['ln_g'][0] + params['ln_b'][0]
    out = yn @ params['lin_w'].T + params['lin_b'][0]
    hid = jnp.stack([hf_fin, hb_fin])
    return out, hid


def init_params(key, input_size, hidden_size):
    """Deterministic parameter init (PyTorch-style U(-1/sqrt(H), 1/sqrt(H)))."""
    D, H = input_size, hidden_size
    k = 1.0 / (H ** 0.5)
    keys = jax.random.split(key, 10)
    u = lambda kk, shape: jax.random.uniform(kk, shape, jnp.float32, -k, k)
    return dict(
        # GRU forward direction (PyTorch layout: weight_ih (3H, D), weight_hh (3H, H))
        wih_f=u(keys[0], (3 * H, D)),
        whh_f=u(keys[1], (3 * H, H)),
        bih_f=u(keys[2], (1, 3 * H)),
        bhh_f=u(keys[3], (1, 3 * H)),
        # GRU backward direction
        wih_b=u(keys[4], (3 * H, D)),
        whh_b=u(keys[5], (3 * H, H)),
        bih_b=u(keys[6], (1, 3 * H)),
        bhh_b=u(keys[7], (1, 3 * H)),
        # LayerNorm(2H): default gamma=1, beta=0
        ln_g=jnp.ones((1, 2 * H), jnp.float32),
        ln_b=jnp.zeros((1, 2 * H), jnp.float32),
        # Linear(2H -> H) (PyTorch layout: weight (H, 2H))
        lin_w=u(keys[8], (H, 2 * H)),
        lin_b=u(keys[9], (1, H)),
    )


if __name__ == "__main__":
    T, B, D, H = 8, 2, 16, 32   # seq_len, batch, input_size, hidden_size

    root = jax.random.PRNGKey(0)
    k_x, k_p = jax.random.split(root)

    x = jax.random.normal(k_x, (T, B, D), jnp.float32)
    hidden0 = jnp.zeros((2, B, H), jnp.float32)   # initHidden-style, unused by forward
    params = init_params(k_p, D, H)

    out, hid = sentence_encoder_forward(x, hidden0, params)
    jax.block_until_ready((out, hid))

    assert out.shape == (T, B, H) and hid.shape == (2, B, H)
    assert bool(jnp.all(jnp.isfinite(out))) and bool(jnp.all(jnp.isfinite(hid)))

    # Structural correctness check vs. pure-JAX reference (loose tol: the kernel
    # uses bf16 operands for the input projection and final Linear).
    ref_out, ref_hid = sentence_encoder_reference(x, params)
    assert bool(jnp.allclose(out, ref_out, atol=1e-1, rtol=1e-1))
    assert bool(jnp.allclose(hid, ref_hid, atol=1e-1, rtol=1e-1))

    print("KERNEL_OK")
</pallas_src>

<mosaic_0001>
module attributes {stable_mosaic.version = 11 : i64} {
  func.func @_sentence_encoder_kernel(%arg0: memref<16x16xbf16, #tpu.memory_space<vmem>>, %arg1: memref<16x96xbf16, #tpu.memory_space<vmem>>, %arg2: memref<16x96xbf16, #tpu.memory_space<vmem>>, %arg3: memref<1x96xf32, #tpu.memory_space<vmem>>, %arg4: memref<1x96xf32, #tpu.memory_space<vmem>>, %arg5: memref<32x96xf32, #tpu.memory_space<vmem>>, %arg6: memref<32x96xf32, #tpu.memory_space<vmem>>, %arg7: memref<1x32xf32, #tpu.memory_space<vmem>>, %arg8: memref<1x32xf32, #tpu.memory_space<vmem>>, %arg9: memref<1x32xf32, #tpu.memory_space<vmem>>, %arg10: memref<1x32xf32, #tpu.memory_space<vmem>>, %arg11: memref<1x32xf32, #tpu.memory_space<vmem>>, %arg12: memref<1x32xf32, #tpu.memory_space<vmem>>, %arg13: memref<32x32xbf16, #tpu.memory_space<vmem>>, %arg14: memref<32x32xbf16, #tpu.memory_space<vmem>>, %arg15: memref<1x32xf32, #tpu.memory_space<vmem>>, %arg16: memref<16x32xf32, #tpu.memory_space<vmem>>, %arg17: memref<2x2x32xf32, #tpu.memory_space<vmem>>) attributes {dimension_semantics = [], scalar_prefetch = 0 : i64, scratch_operands = 0 : i64, tpu.core_type = #tpu.core_type<tc>} {
    %c0 = arith.constant 0 : index
    %c0_0 = arith.constant 0 : index
    %0 = vector.load %arg0[%c0, %c0_0] : memref<16x16xbf16, #tpu.memory_space<vmem>>, vector<16x16xbf16>
    %c0_1 = arith.constant 0 : index
    %c0_2 = arith.constant 0 : index
    %1 = vector.load %arg1[%c0_1, %c0_2] : memref<16x96xbf16, #tpu.memory_space<vmem>>, vector<16x96xbf16>
    %cst = arith.constant dense<0.000000e+00> : vector<16x96xf32>
    %2 = tpu.matmul %0, %1, %cst {dimension_numbers = #tpu.dot_dimension_numbers<[1], [0], [0], [1], [0, 0, 1, 1], [], []>} : vector<16x16xbf16>, vector<16x96xbf16>, vector<16x96xf32> -> vector<16x96xf32>
    %c0_3 = arith.constant 0 : index
    %c0_4 = arith.constant 0 : index
    %3 = vector.load %arg3[%c0_3, %c0_4] : memref<1x96xf32, #tpu.memory_space<vmem>>, vector<1x96xf32>
    %4 = vector.broadcast %3 : vector<1x96xf32> to vector<16x96xf32>
    %5 = arith.addf %2, %4 : vector<16x96xf32>
    %c0_5 = arith.constant 0 : index
    %c0_6 = arith.constant 0 : index
    %6 = vector.load %arg2[%c0_5, %c0_6] : memref<16x96xbf16, #tpu.memory_space<vmem>>, vector<16x96xbf16>
    %cst_7 = arith.constant dense<0.000000e+00> : vector<16x96xf32>
    %7 = tpu.matmul %0, %6, %cst_7 {dimension_numbers = #tpu.dot_dimension_numbers<[1], [0], [0], [1], [0, 0, 1, 1], [], []>} : vector<16x16xbf16>, vector<16x96xbf16>, vector<16x96xf32> -> vector<16x96xf32>
    %c0_8 = arith.constant 0 : index
    %c0_9 = arith.constant 0 : index
    %8 = vector.load %arg4[%c0_8, %c0_9] : memref<1x96xf32, #tpu.memory_space<vmem>>, vector<1x96xf32>
    %9 = vector.broadcast %8 : vector<1x96xf32> to vector<16x96xf32>
    %10 = arith.addf %7, %9 : vector<16x96xf32>
    %c0_10 = arith.constant 0 : index
    %c0_11 = arith.constant 0 : index
    %11 = vector.load %arg5[%c0_10, %c0_11] : memref<32x96xf32, #tpu.memory_space<vmem>>, vector<32x96xf32>
    %c0_12 = arith.constant 0 : index
    %c0_13 = arith.constant 0 : index
    %12 = vector.load %arg6[%c0_12, %c0_13] : memref<32x96xf32, #tpu.memory_space<vmem>>, vector<32x96xf32>
    %c0_14 = arith.constant 0 : index
    %c0_15 = arith.constant 0 : index
    %13 = vector.load %arg7[%c0_14, %c0_15] : memref<1x32xf32, #tpu.memory_space<vmem>>, vector<1x32xf32>
    %c0_16 = arith.constant 0 : index
    %c0_17 = arith.constant 0 : index
    %14 = vector.load %arg8[%c0_16, %c0_17] : memref<1x32xf32, #tpu.memory_space<vmem>>, vector<1x32xf32>
    %cst_18 = arith.constant 0.000000e+00 : f32
    %15 = vector.broadcast %cst_18 : f32 to vector<2x32xf32>
    %cst_19 = arith.constant 0.000000e+00 : f32
    %16 = vector.broadcast %cst_19 : f32 to vector<2x32xf32>
    %17 = vector.extract_strided_slice %5 {offsets = [0, 0], sizes = [2, 96], strides = [1, 1]} : vector<16x96xf32> to vector<2x96xf32>
    %18 = vector.extract_strided_slice %10 {offsets = [14, 0], sizes = [2, 96], strides = [1, 1]} : vector<16x96xf32> to vector<2x96xf32>
    %cst_20 = arith.constant dense<0.000000e+00> : vector<2x96xf32>
    %19 = tpu.matmul %15, %11, %cst_20 {dimension_numbers = #tpu.dot_dimension_numbers<[1], [0], [0], [1], [0, 0, 1, 1], [], []>} : vector<2x32xf32>, vector<32x96xf32>, vector<2x96xf32> -> vector<2x96xf32>
    %cst_21 = arith.constant dense<0.000000e+00> : vector<2x96xf32>
    %20 = tpu.matmul %16, %12, %cst_21 {dimension_numbers = #tpu.dot_dimension_numbers<[1], [0], [0], [1], [0, 0, 1, 1], [], []>} : vector<2x32xf32>, vector<32x96xf32>, vector<2x96xf32> -> vector<2x96xf32>
    %21 = vector.extract_strided_slice %17 {offsets = [0, 0], sizes = [2, 32], strides = [1, 1]} : vector<2x96xf32> to vector<2x32xf32>
    %22 = vector.extract_strided_slice %19 {offsets = [0, 0], sizes = [2, 32], strides = [1, 1]} : vector<2x96xf32> to vector<2x32xf32>
    %23 = arith.addf %21, %22 : vector<2x32xf32>
    %24 = arith.negf %23 : vector<2x32xf32>
    %25 = math.exp %24 : vector<2x32xf32>
    %cst_22 = arith.constant 1.000000e+00 : f32
    %26 = vector.broadcast %cst_22 : f32 to vector<2x32xf32>
    %27 = arith.addf %26, %25 : vector<2x32xf32>
    %28 = arith.divf %26, %27 : vector<2x32xf32>
    %29 = vector.extract_strided_slice %17 {offsets = [0, 32], sizes = [2, 32], strides = [1, 1]} : vector<2x96xf32> to vector<2x32xf32>
    %30 = vector.extract_strided_slice %19 {offsets = [0, 32], sizes = [2, 32], strides = [1, 1]} : vector<2x96xf32> to vector<2x32xf32>
    %31 = arith.addf %29, %30 : vector<2x32xf32>
    %32 = arith.negf %31 : vector<2x32xf32>
    %33 = math.exp %32 : vector<2x32xf32>
    %cst_23 = arith.constant 1.000000e+00 : f32
    %34 = vector.broadcast %cst_23 : f32 to vector<2x32xf32>
    %35 = arith.addf %34, %33 : vector<2x32xf32>
    %36 = arith.divf %34, %35 : vector<2x32xf32>
    %37 = vector.extract_strided_slice %17 {offsets = [0, 64], sizes = [2, 32], strides = [1, 1]} : vector<2x96xf32> to vector<2x32xf32>
    %38 = vector.extract_strided_slice %19 {offsets = [0, 64], sizes = [2, 32], strides = [1, 1]} : vector<2x96xf32> to vector<2x32xf32>
    %39 = vector.broadcast %13 : vector<1x32xf32> to vector<2x32xf32>
    %40 = arith.addf %38, %39 : vector<2x32xf32>
    %41 = arith.mulf %28, %40 : vector<2x32xf32>
    %42 = arith.addf %37, %41 : vector<2x32xf32>
    %43 = math.tanh %42 : vector<2x32xf32>
    %cst_24 = arith.constant 1.000000e+00 : f32
    %44 = vector.broadcast %cst_24 : f32 to vector<2x32xf32>
    %45 = arith.subf %44, %36 : vector<2x32xf32>
    %46 = arith.mulf %45, %43 : vector<2x32xf32>
    %47 = arith.mulf %36, %15 : vector<2x32xf32>
    %48 = arith.addf %46, %47 : vector<2x32xf32>
    %49 = vector.extract_strided_slice %18 {offsets = [0, 0], sizes = [2, 32], strides = [1, 1]} : vector<2x96xf32> to vector<2x32xf32>
    %50 = vector.extract_strided_slice %20 {offsets = [0, 0], sizes = [2, 32], strides = [1, 1]} : vector<2x96xf32> to vector<2x32xf32>
    %51 = arith.addf %49, %50 : vector<2x32xf32>
    %52 = arith.negf %51 : vector<2x32xf32>
    %53 = math.exp %52 : vector<2x32xf32>
    %cst_25 = arith.constant 1.000000e+00 : f32
    %54 = vector.broadcast %cst_25 : f32 to vector<2x32xf32>
    %55 = arith.addf %54, %53 : vector<2x32xf32>
    %56 = arith.divf %54, %55 : vector<2x32xf32>
    %57 = vector.extract_strided_slice %18 {offsets = [0, 32], sizes = [2, 32], strides = [1, 1]} : vector<2x96xf32> to vector<2x32xf32>
    %58 = vector.extract_strided_slice %20 {offsets = [0, 32], sizes = [2, 32], strides = [1, 1]} : vector<2x96xf32> to vector<2x32xf32>
    %59 = arith.addf %57, %58 : vector<2x32xf32>
    %60 = arith.negf %59 : vector<2x32xf32>
    %61 = math.exp %60 : vector<2x32xf32>
    %cst_26 = arith.constant 1.000000e+00 : f32
    %62 = vector.broadcast %cst_26 : f32 to vector<2x32xf32>
    %63 = arith.addf %62, %61 : vector<2x32xf32>
    %64 = arith.divf %62, %63 : vector<2x32xf32>
    %65 = vector.extract_strided_slice %18 {offsets = [0, 64], sizes = [2, 32], strides = [1, 1]} : vector<2x96xf32> to vector<2x32xf32>
    %66 = vector.extract_strided_slice %20 {offsets = [0, 64], sizes = [2, 32], strides = [1, 1]} : vector<2x96xf32> to vector<2x32xf32>
    %67 = vector.broadcast %14 : vector<1x32xf32> to vector<2x32xf32>
    %68 = arith.addf %66, %67 : vector<2x32xf32>
    %69 = arith.mulf %56, %68 : vector<2x32xf32>
    %70 = arith.addf %65, %69 : vector<2x32xf32>
    %71 = math.tanh %70 : vector<2x32xf32>
    %cst_27 = arith.constant 1.000000e+00 : f32
    %72 = vector.broadcast %cst_27 : f32 to vector<2x32xf32>
    %73 = arith.subf %72, %64 : vector<2x32xf32>
    %74 = arith.mulf %73, %71 : vector<2x32xf32>
    %75 = arith.mulf %64, %16 : vector<2x32xf32>
    %76 = arith.addf %74, %75 : vector<2x32xf32>
    %77 = vector.extract_strided_slice %5 {offsets = [2, 0], sizes = [2, 96], strides = [1, 1]} : vector<16x96xf32> to vector<2x96xf32>
    %78 = vector.extract_strided_slice %10 {offsets = [12, 0], sizes = [2, 96], strides = [1, 1]} : vector<16x96xf32> to vector<2x96xf32>
    %cst_28 = arith.constant dense<0.000000e+00> : vector<2x96xf32>
    %79 = tpu.matmul %48, %11, %cst_28 {dimension_numbers = #tpu.dot_dimension_numbers<[1], [0], [0], [1], [0, 0, 1, 1], [], []>} : vector<2x32xf32>, vector<32x96xf32>, vector<2x96xf32> -> vector<2x96xf32>
    %cst_29 = arith.constant dense<0.000000e+00> : vector<2x96xf32>
    %80 = tpu.matmul %76, %12, %cst_29 {dimension_numbers = #tpu.dot_dimension_numbers<[1], [0], [0], [1], [0, 0, 1, 1], [], []>} : vector<2x32xf32>, vector<32x96xf32>, vector<2x96xf32> -> vector<2x96xf32>
    %81 = vector.extract_strided_slice %77 {offsets = [0, 0], sizes = [2, 32], strides = [1, 1]} : vector<2x96xf32> to vector<2x32xf32>
    %82 = vector.extract_strided_slice %79 {offsets = [0, 0], sizes = [2, 32], strides = [1, 1]} : vector<2x96xf32> to vector<2x32xf32>
    %83 = arith.addf %81, %82 : vector<2x32xf32>
    %84 = arith.negf %83 : vector<2x32xf32>
    %85 = math.exp %84 : vector<2x32xf32>
    %cst_30 = arith.constant 1.000000e+00 : f32
    %86 = vector.broadcast %cst_30 : f32 to vector<2x32xf32>
    %87 = arith.addf %86, %85 : vector<2x32xf32>
    %88 = arith.divf %86, %87 : vector<2x32xf32>
    %89 = vector.extract_strided_slice %77 {offsets = [0, 32], sizes = [2, 32], strides = [1, 1]} : vector<2x96xf32> to vector<2x32xf32>
    %90 = vector.extract_strided_slice %79 {offsets = [0, 32], sizes = [2, 32], strides = [1, 1]} : vector<2x96xf32> to vector<2x32xf32>
    %91 = arith.addf %89, %90 : vector<2x32xf32>
    %92 = arith.negf %91 : vector<2x32xf32>
    %93 = math.exp %92 : vector<2x32xf32>
    %cst_31 = arith.constant 1.000000e+00 : f32
    %94 = vector.broadcast %cst_31 : f32 to vector<2x32xf32>
    %95 = arith.addf %94, %93 : vector<2x32xf32>
    %96 = arith.divf %94, %95 : vector<2x32xf32>
    %97 = vector.extract_strided_slice %77 {offsets = [0, 64], sizes = [2, 32], strides = [1, 1]} : vector<2x96xf32> to vector<2x32xf32>
    %98 = vector.extract_strided_slice %79 {offsets = [0, 64], sizes = [2, 32], strides = [1, 1]} : vector<2x96xf32> to vector<2x32xf32>
    %99 = vector.broadcast %13 : vector<1x32xf32> to vector<2x32xf32>
    %100 = arith.addf %98, %99 : vector<2x32xf32>
    %101 = arith.mulf %88, %100 : vector<2x32xf32>
    %102 = arith.addf %97, %101 : vector<2x32xf32>
    %103 = math.tanh %102 : vector<2x32xf32>
    %cst_32 = arith.constant 1.000000e+00 : f32
    %104 = vector.broadcast %cst_32 : f32 to vector<2x32xf32>
    %105 = arith.subf %104, %96 : vector<2x32xf32>
    %106 = arith.mulf %105, %103 : vector<2x32xf32>
    %107 = arith.mulf %96, %48 : vector<2x32xf32>
    %108 = arith.addf %106, %107 : vector<2x32xf32>
    %109 = vector.extract_strided_slice %78 {offsets = [0, 0], sizes = [2, 32], strides = [1, 1]} : vector<2x96xf32> to vector<2x32xf32>
    %110 = vector.extract_strided_slice %80 {offsets = [0, 0], sizes = [2, 32], strides = [1, 1]} : vector<2x96xf32> to vector<2x32xf32>
    %111 = arith.addf %109, %110 : vector<2x32xf32>
    %112 = arith.negf %111 : vector<2x32xf32>
    %113 = math.exp %112 : vector<2x32xf32>
    %cst_33 = arith.constant 1.000000e+00 : f32
    %114 = vector.broadcast %cst_33 : f32 to vector<2x32xf32>
    %115 = arith.addf %114, %113 : vector<2x32xf32>
    %116 = arith.divf %114, %115 : vector<2x32xf32>
    %117 = vector.extract_strided_slice %78 {offsets = [0, 32], sizes = [2, 32], strides = [1, 1]} : vector<2x96xf32> to vector<2x32xf32>
    %118 = vector.extract_strided_slice %80 {offsets = [0, 32], sizes = [2, 32], strides = [1, 1]} : vector<2x96xf32> to vector<2x32xf32>
    %119 = arith.addf %117, %118 : vector<2x32xf32>
    %120 = arith.negf %119 : vector<2x32xf32>
    %121 = math.exp %120 : vector<2x32xf32>
    %cst_34 = arith.constant 1.000000e+00 : f32
    %122 = vector.broadcast %cst_34 : f32 to vector<2x32xf32>
    %123 = arith.addf %122, %121 : vector<2x32xf32>
    %124 = arith.divf %122, %123 : vector<2x32xf32>
    %125 = vector.extract_strided_slice %78 {offsets = [0, 64], sizes = [2, 32], strides = [1, 1]} : vector<2x96xf32> to vector<2x32xf32>
    %126 = vector.extract_strided_slice %80 {offsets = [0, 64], sizes = [2, 32], strides = [1, 1]} : vector<2x96xf32> to vector<2x32xf32>
    %127 = vector.broadcast %14 : vector<1x32xf32> to vector<2x32xf32>
    %128 = arith.addf %126, %127 : vector<2x32xf32>
    %129 = arith.mulf %116, %128 : vector<2x32xf32>
    %130 = arith.addf %125, %129 : vector<2x32xf32>
    %131 = math.tanh %130 : vector<2x32xf32>
    %cst_35 = arith.constant 1.000000e+00 : f32
    %132 = vector.broadcast %cst_35 : f32 to vector<2x32xf32>
    %133 = arith.subf %132, %124 : vector<2x32xf32>
    %134 = arith.mulf %133, %131 : vector<2x32xf32>
    %135 = arith.mulf %124, %76 : vector<2x32xf32>
    %136 = arith.addf %134, %135 : vector<2x32xf32>
    %137 = vector.extract_strided_slice %5 {offsets = [4, 0], sizes = [2, 96], strides = [1, 1]} : vector<16x96xf32> to vector<2x96xf32>
    %138 = vector.extract_strided_slice %10 {offsets = [10, 0], sizes = [2, 96], strides = [1, 1]} : vector<16x96xf32> to vector<2x96xf32>
    %cst_36 = arith.constant dense<0.000000e+00> : vector<2x96xf32>
    %139 = tpu.matmul %108, %11, %cst_36 {dimension_numbers = #tpu.dot_dimension_numbers<[1], [0], [0], [1], [0, 0, 1, 1], [], []>} : vector<2x32xf32>, vector<32x96xf32>, vector<2x96xf32> -> vector<2x96xf32>
    %cst_37 = arith.constant dense<0.000000e+00> : vector<2x96xf32>
    %140 = tpu.matmul %136, %12, %cst_37 {dimension_numbers = #tpu.dot_dimension_numbers<[1], [0], [0], [1], [0, 0, 1, 1], [], []>} : vector<2x32xf32>, vector<32x96xf32>, vector<2x96xf32> -> vector<2x96xf32>
    %141 = vector.extract_strided_slice %137 {offsets = [0, 0], sizes = [2, 32], strides = [1, 1]} : vector<2x96xf32> to vector<2x32xf32>
    %142 = vector.extract_strided_slice %139 {offsets = [0, 0], sizes = [2, 32], strides = [1, 1]} : vector<2x96xf32> to vector<2x32xf32>
    %143 = arith.addf %141, %142 : vector<2x32xf32>
    %144 = arith.negf %143 : vector<2x32xf32>
    %145 = math.exp %144 : vector<2x32xf32>
    %cst_38 = arith.constant 1.000000e+00 : f32
    %146 = vector.broadcast %cst_38 : f32 to vector<2x32xf32>
    %147 = arith.addf %146, %145 : vector<2x32xf32>
    %148 = arith.divf %146, %147 : vector<2x32xf32>
    %149 = vector.extract_strided_slice %137 {offsets = [0, 32], sizes = [2, 32], strides = [1, 1]} : vector<2x96xf32> to vector<2x32xf32>
    %150 = vector.extract_strided_slice %139 {offsets = [0, 32], sizes = [2, 32], strides = [1, 1]} : vector<2x96xf32> to vector<2x32xf32>
    %151 = arith.addf %149, %150 : vector<2x32xf32>
    %152 = arith.negf %151 : vector<2x32xf32>
    %153 = math.exp %152 : vector<2x32xf32>
    %cst_39 = arith.constant 1.000000e+00 : f32
    %154 = vector.broadcast %cst_39 : f32 to vector<2x32xf32>
    %155 = arith.addf %154, %153 : vector<2x32xf32>
    %156 = arith.divf %154, %155 : vector<2x32xf32>
    %157 = vector.extract_strided_slice %137 {offsets = [0, 64], sizes = [2, 32], strides = [1, 1]} : vector<2x96xf32> to vector<2x32xf32>
    %158 = vector.extract_strided_slice %139 {offsets = [0, 64], sizes = [2, 32], strides = [1, 1]} : vector<2x96xf32> to vector<2x32xf32>
    %159 = vector.broadcast %13 : vector<1x32xf32> to vector<2x32xf32>
    %160 = arith.addf %158, %159 : vector<2x32xf32>
    %161 = arith.mulf %148, %160 : vector<2x32xf32>
    %162 = arith.addf %157, %161 : vector<2x32xf32>
    %163 = math.tanh %162 : vector<2x32xf32>
    %cst_40 = arith.constant 1.000000e+00 : f32
    %164 = vector.broadcast %cst_40 : f32 to vector<2x32xf32>
    %165 = arith.subf %164, %156 : vector<2x32xf32>
    %166 = arith.mulf %165, %163 : vector<2x32xf32>
    %167 = arith.mulf %156, %108 : vector<2x32xf32>
    %168 = arith.addf %166, %167 : vector<2x32xf32>
    %169 = vector.extract_strided_slice %138 {offsets = [0, 0], sizes = [2, 32], strides = [1, 1]} : vector<2x96xf32> to vector<2x32xf32>
    %170 = vector.extract_strided_slice %140 {offsets = [0, 0], sizes = [2, 32], strides = [1, 1]} : vector<2x96xf32> to vector<2x32xf32>
    %171 = arith.addf %169, %170 : vector<2x32xf32>
    %172 = arith.negf %171 : vector<2x32xf32>
    %173 = math.exp %172 : vector<2x32xf32>
    %cst_41 = arith.constant 1.000000e+00 : f32
    %174 = vector.broadcast %cst_41 : f32 to vector<2x32xf32>
    %175 = arith.addf %174, %173 : vector<2x32xf32>
    %176 = arith.divf %174, %175 : vector<2x32xf32>
    %177 = vector.extract_strided_slice %138 {offsets = [0, 32], sizes = [2, 32], strides = [1, 1]} : vector<2x96xf32> to vector<2x32xf32>
    %178 = vector.extract_strided_slice %140 {offsets = [0, 32], sizes = [2, 32], strides = [1, 1]} : vector<2x96xf32> to vector<2x32xf32>
    %179 = arith.addf %177, %178 : vector<2x32xf32>
    %180 = arith.negf %179 : vector<2x32xf32>
    %181 = math.exp %180 : vector<2x32xf32>
    %cst_42 = arith.constant 1.000000e+00 : f32
    %182 = vector.broadcast %cst_42 : f32 to vector<2x32xf32>
    %183 = arith.addf %182, %181 : vector<2x32xf32>
    %184 = arith.divf %182, %183 : vector<2x32xf32>
    %185 = vector.extract_strided_slice %138 {offsets = [0, 64], sizes = [2, 32], strides = [1, 1]} : vector<2x96xf32> to vector<2x32xf32>
    %186 = vector.extract_strided_slice %140 {offsets = [0, 64], sizes = [2, 32], strides = [1, 1]} : vector<2x96xf32> to vector<2x32xf32>
    %187 = vector.broadcast %14 : vector<1x32xf32> to vector<2x32xf32>
    %188 = arith.addf %186, %187 : vector<2x32xf32>
    %189 = arith.mulf %176, %188 : vector<2x32xf32>
    %190 = arith.addf %185, %189 : vector<2x32xf32>
    %191 = math.tanh %190 : vector<2x32xf32>
    %cst_43 = arith.constant 1.000000e+00 : f32
    %192 = vector.broadcast %cst_43 : f32 to vector<2x32xf32>
    %193 = arith.subf %192, %184 : vector<2x32xf32>
    %194 = arith.mulf %193, %191 : vector<2x32xf32>
    %195 = arith.mulf %184, %136 : vector<2x32xf32>
    %196 = arith.addf %194, %195 : vector<2x32xf32>
    %197 = vector.extract_strided_slice %5 {offsets = [6, 0], sizes = [2, 96], strides = [1, 1]} : vector<16x96xf32> to vector<2x96xf32>
    %198 = vector.extract_strided_slice %10 {offsets = [8, 0], sizes = [2, 96], strides = [1, 1]} : vector<16x96xf32> to vector<2x96xf32>
    %cst_44 = arith.constant dense<0.000000e+00> : vector<2x96xf32>
    %199 = tpu.matmul %168, %11, %cst_44 {dimension_numbers = #tpu.dot_dimension_numbers<[1], [0], [0], [1], [0, 0, 1, 1], [], []>} : vector<2x32xf32>, vector<32x96xf32>, vector<2x96xf32> -> vector<2x96xf32>
    %cst_45 = arith.constant dense<0.000000e+00> : vector<2x96xf32>
    %200 = tpu.matmul %196, %12, %cst_45 {dimension_numbers = #tpu.dot_dimension_numbers<[1], [0], [0], [1], [0, 0, 1, 1], [], []>} : vector<2x32xf32>, vector<32x96xf32>, vector<2x96xf32> -> vector<2x96xf32>
    %201 = vector.extract_strided_slice %197 {offsets = [0, 0], sizes = [2, 32], strides = [1, 1]} : vector<2x96xf32> to vector<2x32xf32>
    %202 = vector.extract_strided_slice %199 {offsets = [0, 0], sizes = [2, 32], strides = [1, 1]} : vector<2x96xf32> to vector<2x32xf32>
    %203 = arith.addf %201, %202 : vector<2x32xf32>
    %204 = arith.negf %203 : vector<2x32xf32>
    %205 = math.exp %204 : vector<2x32xf32>
    %cst_46 = arith.constant 1.000000e+00 : f32
    %206 = vector.broadcast %cst_46 : f32 to vector<2x32xf32>
    %207 = arith.addf %206, %205 : vector<2x32xf32>
    %208 = arith.divf %206, %207 : vector<2x32xf32>
    %209 = vector.extract_strided_slice %197 {offsets = [0, 32], sizes = [2, 32], strides = [1, 1]} : vector<2x96xf32> to vector<2x32xf32>
    %210 = vector.extract_strided_slice %199 {offsets = [0, 32], sizes = [2, 32], strides = [1, 1]} : vector<2x96xf32> to vector<2x32xf32>
    %211 = arith.addf %209, %210 : vector<2x32xf32>
    %212 = arith.negf %211 : vector<2x32xf32>
    %213 = math.exp %212 : vector<2x32xf32>
    %cst_47 = arith.constant 1.000000e+00 : f32
    %214 = vector.broadcast %cst_47 : f32 to vector<2x32xf32>
    %215 = arith.addf %214, %213 : vector<2x32xf32>
    %216 = arith.divf %214, %215 : vector<2x32xf32>
    %217 = vector.extract_strided_slice %197 {offsets = [0, 64], sizes = [2, 32], strides = [1, 1]} : vector<2x96xf32> to vector<2x32xf32>
    %218 = vector.extract_strided_slice %199 {offsets = [0, 64], sizes = [2, 32], strides = [1, 1]} : vector<2x96xf32> to vector<2x32xf32>
    %219 = vector.broadcast %13 : vector<1x32xf32> to vector<2x32xf32>
    %220 = arith.addf %218, %219 : vector<2x32xf32>
    %221 = arith.mulf %208, %220 : vector<2x32xf32>
    %222 = arith.addf %217, %221 : vector<2x32xf32>
    %223 = math.tanh %222 : vector<2x32xf32>
    %cst_48 = arith.constant 1.000000e+00 : f32
    %224 = vector.broadcast %cst_48 : f32 to vector<2x32xf32>
    %225 = arith.subf %224, %216 : vector<2x32xf32>
    %226 = arith.mulf %225, %223 : vector<2x32xf32>
    %227 = arith.mulf %216, %168 : vector<2x32xf32>
    %228 = arith.addf %226, %227 : vector<2x32xf32>
    %229 = vector.extract_strided_slice %198 {offsets = [0, 0], sizes = [2, 32], strides = [1, 1]} : vector<2x96xf32> to vector<2x32xf32>
    %230 = vector.extract_strided_slice %200 {offsets = [0, 0], sizes = [2, 32], strides = [1, 1]} : vector<2x96xf32> to vector<2x32xf32>
    %231 = arith.addf %229, %230 : vector<2x32xf32>
    %232 = arith.negf %231 : vector<2x32xf32>
    %233 = math.exp %232 : vector<2x32xf32>
    %cst_49 = arith.constant 1.000000e+00 : f32
    %234 = vector.broadcast %cst_49 : f32 to vector<2x32xf32>
    %235 = arith.addf %234, %233 : vector<2x32xf32>
    %236 = arith.divf %234, %235 : vector<2x32xf32>
    %237 = vector.extract_strided_slice %198 {offsets = [0, 32], sizes = [2, 32], strides = [1, 1]} : vector<2x96xf32> to vector<2x32xf32>
    %238 = vector.extract_strided_slice %200 {offsets = [0, 32], sizes = [2, 32], strides = [1, 1]} : vector<2x96xf32> to vector<2x32xf32>
    %239 = arith.addf %237, %238 : vector<2x32xf32>
    %240 = arith.negf %239 : vector<2x32xf32>
    %241 = math.exp %240 : vector<2x32xf32>
    %cst_50 = arith.constant 1.000000e+00 : f32
    %242 = vector.broadcast %cst_50 : f32 to vector<2x32xf32>
    %243 = arith.addf %242, %241 : vector<2x32xf32>
    %244 = arith.divf %242, %243 : vector<2x32xf32>
    %245 = vector.extract_strided_slice %198 {offsets = [0, 64], sizes = [2, 32], strides = [1, 1]} : vector<2x96xf32> to vector<2x32xf32>
    %246 = vector.extract_strided_slice %200 {offsets = [0, 64], sizes = [2, 32], strides = [1, 1]} : vector<2x96xf32> to vector<2x32xf32>
    %247 = vector.broadcast %14 : vector<1x32xf32> to vector<2x32xf32>
    %248 = arith.addf %246, %247 : vector<2x32xf32>
    %249 = arith.mulf %236, %248 : vector<2x32xf32>
    %250 = arith.addf %245, %249 : vector<2x32xf32>
    %251 = math.tanh %250 : vector<2x32xf32>
    %cst_51 = arith.constant 1.000000e+00 : f32
    %252 = vector.broadcast %cst_51 : f32 to vector<2x32xf32>
    %253 = arith.subf %252, %244 : vector<2x32xf32>
    %254 = arith.mulf %253, %251 : vector<2x32xf32>
    %255 = arith.mulf %244, %196 : vector<2x32xf32>
    %256 = arith.addf %254, %255 : vector<2x32xf32>
    %257 = vector.extract_strided_slice %5 {offsets = [8, 0], sizes = [2, 96], strides = [1, 1]} : vector<16x96xf32> to vector<2x96xf32>
    %258 = vector.extract_strided_slice %10 {offsets = [6, 0], sizes = [2, 96], strides = [1, 1]} : vector<16x96xf32> to vector<2x96xf32>
    %cst_52 = arith.constant dense<0.000000e+00> : vector<2x96xf32>
    %259 = tpu.matmul %228, %11, %cst_52 {dimension_numbers = #tpu.dot_dimension_numbers<[1], [0], [0], [1], [0, 0, 1, 1], [], []>} : vector<2x32xf32>, vector<32x96xf32>, vector<2x96xf32> -> vector<2x96xf32>
    %cst_53 = arith.constant dense<0.000000e+00> : vector<2x96xf32>
    %260 = tpu.matmul %256, %12, %cst_53 {dimension_numbers = #tpu.dot_dimension_numbers<[1], [0], [0], [1], [0, 0, 1, 1], [], []>} : vector<2x32xf32>, vector<32x96xf32>, vector<2x96xf32> -> vector<2x96xf32>
    %261 = vector.extract_strided_slice %257 {offsets = [0, 0], sizes = [2, 32], strides = [1, 1]} : vector<2x96xf32> to vector<2x32xf32>
    %262 = vector.extract_strided_slice %259 {offsets = [0, 0], sizes = [2, 32], strides = [1, 1]} : vector<2x96xf32> to vector<2x32xf32>
    %263 = arith.addf %261, %262 : vector<2x32xf32>
    %264 = arith.negf %263 : vector<2x32xf32>
    %265 = math.exp %264 : vector<2x32xf32>
    %cst_54 = arith.constant 1.000000e+00 : f32
    %266 = vector.broadcast %cst_54 : f32 to vector<2x32xf32>
    %267 = arith.addf %266, %265 : vector<2x32xf32>
    %268 = arith.divf %266, %267 : vector<2x32xf32>
    %269 = vector.extract_strided_slice %257 {offsets = [0, 32], sizes = [2, 32], strides = [1, 1]} : vector<2x96xf32> to vector<2x32xf32>
    %270 = vector.extract_strided_slice %259 {offsets = [0, 32], sizes = [2, 32], strides = [1, 1]} : vector<2x96xf32> to vector<2x32xf32>
    %271 = arith.addf %269, %270 : vector<2x32xf32>
    %272 = arith.negf %271 : vector<2x32xf32>
    %273 = math.exp %272 : vector<2x32xf32>
    %cst_55 = arith.constant 1.000000e+00 : f32
    %274 = vector.broadcast %cst_55 : f32 to vector<2x32xf32>
    %275 = arith.addf %274, %273 : vector<2x32xf32>
    %276 = arith.divf %274, %275 : vector<2x32xf32>
    %277 = vector.extract_strided_slice %257 {offsets = [0, 64], sizes = [2, 32], strides = [1, 1]} : vector<2x96xf32> to vector<2x32xf32>
    %278 = vector.extract_strided_slice %259 {offsets = [0, 64], sizes = [2, 32], strides = [1, 1]} : vector<2x96xf32> to vector<2x32xf32>
    %279 = vector.broadcast %13 : vector<1x32xf32> to vector<2x32xf32>
    %280 = arith.addf %278, %279 : vector<2x32xf32>
    %281 = arith.mulf %268, %280 : vector<2x32xf32>
    %282 = arith.addf %277, %281 : vector<2x32xf32>
    %283 = math.tanh %282 : vector<2x32xf32>
    %cst_56 = arith.constant 1.000000e+00 : f32
    %284 = vector.broadcast %cst_56 : f32 to vector<2x32xf32>
    %285 = arith.subf %284, %276 : vector<2x32xf32>
    %286 = arith.mulf %285, %283 : vector<2x32xf32>
    %287 = arith.mulf %276, %228 : vector<2x32xf32>
    %288 = arith.addf %286, %287 : vector<2x32xf32>
    %289 = vector.extract_strided_slice %258 {offsets = [0, 0], sizes = [2, 32], strides = [1, 1]} : vector<2x96xf32> to vector<2x32xf32>
    %290 = vector.extract_strided_slice %260 {offsets = [0, 0], sizes = [2, 32], strides = [1, 1]} : vector<2x96xf32> to vector<2x32xf32>
    %291 = arith.addf %289, %290 : vector<2x32xf32>
    %292 = arith.negf %291 : vector<2x32xf32>
    %293 = math.exp %292 : vector<2x32xf32>
    %cst_57 = arith.constant 1.000000e+00 : f32
    %294 = vector.broadcast %cst_57 : f32 to vector<2x32xf32>
    %295 = arith.addf %294, %293 : vector<2x32xf32>
    %296 = arith.divf %294, %295 : vector<2x32xf32>
    %297 = vector.extract_strided_slice %258 {offsets = [0, 32], sizes = [2, 32], strides = [1, 1]} : vector<2x96xf32> to vector<2x32xf32>
    %298 = vector.extract_strided_slice %260 {offsets = [0, 32], sizes = [2, 32], strides = [1, 1]} : vector<2x96xf32> to vector<2x32xf32>
    %299 = arith.addf %297, %298 : vector<2x32xf32>
    %300 = arith.negf %299 : vector<2x32xf32>
    %301 = math.exp %300 : vector<2x32xf32>
    %cst_58 = arith.constant 1.000000e+00 : f32
    %302 = vector.broadcast %cst_58 : f32 to vector<2x32xf32>
    %303 = arith.addf %302, %301 : vector<2x32xf32>
    %304 = arith.divf %302, %303 : vector<2x32xf32>
    %305 = vector.extract_strided_slice %258 {offsets = [0, 64], sizes = [2, 32], strides = [1, 1]} : vector<2x96xf32> to vector<2x32xf32>
    %306 = vector.extract_strided_slice %260 {offsets = [0, 64], sizes = [2, 32], strides = [1, 1]} : vector<2x96xf32> to vector<2x32xf32>
    %307 = vector.broadcast %14 : vector<1x32xf32> to vector<2x32xf32>
    %308 = arith.addf %306, %307 : vector<2x32xf32>
    %309 = arith.mulf %296, %308 : vector<2x32xf32>
    %310 = arith.addf %305, %309 : vector<2x32xf32>
    %311 = math.tanh %310 : vector<2x32xf32>
    %cst_59 = arith.constant 1.000000e+00 : f32
    %312 = vector.broadcast %cst_59 : f32 to vector<2x32xf32>
    %313 = arith.subf %312, %304 : vector<2x32xf32>
    %314 = arith.mulf %313, %311 : vector<2x32xf32>
    %315 = arith.mulf %304, %256 : vector<2x32xf32>
    %316 = arith.addf %314, %315 : vector<2x32xf32>
    %317 = vector.extract_strided_slice %5 {offsets = [10, 0], sizes = [2, 96], strides = [1, 1]} : vector<16x96xf32> to vector<2x96xf32>
    %318 = vector.extract_strided_slice %10 {offsets = [4, 0], sizes = [2, 96], strides = [1, 1]} : vector<16x96xf32> to vector<2x96xf32>
    %cst_60 = arith.constant dense<0.000000e+00> : vector<2x96xf32>
    %319 = tpu.matmul %288, %11, %cst_60 {dimension_numbers = #tpu.dot_dimension_numbers<[1], [0], [0], [1], [0, 0, 1, 1], [], []>} : vector<2x32xf32>, vector<32x96xf32>, vector<2x96xf32> -> vector<2x96xf32>
    %cst_61 = arith.constant dense<0.000000e+00> : vector<2x96xf32>
    %320 = tpu.matmul %316, %12, %cst_61 {dimension_numbers = #tpu.dot_dimension_numbers<[1], [0], [0], [1], [0, 0, 1, 1], [], []>} : vector<2x32xf32>, vector<32x96xf32>, vector<2x96xf32> -> vector<2x96xf32>
    %321 = vector.extract_strided_slice %317 {offsets = [0, 0], sizes = [2, 32], strides = [1, 1]} : vector<2x96xf32> to vector<2x32xf32>
    %322 = vector.extract_strided_slice %319 {offsets = [0, 0], sizes = [2, 32], strides = [1, 1]} : vector<2x96xf32> to vector<2x32xf32>
    %323 = arith.addf %321, %322 : vector<2x32xf32>
    %324 = arith.negf %323 : vector<2x32xf32>
    %325 = math.exp %324 : vector<2x32xf32>
    %cst_62 = arith.constant 1.000000e+00 : f32
    %326 = vector.broadcast %cst_62 : f32 to vector<2x32xf32>
    %327 = arith.addf %326, %325 : vector<2x32xf32>
    %328 = arith.divf %326, %327 : vector<2x32xf32>
    %329 = vector.extract_strided_slice %317 {offsets = [0, 32], sizes = [2, 32], strides = [1, 1]} : vector<2x96xf32> to vector<2x32xf32>
    %330 = vector.extract_strided_slice %319 {offsets = [0, 32], sizes = [2, 32], strides = [1, 1]} : vector<2x96xf32> to vector<2x32xf32>
    %331 = arith.addf %329, %330 : vector<2x32xf32>
    %332 = arith.negf %331 : vector<2x32xf32>
    %333 = math.exp %332 : vector<2x32xf32>
    %cst_63 = arith.constant 1.000000e+00 : f32
    %334 = vector.broadcast %cst_63 : f32 to vector<2x32xf32>
    %335 = arith.addf %334, %333 : vector<2x32xf32>
    %336 = arith.divf %334, %335 : vector<2x32xf32>
    %337 = vector.extract_strided_slice %317 {offsets = [0, 64], sizes = [2, 32], strides = [1, 1]} : vector<2x96xf32> to vector<2x32xf32>
    %338 = vector.extract_strided_slice %319 {offsets = [0, 64], sizes = [2, 32], strides = [1, 1]} : vector<2x96xf32> to vector<2x32xf32>
    %339 = vector.broadcast %13 : vector<1x32xf32> to vector<2x32xf32>
    %340 = arith.addf %338, %339 : vector<2x32xf32>
    %341 = arith.mulf %328, %340 : vector<2x32xf32>
    %342 = arith.addf %337, %341 : vector<2x32xf32>
    %343 = math.tanh %342 : vector<2x32xf32>
    %cst_64 = arith.constant 1.000000e+00 : f32
    %344 = vector.broadcast %cst_64 : f32 to vector<2x32xf32>
    %345 = arith.subf %344, %336 : vector<2x32xf32>
    %346 = arith.mulf %345, %343 : vector<2x32xf32>
    %347 = arith.mulf %336, %288 : vector<2x32xf32>
    %348 = arith.addf %346, %347 : vector<2x32xf32>
    %349 = vector.extract_strided_slice %318 {offsets = [0, 0], sizes = [2, 32], strides = [1, 1]} : vector<2x96xf32> to vector<2x32xf32>
    %350 = vector.extract_strided_slice %320 {offsets = [0, 0], sizes = [2, 32], strides = [1, 1]} : vector<2x96xf32> to vector<2x32xf32>
    %351 = arith.addf %349, %350 : vector<2x32xf32>
    %352 = arith.negf %351 : vector<2x32xf32>
    %353 = math.exp %352 : vector<2x32xf32>
    %cst_65 = arith.constant 1.000000e+00 : f32
    %354 = vector.broadcast %cst_65 : f32 to vector<2x32xf32>
    %355 = arith.addf %354, %353 : vector<2x32xf32>
    %356 = arith.divf %354, %355 : vector<2x32xf32>
    %357 = vector.extract_strided_slice %318 {offsets = [0, 32], sizes = [2, 32], strides = [1, 1]} : vector<2x96xf32> to vector<2x32xf32>
    %358 = vector.extract_strided_slice %320 {offsets = [0, 32], sizes = [2, 32], strides = [1, 1]} : vector<2x96xf32> to vector<2x32xf32>
    %359 = arith.addf %357, %358 : vector<2x32xf32>
    %360 = arith.negf %359 : vector<2x32xf32>
    %361 = math.exp %360 : vector<2x32xf32>
    %cst_66 = arith.constant 1.000000e+00 : f32
    %362 = vector.broadcast %cst_66 : f32 to vector<2x32xf32>
    %363 = arith.addf %362, %361 : vector<2x32xf32>
    %364 = arith.divf %362, %363 : vector<2x32xf32>
    %365 = vector.extract_strided_slice %318 {offsets = [0, 64], sizes = [2, 32], strides = [1, 1]} : vector<2x96xf32> to vector<2x32xf32>
    %366 = vector.extract_strided_slice %320 {offsets = [0, 64], sizes = [2, 32], strides = [1, 1]} : vector<2x96xf32> to vector<2x32xf32>
    %367 = vector.broadcast %14 : vector<1x32xf32> to vector<2x32xf32>
    %368 = arith.addf %366, %367 : vector<2x32xf32>
    %369 = arith.mulf %356, %368 : vector<2x32xf32>
    %370 = arith.addf %365, %369 : vector<2x32xf32>
    %371 = math.tanh %370 : vector<2x32xf32>
    %cst_67 = arith.constant 1.000000e+00 : f32
    %372 = vector.broadcast %cst_67 : f32 to vector<2x32xf32>
    %373 = arith.subf %372, %364 : vector<2x32xf32>
    %374 = arith.mulf %373, %371 : vector<2x32xf32>
    %375 = arith.mulf %364, %316 : vector<2x32xf32>
    %376 = arith.addf %374, %375 : vector<2x32xf32>
    %377 = vector.extract_strided_slice %5 {offsets = [12, 0], sizes = [2, 96], strides = [1, 1]} : vector<16x96xf32> to vector<2x96xf32>
    %378 = vector.extract_strided_slice %10 {offsets = [2, 0], sizes = [2, 96], strides = [1, 1]} : vector<16x96xf32> to vector<2x96xf32>
    %cst_68 = arith.constant dense<0.000000e+00> : vector<2x96xf32>
    %379 = tpu.matmul %348, %11, %cst_68 {dimension_numbers = #tpu.dot_dimension_numbers<[1], [0], [0], [1], [0, 0, 1, 1], [], []>} : vector<2x32xf32>, vector<32x96xf32>, vector<2x96xf32> -> vector<2x96xf32>
    %cst_69 = arith.constant dense<0.000000e+00> : vector<2x96xf32>
    %380 = tpu.matmul %376, %12, %cst_69 {dimension_numbers = #tpu.dot_dimension_numbers<[1], [0], [0], [1], [0, 0, 1, 1], [], []>} : vector<2x32xf32>, vector<32x96xf32>, vector<2x96xf32> -> vector<2x96xf32>
    %381 = vector.extract_strided_slice %377 {offsets = [0, 0], sizes = [2, 32], strides = [1, 1]} : vector<2x96xf32> to vector<2x32xf32>
    %382 = vector.extract_strided_slice %379 {offsets = [0, 0], sizes = [2, 32], strides = [1, 1]} : vector<2x96xf32> to vector<2x32xf32>
    %383 = arith.addf %381, %382 : vector<2x32xf32>
    %384 = arith.negf %383 : vector<2x32xf32>
    %385 = math.exp %384 : vector<2x32xf32>
    %cst_70 = arith.constant 1.000000e+00 : f32
    %386 = vector.broadcast %cst_70 : f32 to vector<2x32xf32>
    %387 = arith.addf %386, %385 : vector<2x32xf32>
    %388 = arith.divf %386, %387 : vector<2x32xf32>
    %389 = vector.extract_strided_slice %377 {offsets = [0, 32], sizes = [2, 32], strides = [1, 1]} : vector<2x96xf32> to vector<2x32xf32>
    %390 = vector.extract_strided_slice %379 {offsets = [0, 32], sizes = [2, 32], strides = [1, 1]} : vector<2x96xf32> to vector<2x32xf32>
    %391 = arith.addf %389, %390 : vector<2x32xf32>
    %392 = arith.negf %391 : vector<2x32xf32>
    %393 = math.exp %392 : vector<2x32xf32>
    %cst_71 = arith.constant 1.000000e+00 : f32
    %394 = vector.broadcast %cst_71 : f32 to vector<2x32xf32>
    %395 = arith.addf %394, %393 : vector<2x32xf32>
    %396 = arith.divf %394, %395 : vector<2x32xf32>
    %397 = vector.extract_strided_slice %377 {offsets = [0, 64], sizes = [2, 32], strides = [1, 1]} : vector<2x96xf32> to vector<2x32xf32>
    %398 = vector.extract_strided_slice %379 {offsets = [0, 64], sizes = [2, 32], strides = [1, 1]} : vector<2x96xf32> to vector<2x32xf32>
    %399 = vector.broadcast %13 : vector<1x32xf32> to vector<2x32xf32>
    %400 = arith.addf %398, %399 : vector<2x32xf32>
    %401 = arith.mulf %388, %400 : vector<2x32xf32>
    %402 = arith.addf %397, %401 : vector<2x32xf32>
    %403 = math.tanh %402 : vector<2x32xf32>
    %cst_72 = arith.constant 1.000000e+00 : f32
    %404 = vector.broadcast %cst_72 : f32 to vector<2x32xf32>
    %405 = arith.subf %404, %396 : vector<2x32xf32>
    %406 = arith.mulf %405, %403 : vector<2x32xf32>
    %407 = arith.mulf %396, %348 : vector<2x32xf32>
    %408 = arith.addf %406, %407 : vector<2x32xf32>
    %409 = vector.extract_strided_slice %378 {offsets = [0, 0], sizes = [2, 32], strides = [1, 1]} : vector<2x96xf32> to vector<2x32xf32>
    %410 = vector.extract_strided_slice %380 {offsets = [0, 0], sizes = [2, 32], strides = [1, 1]} : vector<2x96xf32> to vector<2x32xf32>
    %411 = arith.addf %409, %410 : vector<2x32xf32>
    %412 = arith.negf %411 : vector<2x32xf32>
    %413 = math.exp %412 : vector<2x32xf32>
    %cst_73 = arith.constant 1.000000e+00 : f32
    %414 = vector.broadcast %cst_73 : f32 to vector<2x32xf32>
    %415 = arith.addf %414, %413 : vector<2x32xf32>
    %416 = arith.divf %414, %415 : vector<2x32xf32>
    %417 = vector.extract_strided_slice %378 {offsets = [0, 32], sizes = [2, 32], strides = [1, 1]} : vector<2x96xf32> to vector<2x32xf32>
    %418 = vector.extract_strided_slice %380 {offsets = [0, 32], sizes = [2, 32], strides = [1, 1]} : vector<2x96xf32> to vector<2x32xf32>
    %419 = arith.addf %417, %418 : vector<2x32xf32>
    %420 = arith.negf %419 : vector<2x32xf32>
    %421 = math.exp %420 : vector<2x32xf32>
    %cst_74 = arith.constant 1.000000e+00 : f32
    %422 = vector.broadcast %cst_74 : f32 to vector<2x32xf32>
    %423 = arith.addf %422, %421 : vector<2x32xf32>
    %424 = arith.divf %422, %423 : vector<2x32xf32>
    %425 = vector.extract_strided_slice %378 {offsets = [0, 64], sizes = [2, 32], strides = [1, 1]} : vector<2x96xf32> to vector<2x32xf32>
    %426 = vector.extract_strided_slice %380 {offsets = [0, 64], sizes = [2, 32], strides = [1, 1]} : vector<2x96xf32> to vector<2x32xf32>
    %427 = vector.broadcast %14 : vector<1x32xf32> to vector<2x32xf32>
    %428 = arith.addf %426, %427 : vector<2x32xf32>
    %429 = arith.mulf %416, %428 : vector<2x32xf32>
    %430 = arith.addf %425, %429 : vector<2x32xf32>
    %431 = math.tanh %430 : vector<2x32xf32>
    %cst_75 = arith.constant 1.000000e+00 : f32
    %432 = vector.broadcast %cst_75 : f32 to vector<2x32xf32>
    %433 = arith.subf %432, %424 : vector<2x32xf32>
    %434 = arith.mulf %433, %431 : vector<2x32xf32>
    %435 = arith.mulf %424, %376 : vector<2x32xf32>
    %436 = arith.addf %434, %435 : vector<2x32xf32>
    %437 = vector.extract_strided_slice %5 {offsets = [14, 0], sizes = [2, 96], strides = [1, 1]} : vector<16x96xf32> to vector<2x96xf32>
    %438 = vector.extract_strided_slice %10 {offsets = [0, 0], sizes = [2, 96], strides = [1, 1]} : vector<16x96xf32> to vector<2x96xf32>
    %cst_76 = arith.constant dense<0.000000e+00> : vector<2x96xf32>
    %439 = tpu.matmul %408, %11, %cst_76 {dimension_numbers = #tpu.dot_dimension_numbers<[1], [0], [0], [1], [0, 0, 1, 1], [], []>} : vector<2x32xf32>, vector<32x96xf32>, vector<2x96xf32> -> vector<2x96xf32>
    %cst_77 = arith.constant dense<0.000000e+00> : vector<2x96xf32>
    %440 = tpu.matmul %436, %12, %cst_77 {dimension_numbers = #tpu.dot_dimension_numbers<[1], [0], [0], [1], [0, 0, 1, 1], [], []>} : vector<2x32xf32>, vector<32x96xf32>, vector<2x96xf32> -> vector<2x96xf32>
    %441 = vector.extract_strided_slice %437 {offsets = [0, 0], sizes = [2, 32], strides = [1, 1]} : vector<2x96xf32> to vector<2x32xf32>
    %442 = vector.extract_strided_slice %439 {offsets = [0, 0], sizes = [2, 32], strides = [1, 1]} : vector<2x96xf32> to vector<2x32xf32>
    %443 = arith.addf %441, %442 : vector<2x32xf32>
    %444 = arith.negf %443 : vector<2x32xf32>
    %445 = math.exp %444 : vector<2x32xf32>
    %cst_78 = arith.constant 1.000000e+00 : f32
    %446 = vector.broadcast %cst_78 : f32 to vector<2x32xf32>
    %447 = arith.addf %446, %445 : vector<2x32xf32>
    %448 = arith.divf %446, %447 : vector<2x32xf32>
    %449 = vector.extract_strided_slice %437 {offsets = [0, 32], sizes = [2, 32], strides = [1, 1]} : vector<2x96xf32> to vector<2x32xf32>
    %450 = vector.extract_strided_slice %439 {offsets = [0, 32], sizes = [2, 32], strides = [1, 1]} : vector<2x96xf32> to vector<2x32xf32>
    %451 = arith.addf %449, %450 : vector<2x32xf32>
    %452 = arith.negf %451 : vector<2x32xf32>
    %453 = math.exp %452 : vector<2x32xf32>
    %cst_79 = arith.constant 1.000000e+00 : f32
    %454 = vector.broadcast %cst_79 : f32 to vector<2x32xf32>
    %455 = arith.addf %454, %453 : vector<2x32xf32>
    %456 = arith.divf %454, %455 : vector<2x32xf32>
    %457 = vector.extract_strided_slice %437 {offsets = [0, 64], sizes = [2, 32], strides = [1, 1]} : vector<2x96xf32> to vector<2x32xf32>
    %458 = vector.extract_strided_slice %439 {offsets = [0, 64], sizes = [2, 32], strides = [1, 1]} : vector<2x96xf32> to vector<2x32xf32>
    %459 = vector.broadcast %13 : vector<1x32xf32> to vector<2x32xf32>
    %460 = arith.addf %458, %459 : vector<2x32xf32>
    %461 = arith.mulf %448, %460 : vector<2x32xf32>
    %462 = arith.addf %457, %461 : vector<2x32xf32>
    %463 = math.tanh %462 : vector<2x32xf32>
    %cst_80 = arith.constant 1.000000e+00 : f32
    %464 = vector.broadcast %cst_80 : f32 to vector<2x32xf32>
    %465 = arith.subf %464, %456 : vector<2x32xf32>
    %466 = arith.mulf %465, %463 : vector<2x32xf32>
    %467 = arith.mulf %456, %408 : vector<2x32xf32>
    %468 = arith.addf %466, %467 : vector<2x32xf32>
    %469 = vector.extract_strided_slice %438 {offsets = [0, 0], sizes = [2, 32], strides = [1, 1]} : vector<2x96xf32> to vector<2x32xf32>
    %470 = vector.extract_strided_slice %440 {offsets = [0, 0], sizes = [2, 32], strides = [1, 1]} : vector<2x96xf32> to vector<2x32xf32>
    %471 = arith.addf %469, %470 : vector<2x32xf32>
    %472 = arith.negf %471 : vector<2x32xf32>
    %473 = math.exp %472 : vector<2x32xf32>
    %cst_81 = arith.constant 1.000000e+00 : f32
    %474 = vector.broadcast %cst_81 : f32 to vector<2x32xf32>
    %475 = arith.addf %474, %473 : vector<2x32xf32>
    %476 = arith.divf %474, %475 : vector<2x32xf32>
    %477 = vector.extract_strided_slice %438 {offsets = [0, 32], sizes = [2, 32], strides = [1, 1]} : vector<2x96xf32> to vector<2x32xf32>
    %478 = vector.extract_strided_slice %440 {offsets = [0, 32], sizes = [2, 32], strides = [1, 1]} : vector<2x96xf32> to vector<2x32xf32>
    %479 = arith.addf %477, %478 : vector<2x32xf32>
    %480 = arith.negf %479 : vector<2x32xf32>
    %481 = math.exp %480 : vector<2x32xf32>
    %cst_82 = arith.constant 1.000000e+00 : f32
    %482 = vector.broadcast %cst_82 : f32 to vector<2x32xf32>
    %483 = arith.addf %482, %481 : vector<2x32xf32>
    %484 = arith.divf %482, %483 : vector<2x32xf32>
    %485 = vector.extract_strided_slice %438 {offsets = [0, 64], sizes = [2, 32], strides = [1, 1]} : vector<2x96xf32> to vector<2x32xf32>
    %486 = vector.extract_strided_slice %440 {offsets = [0, 64], sizes = [2, 32], strides = [1, 1]} : vector<2x96xf32> to vector<2x32xf32>
    %487 = vector.broadcast %14 : vector<1x32xf32> to vector<2x32xf32>
    %488 = arith.addf %486, %487 : vector<2x32xf32>
    %489 = arith.mulf %476, %488 : vector<2x32xf32>
    %490 = arith.addf %485, %489 : vector<2x32xf32>
    %491 = math.tanh %490 : vector<2x32xf32>
    %cst_83 = arith.constant 1.000000e+00 : f32
    %492 = vector.broadcast %cst_83 : f32 to vector<2x32xf32>
    %493 = arith.subf %492, %484 : vector<2x32xf32>
    %494 = arith.mulf %493, %491 : vector<2x32xf32>
    %495 = arith.mulf %484, %436 : vector<2x32xf32>
    %496 = arith.addf %494, %495 : vector<2x32xf32>
    %c0_84 = arith.constant 0 : index
    %c0_85 = arith.constant 0 : index
    %c0_86 = arith.constant 0 : index
    %497 = vector.load %arg17[%c0_84, %c0_85, %c0_86] : memref<2x2x32xf32, #tpu.memory_space<vmem>>, vector<1x2x32xf32>
    %498 = vector.shape_cast %497 : vector<1x2x32xf32> to vector<2x32xf32>
    %499 = vector.shape_cast %468 : vector<2x32xf32> to vector<1x2x32xf32>
    tpu.vector_store %arg17[%c0_84, %c0_85, %c0_86], %499 {strides = array<i32>} : memref<2x2x32xf32, #tpu.memory_space<vmem>>, vector<1x2x32xf32>,
    %c1 = arith.constant 1 : index
    %c0_87 = arith.constant 0 : index
    %c0_88 = arith.constant 0 : index
    %500 = vector.load %arg17[%c1, %c0_87, %c0_88] : memref<2x2x32xf32, #tpu.memory_space<vmem>>, vector<1x2x32xf32>
    %501 = vector.shape_cast %500 : vector<1x2x32xf32> to vector<2x32xf32>
    %502 = vector.shape_cast %496 : vector<2x32xf32> to vector<1x2x32xf32>
    tpu.vector_store %arg17[%c1, %c0_87, %c0_88], %502 {strides = array<i32>} : memref<2x2x32xf32, #tpu.memory_space<vmem>>, vector<1x2x32xf32>,
    %503 = tpu.concatenate %48, %108, %168, %228, %288, %348, %408, %468 in 0 : vector<2x32xf32>, vector<2x32xf32>, vector<2x32xf32>, vector<2x32xf32>, vector<2x32xf32>, vector<2x32xf32>, vector<2x32xf32>, vector<2x32xf32> -> vector<16x32xf32>
    %504 = tpu.concatenate %496, %436, %376, %316, %256, %196, %136, %76 in 0 : vector<2x32xf32>, vector<2x32xf32>, vector<2x32xf32>, vector<2x32xf32>, vector<2x32xf32>, vector<2x32xf32>, vector<2x32xf32>, vector<2x32xf32> -> vector<16x32xf32>
    %cst_89 = arith.constant dense<0.000000e+00> : vector<16xf32>
    %505 = vector.multi_reduction <add>, %503, %cst_89 [1] : vector<16x32xf32> to vector<16xf32>
    %506 = vector.shape_cast %505 : vector<16xf32> to vector<16x1xf32>
    %cst_90 = arith.constant dense<0.000000e+00> : vector<16xf32>
    %507 = vector.multi_reduction <add>, %504, %cst_90 [1] : vector<16x32xf32> to vector<16xf32>
    %508 = vector.shape_cast %507 : vector<16xf32> to vector<16x1xf32>
    %509 = arith.addf %506, %508 : vector<16x1xf32>
    %cst_91 = arith.constant 1.562500e-02 : f32
    %510 = vector.broadcast %cst_91 : f32 to vector<16x1xf32>
    %511 = arith.mulf %509, %510 : vector<16x1xf32>
    %512 = vector.broadcast %511 : vector<16x1xf32> to vector<16x32xf32>
    %513 = arith.subf %503, %512 : vector<16x32xf32>
    %514 = vector.broadcast %511 : vector<16x1xf32> to vector<16x32xf32>
    %515 = arith.subf %504, %514 : vector<16x32xf32>
    %516 = arith.mulf %513, %513 : vector<16x32xf32>
    %cst_92 = arith.constant dense<0.000000e+00> : vector<16xf32>
    %517 = vector.multi_reduction <add>, %516, %cst_92 [1] : vector<16x32xf32> to vector<16xf32>
    %518 = vector.shape_cast %517 : vector<16xf32> to vector<16x1xf32>
    %519 = arith.mulf %515, %515 : vector<16x32xf32>
    %cst_93 = arith.constant dense<0.000000e+00> : vector<16xf32>
    %520 = vector.multi_reduction <add>, %519, %cst_93 [1] : vector<16x32xf32> to vector<16xf32>
    %521 = vector.shape_cast %520 : vector<16xf32> to vector<16x1xf32>
    %522 = arith.addf %518, %521 : vector<16x1xf32>
    %cst_94 = arith.constant 1.562500e-02 : f32
    %523 = vector.broadcast %cst_94 : f32 to vector<16x1xf32>
    %524 = arith.mulf %522, %523 : vector<16x1xf32>
    %cst_95 = arith.constant 9.99999974E-6 : f32
    %525 = vector.broadcast %cst_95 : f32 to vector<16x1xf32>
    %526 = arith.addf %524, %525 : vector<16x1xf32>
    %527 = math.rsqrt %526 : vector<16x1xf32>
    %528 = vector.broadcast %527 : vector<16x1xf32> to vector<16x32xf32>
    %529 = arith.mulf %513, %528 : vector<16x32xf32>
    %c0_96 = arith.constant 0 : index
    %c0_97 = arith.constant 0 : index
    %530 = vector.load %arg9[%c0_96, %c0_97] : memref<1x32xf32, #tpu.memory_space<vmem>>, vector<1x32xf32>
    %531 = vector.broadcast %530 : vector<1x32xf32> to vector<16x32xf32>
    %532 = arith.mulf %529, %531 : vector<16x32xf32>
    %c0_98 = arith.constant 0 : index
    %c0_99 = arith.constant 0 : index
    %533 = vector.load %arg11[%c0_98, %c0_99] : memref<1x32xf32, #tpu.memory_space<vmem>>, vector<1x32xf32>
    %534 = vector.broadcast %533 : vector<1x32xf32> to vector<16x32xf32>
    %535 = arith.addf %532, %534 : vector<16x32xf32>
    %536 = vector.broadcast %527 : vector<16x1xf32> to vector<16x32xf32>
    %537 = arith.mulf %515, %536 : vector<16x32xf32>
    %c0_100 = arith.constant 0 : index
    %c0_101 = arith.constant 0 : index
    %538 = vector.load %arg10[%c0_100, %c0_101] : memref<1x32xf32, #tpu.memory_space<vmem>>, vector<1x32xf32>
    %539 = vector.broadcast %538 : vector<1x32xf32> to vector<16x32xf32>
    %540 = arith.mulf %537, %539 : vector<16x32xf32>
    %c0_102 = arith.constant 0 : index
    %c0_103 = arith.constant 0 : index
    %541 = vector.load %arg12[%c0_102, %c0_103] : memref<1x32xf32, #tpu.memory_space<vmem>>, vector<1x32xf32>
    %542 = vector.broadcast %541 : vector<1x32xf32> to vector<16x32xf32>
    %543 = arith.addf %540, %542 : vector<16x32xf32>
    %544 = arith.truncf %535 : vector<16x32xf32> to vector<16x32xbf16>
    %c0_104 = arith.constant 0 : index
    %c0_105 = arith.constant 0 : index
    %545 = vector.load %arg13[%c0_104, %c0_105] : memref<32x32xbf16, #tpu.memory_space<vmem>>, vector<32x32xbf16>
    %cst_106 = arith.constant dense<0.000000e+00> : vector<16x32xf32>
    %546 = tpu.matmul %544, %545, %cst_106 {dimension_numbers = #tpu.dot_dimension_numbers<[1], [0], [0], [1], [0, 0, 1, 1], [], []>} : vector<16x32xbf16>, vector<32x32xbf16>, vector<16x32xf32> -> vector<16x32xf32>
    %547 = arith.truncf %543 : vector<16x32xf32> to vector<16x32xbf16>
    %c0_107 = arith.constant 0 : index
    %c0_108 = arith.constant 0 : index
    %548 = vector.load %arg14[%c0_107, %c0_108] : memref<32x32xbf16, #tpu.memory_space<vmem>>, vector<32x32xbf16>
    %cst_109 = arith.constant dense<0.000000e+00> : vector<16x32xf32>
    %549 = tpu.matmul %547, %548, %cst_109 {dimension_numbers = #tpu.dot_dimension_numbers<[1], [0], [0], [1], [0, 0, 1, 1], [], []>} : vector<16x32xbf16>, vector<32x32xbf16>, vector<16x32xf32> -> vector<16x32xf32>
    %550 = arith.addf %546, %549 : vector<16x32xf32>
    %c0_110 = arith.constant 0 : index
    %c0_111 = arith.constant 0 : index
    %551 = vector.load %arg15[%c0_110, %c0_111] : memref<1x32xf32, #tpu.memory_space<vmem>>, vector<1x32xf32>
    %552 = vector.broadcast %551 : vector<1x32xf32> to vector<16x32xf32>
    %553 = arith.addf %550, %552 : vector<16x32xf32>
    %c0_112 = arith.constant 0 : index
    %c0_113 = arith.constant 0 : index
    %554 = vector.load %arg16[%c0_112, %c0_113] : memref<16x32xf32, #tpu.memory_space<vmem>>, vector<16x32xf32>
    tpu.vector_store %arg16[%c0_112, %c0_113], %553 {strides = array<i32>} : memref<16x32xf32, #tpu.memory_space<vmem>>, vector<16x32xf32>,
    return
  }
}

</mosaic_0001>

<llo_original>
// kernel: tpu_custom_call.1
$region0: #{tpu_custom_call.1}
  #allocation0 [shape = 'u32[]', space=smem, size = 0x4, offset = 0x4, fixed_abs, tag = 'smem constant byte address 0x4 - core index']
  #allocation1 [shape = 'u32[144,128]{1,0:T(1,128)}', space=vmem, size = 0x12000, scoped, tag = 'internal scratch']
  %s0 = inlined_call_operand.hbm [shape: bf16[16,16], index: 0, kind: input, shape index: {}]
  %s1 = inlined_call_operand.hbm [shape: bf16[16,96], index: 1, kind: input, shape index: {}]
  %s2 = inlined_call_operand.hbm [shape: bf16[16,96], index: 2, kind: input, shape index: {}]
  %s3 = inlined_call_operand.vmem [shape: f32[1,96], index: 3, kind: input, shape index: {}]
  %s4 = inlined_call_operand.vmem [shape: f32[1,96], index: 4, kind: input, shape index: {}]
  %s5 = inlined_call_operand.hbm [shape: f32[32,96], index: 5, kind: input, shape index: {}]
  %s6 = inlined_call_operand.hbm [shape: f32[32,96], index: 6, kind: input, shape index: {}]
  %s7 = inlined_call_operand.vmem [shape: f32[1,32], index: 7, kind: input, shape index: {}]
  %s8 = inlined_call_operand.vmem [shape: f32[1,32], index: 8, kind: input, shape index: {}]
  %s9 = inlined_call_operand.vmem [shape: f32[1,32], index: 9, kind: input, shape index: {}]
  %s10 = inlined_call_operand.vmem [shape: f32[1,32], index: 10, kind: input, shape index: {}]
  %s11 = inlined_call_operand.vmem [shape: f32[1,32], index: 11, kind: input, shape index: {}]
  %s12 = inlined_call_operand.hbm [shape: f32[1,32], index: 12, kind: input, shape index: {}]
  %s13 = inlined_call_operand.vmem [shape: bf16[32,32], index: 13, kind: input, shape index: {}]
  %s14 = inlined_call_operand.hbm [shape: bf16[32,32], index: 14, kind: input, shape index: {}]
  %s15 = inlined_call_operand.vmem [shape: f32[1,32], index: 15, kind: input, shape index: {}]
  %s16 = inlined_call_operand.hbm [shape: f32[16,32], index: 16, kind: output, shape index: {0}]
  %s17 = inlined_call_operand.hbm [shape: f32[2,2,32], index: 17, kind: output, shape index: {1}]
  %18 = xla_tuple %s16, %s17
  %s19 = sld [smem:[#allocation0]]
  $region110: #{tpu_custom_call.1} parent=0
    _
  %s21 = ssub.s32 1, %s19
  %s22 = scalar_select 0, %s21, %s19
  $region1: #{tpu_custom_call.1} parent=0
    #allocation2 [shape = 'u8[4096]{0}', space=vmem, size = 0x1000, scoped, tag = 'input window, operand 0, single buffered']
    #allocation3 [shape = 's32[1]{0}', space=sflag, size = 0x4, scoped, tag = 'scoped memory for tpu_custom_call.1']
    #allocation4 [shape = 's32[1]{0}', space=sflag, size = 0x4, scoped, tag = 'scoped memory for tpu_custom_call.1']
    #allocation5 [shape = 'u8[4096]{0}', space=vmem, size = 0x1000, scoped, tag = 'input window, operand 1, single buffered']
    #allocation6 [shape = 's32[1]{0}', space=sflag, size = 0x4, scoped, tag = 'scoped memory for tpu_custom_call.1']
    #allocation7 [shape = 'u8[4096]{0}', space=vmem, size = 0x1000, scoped, tag = 'input window, operand 2, single buffered']
    #allocation8 [shape = 'u8[16384]{0}', space=vmem, size = 0x4000, scoped, tag = 'input window, operand 5, single buffered']
    #allocation9 [shape = 's32[1]{0}', space=sflag, size = 0x4, scoped, tag = 'scoped memory for tpu_custom_call.1']
    #allocation10 [shape = 'u8[16384]{0}', space=vmem, size = 0x4000, scoped, tag = 'input window, operand 6, single buffered']
    #allocation11 [shape = 'u8[512]{0}', space=vmem, size = 0x400, scoped, tag = 'input window, operand 12, single buffered']
    #allocation12 [shape = 's32[1]{0}', space=sflag, size = 0x4, scoped, tag = 'scoped memory for tpu_custom_call.1']
    #allocation13 [shape = 'u8[8192]{0}', space=vmem, size = 0x2000, scoped, tag = 'input window, operand 14, single buffered']
    #allocation14 [shape = 'u8[8192]{0}', space=vmem, size = 0x2000, scoped, tag = 'output window, operand 0, single buffered']
    #allocation15 [shape = 'u8[2048]{0}', space=vmem, size = 0x800, scoped, tag = 'output window, operand 1, single buffered']
    #allocation16 [shape = 's32[1]{0}', space=sflag, size = 0x4, scoped, tag = 'scoped memory for tpu_custom_call.1']
    %23 = vsyncpa [#allocation3], 0
    %24 = vsyncpa [#allocation6], 0
    %25 = vsyncpa [#allocation9], 0
    %26 = vsyncpa [#allocation12], 0
    %27 = vsyncpa [#allocation4], 0
    %28 = vsyncpa [#allocation16], 0
    // Predicated region
    $region2: #{tpu_custom_call.1} parent=1 // pred_check
      _
    $region3: #{tpu_custom_call.1} parent=1 // pred_check_branch
      %30 = sbr.rel (0) target = $region5
    $region4: #{tpu_custom_call.1} parent=1 // pred_region
      %s32 = ssub.s32 128, 128
      %33 = vsyncadd [#allocation3], %s32
      %s34 = sshll.u32 [#allocation2], 4
      %s35 = int_to_ptr.vmem [resolvable:$true] %s34
      %40 = dma.hbm_to_vmem [thread:$0]  %s0, 128, %s35, [#allocation3], 64, 64, 4
    $region5: #{tpu_custom_call.1} parent=1 // pred_fallthru
      _
    // Predicated region
    $region6: #{tpu_custom_call.1} parent=1 // pred_check
      _
    $region7: #{tpu_custom_call.1} parent=1 // pred_check_branch
      %42 = sbr.rel (0) target = $region9
    $region8: #{tpu_custom_call.1} parent=1 // pred_region
      %s44 = ssub.s32 128, 128
      %45 = vsyncadd [#allocation6], %s44
      %s46 = sshll.u32 [#allocation5], 4
      %s47 = int_to_ptr.vmem [resolvable:$true] %s46
      %52 = dma.hbm_to_vmem [thread:$0]  %s1, 128, %s47, [#allocation6], 64, 64, 4
    $region9: #{tpu_custom_call.1} parent=1 // pred_fallthru
      _
    // Predicated region
    $region10: #{tpu_custom_call.1} parent=1 // pred_check
      _
    $region11: #{tpu_custom_call.1} parent=1 // pred_check_branch
      %54 = sbr.rel (0) target = $region13
    $region12: #{tpu_custom_call.1} parent=1 // pred_region
      %s56 = ssub.s32 128, 128
      %57 = vsyncadd [#allocation6], %s56
      %s58 = sshll.u32 [#allocation7], 4
      %s59 = int_to_ptr.vmem [resolvable:$true] %s58
      %64 = dma.hbm_to_vmem [thread:$0]  %s2, 128, %s59, [#allocation6], 64, 64, 4
    $region13: #{tpu_custom_call.1} parent=1 // pred_fallthru
      _
    // Predicated region
    $region14: #{tpu_custom_call.1} parent=1 // pred_check
      _
    $region15: #{tpu_custom_call.1} parent=1 // pred_check_branch
      %66 = sbr.rel (0) target = $region17
    $region16: #{tpu_custom_call.1} parent=1 // pred_region
      _
    $region17: #{tpu_custom_call.1} parent=1 // pred_fallthru
      _
    // Predicated region
    $region18: #{tpu_custom_call.1} parent=1 // pred_check
      _
    $region19: #{tpu_custom_call.1} parent=1 // pred_check_branch
      %68 = sbr.rel (0) target = $region21
    $region20: #{tpu_custom_call.1} parent=1 // pred_region
      _
    $region21: #{tpu_custom_call.1} parent=1 // pred_fallthru
      _
    // Predicated region
    $region22: #{tpu_custom_call.1} parent=1 // pred_check
      _
    $region23: #{tpu_custom_call.1} parent=1 // pred_check_branch
      %70 = sbr.rel (0) target = $region25
    $region24: #{tpu_custom_call.1} parent=1 // pred_region
      %s72 = ssub.s32 512, 512
      %73 = vsyncadd [#allocation9], %s72
      %s74 = sshll.u32 [#allocation8], 4
      %s75 = int_to_ptr.vmem [resolvable:$true] %s74
      %80 = dma.hbm_to_vmem [thread:$0]  %s5, 512, %s75, [#allocation9], 128, 128, 8
    $region25: #{tpu_custom_call.1} parent=1 // pred_fallthru
      _
    // Predicated region
    $region26: #{tpu_custom_call.1} parent=1 // pred_check
      _
    $region27: #{tpu_custom_call.1} parent=1 // pred_check_branch
      %82 = sbr.rel (0) target = $region29
    $region28: #{tpu_custom_call.1} parent=1 // pred_region
      %s84 = ssub.s32 512, 512
      %85 = vsyncadd [#allocation9], %s84
      %s86 = sshll.u32 [#allocation10], 4
      %s87 = int_to_ptr.vmem [resolvable:$true] %s86
      %92 = dma.hbm_to_vmem [thread:$0]  %s6, 512, %s87, [#allocation9], 128, 128, 8
    $region29: #{tpu_custom_call.1} parent=1 // pred_fallthru
      _
    // Predicated region
    $region30: #{tpu_custom_call.1} parent=1 // pred_check
      _
    $region31: #{tpu_custom_call.1} parent=1 // pred_check_branch
      %94 = sbr.rel (0) target = $region33
    $region32: #{tpu_custom_call.1} parent=1 // pred_region
      _
    $region33: #{tpu_custom_call.1} parent=1 // pred_fallthru
      _
    // Predicated region
    $region34: #{tpu_custom_call.1} parent=1 // pred_check
      _
    $region35: #{tpu_custom_call.1} parent=1 // pred_check_branch
      %96 = sbr.rel (0) target = $region37
    $region36: #{tpu_custom_call.1} parent=1 // pred_region
      _
    $region37: #{tpu_custom_call.1} parent=1 // pred_fallthru
      _
    // Predicated region
    $region38: #{tpu_custom_call.1} parent=1 // pred_check
      _
    $region39: #{tpu_custom_call.1} parent=1 // pred_check_branch
      %98 = sbr.rel (0) target = $region41
    $region40: #{tpu_custom_call.1} parent=1 // pred_region
      _
    $region41: #{tpu_custom_call.1} parent=1 // pred_fallthru
      _
    // Predicated region
    $region42: #{tpu_custom_call.1} parent=1 // pred_check
      _
    $region43: #{tpu_custom_call.1} parent=1 // pred_check_branch
      %100 = sbr.rel (0) target = $region45
    $region44: #{tpu_custom_call.1} parent=1 // pred_region
      _
    $region45: #{tpu_custom_call.1} parent=1 // pred_fallthru
      _
    // Predicated region
    $region46: #{tpu_custom_call.1} parent=1 // pred_check
      _
    $region47: #{tpu_custom_call.1} parent=1 // pred_check_branch
      %102 = sbr.rel (0) target = $region49
    $region48: #{tpu_custom_call.1} parent=1 // pred_region
      _
    $region49: #{tpu_custom_call.1} parent=1 // pred_fallthru
      _
    // Predicated region
    $region50: #{tpu_custom_call.1} parent=1 // pred_check
      _
    $region51: #{tpu_custom_call.1} parent=1 // pred_check_branch
      %104 = sbr.rel (0) target = $region53
    $region52: #{tpu_custom_call.1} parent=1 // pred_region
      %s106 = ssub.s32 16, 16
      %107 = vsyncadd [#allocation12], %s106
      %s109 = sshll.u32 [#allocation11], 4
      %s110 = int_to_ptr.vmem [resolvable:$true] %s109
      %112 = dma.hbm_to_vmem [thread:$0]  %s12, 16, %s110, [#allocation12]
    $region53: #{tpu_custom_call.1} parent=1 // pred_fallthru
      _
    // Predicated region
    $region54: #{tpu_custom_call.1} parent=1 // pred_check
      _
    $region55: #{tpu_custom_call.1} parent=1 // pred_check_branch
      %114 = sbr.rel (0) target = $region57
    $region56: #{tpu_custom_call.1} parent=1 // pred_region
      _
    $region57: #{tpu_custom_call.1} parent=1 // pred_fallthru
      _
    // Predicated region
    $region58: #{tpu_custom_call.1} parent=1 // pred_check
      _
    $region59: #{tpu_custom_call.1} parent=1 // pred_check_branch
      %116 = sbr.rel (0) target = $region61
    $region60: #{tpu_custom_call.1} parent=1 // pred_region
      %s118 = ssub.s32 256, 256
      %119 = vsyncadd [#allocation12], %s118
      %s120 = sshll.u32 [#allocation13], 4
      %s121 = int_to_ptr.vmem [resolvable:$true] %s120
      %126 = dma.hbm_to_vmem [thread:$0]  %s14, 256, %s121, [#allocation12], 64, 64, 4
    $region61: #{tpu_custom_call.1} parent=1 // pred_fallthru
      _
    // Predicated region
    $region62: #{tpu_custom_call.1} parent=1 // pred_check
      _
    $region63: #{tpu_custom_call.1} parent=1 // pred_check_branch
      %128 = sbr.rel (0) target = $region65
    $region64: #{tpu_custom_call.1} parent=1 // pred_region
      _
    $region65: #{tpu_custom_call.1} parent=1 // pred_fallthru
      _
    // Predicated region
    $region66: #{tpu_custom_call.1} parent=1 // pred_check
      _
    $region67: #{tpu_custom_call.1} parent=1 // pred_check_branch
      %130 = sbr.rel (0) target = $region69
    $region68: #{tpu_custom_call.1} parent=1 // pred_region
      %131 = dma.done [#allocation3], 128
    $region69: #{tpu_custom_call.1} parent=1 // pred_fallthru
      _
    // Predicated region
    $region70: #{tpu_custom_call.1} parent=1 // pred_check
      _
    $region71: #{tpu_custom_call.1} parent=1 // pred_check_branch
      %133 = sbr.rel (0) target = $region73
    $region72: #{tpu_custom_call.1} parent=1 // pred_region
      %134 = dma.done [#allocation6], 128
    $region73: #{tpu_custom_call.1} parent=1 // pred_fallthru
      _
    // Predicated region
    $region74: #{tpu_custom_call.1} parent=1 // pred_check
      _
    $region75: #{tpu_custom_call.1} parent=1 // pred_check_branch
      %136 = sbr.rel (0) target = $region77
    $region76: #{tpu_custom_call.1} parent=1 // pred_region
      %137 = dma.done [#allocation6], 128
    $region77: #{tpu_custom_call.1} parent=1 // pred_fallthru
      _
    // Predicated region
    $region78: #{tpu_custom_call.1} parent=1 // pred_check
      _
    $region79: #{tpu_custom_call.1} parent=1 // pred_check_branch
      %139 = sbr.rel (0) target = $region81
    $region80: #{tpu_custom_call.1} parent=1 // pred_region
      %140 = dma.done [#allocation9], 512
    $region81: #{tpu_custom_call.1} parent=1 // pred_fallthru
      _
    // Predicated region
    $region82: #{tpu_custom_call.1} parent=1 // pred_check
      _
    $region83: #{tpu_custom_call.1} parent=1 // pred_check_branch
      %142 = sbr.rel (0) target = $region85
    $region84: #{tpu_custom_call.1} parent=1 // pred_region
      %143 = dma.done [#allocation9], 512
    $region85: #{tpu_custom_call.1} parent=1 // pred_fallthru
      _
    // Predicated region
    $region86: #{tpu_custom_call.1} parent=1 // pred_check
      _
    $region87: #{tpu_custom_call.1} parent=1 // pred_check_branch
      %145 = sbr.rel (0) target = $region89
    $region88: #{tpu_custom_call.1} parent=1 // pred_region
      %146 = dma.done [#allocation12], 16
    $region89: #{tpu_custom_call.1} parent=1 // pred_fallthru
      _
    // Predicated region
    $region90: #{tpu_custom_call.1} parent=1 // pred_check
      _
    $region91: #{tpu_custom_call.1} parent=1 // pred_check_branch
      %148 = sbr.rel (0) target = $region93
    $region92: #{tpu_custom_call.1} parent=1 // pred_region
      %149 = dma.done [#allocation12], 256
    $region93: #{tpu_custom_call.1} parent=1 // pred_fallthru
      _
    %v151 = vld [vmem:[#allocation2] sm:$0xf]
    %v152 = vld [vmem:[#allocation2 + $0x4] sm:$0xf]
    %v153 = vld [vmem:[#allocation5] sm:$0xf]
    %v154 = vld [vmem:[#allocation5 + $0x4] sm:$0xf]
    %v155 = vld [vmem:[%s3] sm:$0x1]
    %v157 = vlaneseq
    %v158 = vshrl.u32 %v157, 7
    %v159 = vsub.s32 0, %v158
    %v160 = vrot.slane %v155, %v159
    %v164 = vunpack.c.l.b16 %v151
    %v165 = vunpack.c.l.b16 %v152
    %v166 = vpack.c.b16 %v165, %v164
    %v169 = vunpack.c.l.b16 %v153
    %v170 = vunpack.c.l.b16 %v154
    %v171 = vpack.c.b16 %v170, %v169
    %vm173 = vcmask 130048
    %v175 = vsel %vm173, %v166, 0
    %177 = vmatprep.subr.bf16.mxu0 0
    %178 = vmatpush1.bf16.msra.mxu0 0
    %179 = vmatprep.subr.bf16.mxu0 0
    %180 = vmatpush1.bf16.msra.mxu0 0
    %181 = vmatprep.subr.bf16.mxu0 0
    %182 = vmatpush1.bf16.msra.mxu0 0
    %183 = vmatprep.subr.bf16.mxu0 0
    %184 = vmatpush1.bf16.msra.mxu0 0
    %185 = vmatprep.subr.bf16.mxu0 0
    %186 = vmatpush1.bf16.msra.mxu0 0
    %187 = vmatprep.subr.bf16.mxu0 0
    %188 = vmatpush1.bf16.msra.mxu0 0
    %189 = vmatprep.subr.bf16.mxu0 0
    %190 = vmatpush1.bf16.msra.mxu0 0
    %191 = vmatprep.subr.bf16.mxu0 0
    %192 = vmatpush1.bf16.msra.mxu0 %v171
    %193 = vmatprep.subr.bf16.mxu0 0
    %194 = vmatpush2.bf16.msra.mxu0 0
    %195 = vmatprep.subr.bf16.mxu0 0
    %196 = vmatpush2.bf16.msra.mxu0 0
    %197 = vmatprep.subr.bf16.mxu0 0
    %198 = vmatpush2.bf16.msra.mxu0 0
    %199 = vmatprep.subr.bf16.mxu0 0
    %200 = vmatpush2.bf16.msra.mxu0 0
    %201 = vmatprep.subr.bf16.mxu0 0
    %202 = vmatpush2.bf16.msra.mxu0 0
    %203 = vmatprep.subr.bf16.mxu0 0
    %204 = vmatpush2.bf16.msra.mxu0 0
    %205 = vmatprep.subr.bf16.mxu0 0
    %206 = vmatpush2.bf16.msra.mxu0 0
    %207 = vmatprep.subr.bf16.mxu0 0
    %208 = vmatpush2.bf16.msra.mxu0 0
    %209 = vmatprep.mubr.bf16.mxu0 0
    %210 = vmatmul.mubr.bf16.gmra.mxu0 %v175
    %v211 = vpop.f32.mrf.mxu0
    %v212 = vadd.f32 %v160, %v211
    %v213 = vpop.f32.mrf.mxu0
    %v214 = vpop.f32.mrf.mxu0
    %v215 = vadd.f32 %v160, %v214
    %v216 = vpop.f32.mrf.mxu0
    %217 = vdwg.mxu0
    %v218 = vld [vmem:[#allocation7] sm:$0xf]
    %v219 = vld [vmem:[#allocation7 + $0x4] sm:$0xf]
    %v220 = vld [vmem:[%s4] sm:$0x1]
    %v222 = vlaneseq
    %v223 = vshrl.u32 %v222, 7
    %v224 = vsub.s32 0, %v223
    %v225 = vrot.slane %v220, %v224
    %v229 = vunpack.c.l.b16 %v218
    %v230 = vunpack.c.l.b16 %v219
    %v231 = vpack.c.b16 %v230, %v229
    %233 = vmatprep.subr.bf16.mxu0 0
    %234 = vmatpush1.bf16.msra.mxu0 0
    %235 = vmatprep.subr.bf16.mxu0 0
    %236 = vmatpush1.bf16.msra.mxu0 0
    %237 = vmatprep.subr.bf16.mxu0 0
    %238 = vmatpush1.bf16.msra.mxu0 0
    %239 = vmatprep.subr.bf16.mxu0 0
    %240 = vmatpush1.bf16.msra.mxu0 0
    %241 = vmatprep.subr.bf16.mxu0 0
    %242 = vmatpush1.bf16.msra.mxu0 0
    %243 = vmatprep.subr.bf16.mxu0 0
    %244 = vmatpush1.bf16.msra.mxu0 0
    %245 = vmatprep.subr.bf16.mxu0 0
    %246 = vmatpush1.bf16.msra.mxu0 0
    %247 = vmatprep.subr.bf16.mxu0 0
    %248 = vmatpush1.bf16.msra.mxu0 %v231
    %249 = vmatprep.subr.bf16.mxu0 0
    %250 = vmatpush2.bf16.msra.mxu0 0
    %251 = vmatprep.subr.bf16.mxu0 0
    %252 = vmatpush2.bf16.msra.mxu0 0
    %253 = vmatprep.subr.bf16.mxu0 0
    %254 = vmatpush2.bf16.msra.mxu0 0
    %255 = vmatprep.subr.bf16.mxu0 0
    %256 = vmatpush2.bf16.msra.mxu0 0
    %257 = vmatprep.subr.bf16.mxu0 0
    %258 = vmatpush2.bf16.msra.mxu0 0
    %259 = vmatprep.subr.bf16.mxu0 0
    %260 = vmatpush2.bf16.msra.mxu0 0
    %261 = vmatprep.subr.bf16.mxu0 0
    %262 = vmatpush2.bf16.msra.mxu0 0
    %263 = vmatprep.subr.bf16.mxu0 0
    %264 = vmatpush2.bf16.msra.mxu0 0
    %265 = vmatprep.mubr.bf16.mxu0 0
    %266 = vmatmul.mubr.bf16.gmra.mxu0 %v175
    %v267 = vpop.f32.mrf.mxu0
    %v268 = vadd.f32 %v225, %v267
    %v269 = vpop.f32.mrf.mxu0
    %v270 = vpop.f32.mrf.mxu0
    %v271 = vadd.f32 %v225, %v270
    %v272 = vpop.f32.mrf.mxu0
    %273 = vdwg.mxu0
    %v274 = vld [vmem:[#allocation8] sm:$0xff]
    %v275 = vld [vmem:[#allocation8 + $0x8] sm:$0xff]
    %v276 = vld [vmem:[#allocation8 + $0x10] sm:$0xff]
    %v277 = vld [vmem:[#allocation8 + $0x18] sm:$0xff]
    %v278 = vld [vmem:[#allocation10] sm:$0xff]
    %v279 = vld [vmem:[#allocation10 + $0x8] sm:$0xff]
    %v280 = vld [vmem:[#allocation10 + $0x10] sm:$0xff]
    %v281 = vld [vmem:[#allocation10 + $0x18] sm:$0xff]
    %v282 = vld [vmem:[%s7] sm:$0x1]
    %v283 = vld [vmem:[%s8] sm:$0x1]
    %vm284 = vcmask 261120
    %v286 = vsel %vm284, 0.0, 0
    %288 = vmatprep.subr.mxu0 0.0
    %289 = vmatpush1.msra.mxu0 0.0
    %290 = vmatprep.subr.mxu0 0.0
    %291 = vmatpush1.msra.mxu0 0.0
    %292 = vmatprep.subr.mxu0 0.0
    %293 = vmatpush1.msra.mxu0 0.0
    %294 = vmatprep.subr.mxu0 0.0
    %295 = vmatpush1.msra.mxu0 0.0
    %296 = vmatprep.subr.mxu0 0.0
    %297 = vmatpush1.msra.mxu0 0.0
    %298 = vmatprep.subr.mxu0 0.0
    %299 = vmatpush1.msra.mxu0 0.0
    %300 = vmatprep.subr.mxu0 0.0
    %301 = vmatpush1.msra.mxu0 0.0
    %302 = vmatprep.subr.mxu0 0.0
    %303 = vmatpush1.msra.mxu0 0.0
    %304 = vmatprep.subr.mxu0 0.0
    %305 = vmatpush1.msra.mxu0 0.0
    %306 = vmatprep.subr.mxu0 0.0
    %307 = vmatpush1.msra.mxu0 0.0
    %308 = vmatprep.subr.mxu0 0.0
    %309 = vmatpush1.msra.mxu0 0.0
    %310 = vmatprep.subr.mxu0 0.0
    %311 = vmatpush1.msra.mxu0 0.0
    %312 = vmatprep.subr.mxu0 0.0
    %313 = vmatpush1.msra.mxu0 %v277
    %314 = vmatprep.subr.mxu0 0.0
    %315 = vmatpush1.msra.mxu0 %v276
    %316 = vmatprep.subr.mxu0 0.0
    %317 = vmatpush1.msra.mxu0 %v275
    %318 = vmatprep.subr.mxu0 0.0
    %319 = vmatpush1.msra.mxu0 %v274
    %320 = vmatprep.subr.mxu0 0.0
    %321 = vmatpush2.msra.mxu0 0.0
    %322 = vmatprep.subr.mxu0 0.0
    %323 = vmatpush2.msra.mxu0 0.0
    %324 = vmatprep.subr.mxu0 0.0
    %325 = vmatpush2.msra.mxu0 0.0
    %326 = vmatprep.subr.mxu0 0.0
    %327 = vmatpush2.msra.mxu0 0.0
    %328 = vmatprep.subr.mxu0 0.0
    %329 = vmatpush2.msra.mxu0 0.0
    %330 = vmatprep.subr.mxu0 0.0
    %331 = vmatpush2.msra.mxu0 0.0
    %332 = vmatprep.subr.mxu0 0.0
    %333 = vmatpush2.msra.mxu0 0.0
    %334 = vmatprep.subr.mxu0 0.0
    %335 = vmatpush2.msra.mxu0 0.0
    %336 = vmatprep.subr.mxu0 0.0
    %337 = vmatpush2.msra.mxu0 0.0
    %338 = vmatprep.subr.mxu0 0.0
    %339 = vmatpush2.msra.mxu0 0.0
    %340 = vmatprep.subr.mxu0 0.0
    %341 = vmatpush2.msra.mxu0 0.0
    %342 = vmatprep.subr.mxu0 0.0
    %343 = vmatpush2.msra.mxu0 0.0
    %344 = vmatprep.subr.mxu0 0.0
    %345 = vmatpush2.msra.mxu0 0.0
    %346 = vmatprep.subr.mxu0 0.0
    %347 = vmatpush2.msra.mxu0 0.0
    %348 = vmatprep.subr.mxu0 0.0
    %349 = vmatpush2.msra.mxu0 0.0
    %350 = vmatprep.subr.mxu0 0.0
    %351 = vmatpush2.msra.mxu0 0.0
    %352 = vmatprep.mubr.f32.mxu0 0.0
    %353 = vmatmul.mubr.f32.gmra.mxu0 %v286
    %v354 = vpop.f32.mrf.mxu0
    %v355 = vadd.f32 0.0, %v354
    %v356 = vpop.f32.mrf.mxu0
    %357 = vdwg.mxu0
    %358 = vmatprep.subr.mxu0 0.0
    %359 = vmatpush1.msra.mxu0 0.0
    %360 = vmatprep.subr.mxu0 0.0
    %361 = vmatpush1.msra.mxu0 0.0
    %362 = vmatprep.subr.mxu0 0.0
    %363 = vmatpush1.msra.mxu0 0.0
    %364 = vmatprep.subr.mxu0 0.0
    %365 = vmatpush1.msra.mxu0 0.0
    %366 = vmatprep.subr.mxu0 0.0
    %367 = vmatpush1.msra.mxu0 0.0
    %368 = vmatprep.subr.mxu0 0.0
    %369 = vmatpush1.msra.mxu0 0.0
    %370 = vmatprep.subr.mxu0 0.0
    %371 = vmatpush1.msra.mxu0 0.0
    %372 = vmatprep.subr.mxu0 0.0
    %373 = vmatpush1.msra.mxu0 0.0
    %374 = vmatprep.subr.mxu0 0.0
    %375 = vmatpush1.msra.mxu0 0.0
    %376 = vmatprep.subr.mxu0 0.0
    %377 = vmatpush1.msra.mxu0 0.0
    %378 = vmatprep.subr.mxu0 0.0
    %379 = vmatpush1.msra.mxu0 0.0
    %380 = vmatprep.subr.mxu0 0.0
    %381 = vmatpush1.msra.mxu0 0.0
    %382 = vmatprep.subr.mxu0 0.0
    %383 = vmatpush1.msra.mxu0 %v281
    %384 = vmatprep.subr.mxu0 0.0
    %385 = vmatpush1.msra.mxu0 %v280
    %386 = vmatprep.subr.mxu0 0.0
    %387 = vmatpush1.msra.mxu0 %v279
    %388 = vmatprep.subr.mxu0 0.0
    %389 = vmatpush1.msra.mxu0 %v278
    %390 = vmatprep.subr.mxu0 0.0
    %391 = vmatpush2.msra.mxu0 0.0
    %392 = vmatprep.subr.mxu0 0.0
    %393 = vmatpush2.msra.mxu0 0.0
    %394 = vmatprep.subr.mxu0 0.0
    %395 = vmatpush2.msra.mxu0 0.0
    %396 = vmatprep.subr.mxu0 0.0
    %397 = vmatpush2.msra.mxu0 0.0
    %398 = vmatprep.subr.mxu0 0.0
    %399 = vmatpush2.msra.mxu0 0.0
    %400 = vmatprep.subr.mxu0 0.0
    %401 = vmatpush2.msra.mxu0 0.0
    %402 = vmatprep.subr.mxu0 0.0
    %403 = vmatpush2.msra.mxu0 0.0
    %404 = vmatprep.subr.mxu0 0.0
    %405 = vmatpush2.msra.mxu0 0.0
    %406 = vmatprep.subr.mxu0 0.0
    %407 = vmatpush2.msra.mxu0 0.0
    %408 = vmatprep.subr.mxu0 0.0
    %409 = vmatpush2.msra.mxu0 0.0
    %410 = vmatprep.subr.mxu0 0.0
    %411 = vmatpush2.msra.mxu0 0.0
    %412 = vmatprep.subr.mxu0 0.0
    %413 = vmatpush2.msra.mxu0 0.0
    %414 = vmatprep.subr.mxu0 0.0
    %415 = vmatpush2.msra.mxu0 0.0
    %416 = vmatprep.subr.mxu0 0.0
    %417 = vmatpush2.msra.mxu0 0.0
    %418 = vmatprep.subr.mxu0 0.0
    %419 = vmatpush2.msra.mxu0 0.0
    %420 = vmatprep.subr.mxu0 0.0
    %421 = vmatpush2.msra.mxu0 0.0
    %422 = vmatprep.mubr.f32.mxu0 0.0
    %423 = vmatmul.mubr.f32.gmra.mxu0 %v286
    %v424 = vpop.f32.mrf.mxu0
    %v425 = vadd.f32 0.0, %v424
    %v426 = vpop.f32.mrf.mxu0
    %427 = vdwg.mxu0
    %v428 = vadd.f32 %v212, %v355
    %v429 = vxor.u32 %v428, 2147483648
    %v430 = vmul.f32 %v429, 1.442695
    %v431 = vpow.pop %v430
    %v432 = vadd.f32 %v431, 1.0
    %v433 = vrcp.pop %v432
    %v434 = vmul.f32 1.0, %v433
    %v436 = vlaneseq
    %v437 = vshrl.u32 %v436, 7
    %v438 = vsub.s32 0, %v437
    %v439 = vrot.slane %v282, %v438
    %440 = vrot.lane.b32.xlu0 %v439, 64
    %v441 = vpop.permute.xlu0 %440
    %v443 = vadd.f32 %v355, %v441
    %445 = vrot.lane.b32.xlu0 %v443, 64
    %v446 = vpop.permute.xlu0 %445
    %v448 = vmul.f32 %v434, %v446
    %450 = vrot.lane.b32.xlu0 %v448, 64
    %v451 = vpop.permute.xlu0 %450
    %v453 = vadd.f32 %v212, %v451
    %v454 = vtanh.pop %v453
    %v455 = vsub.f32 1.0, %v434
    %457 = vrot.lane.b32.xlu0 %v454, 96
    %v458 = vpop.permute.xlu0 %457
    %v460 = vmul.f32 %v455, %v458
    %v461 = vmul.f32 %v434, 0.0
    %v462 = vadd.f32 %v460, %v461
    %v464 = vrot.slane %v425, 2
    %v466 = vadd.f32 %v271, %v464
    %v467 = vxor.u32 %v466, 2147483648
    %v468 = vmul.f32 %v467, 1.442695
    %v469 = vpow.pop %v468
    %v470 = vadd.f32 %v469, 1.0
    %v471 = vrcp.pop %v470
    %v472 = vmul.f32 1.0, %v471
    %v474 = vlaneseq
    %v475 = vshrl.u32 %v474, 7
    %v476 = vsub.s32 0, %v475
    %v477 = vrot.slane %v283, %v476
    %478 = vrot.lane.b32.xlu0 %v477, 64
    %v479 = vpop.permute.xlu0 %478
    %v481 = vadd.f32 %v425, %v479
    %v483 = vrot.slane %v481, 2
    %484 = vrot.lane.b32.xlu0 %v483, 64
    %v485 = vpop.permute.xlu0 %484
    %v487 = vmul.f32 %v472, %v485
    %489 = vrot.lane.b32.xlu0 %v487, 64
    %v490 = vpop.permute.xlu0 %489
    %v492 = vadd.f32 %v271, %v490
    %v493 = vtanh.pop %v492
    %v494 = vsub.f32 1.0, %v472
    %496 = vrot.lane.b32.xlu0 %v493, 96
    %v497 = vpop.permute.xlu0 %496
    %v499 = vmul.f32 %v494, %v497
    %v500 = vmul.f32 %v472, 0.0
    %v501 = vadd.f32 %v499, %v500
    %503 = vrot.lane.b32.xlu0 %v462, 96
    %v504 = vpop.permute.xlu0 %503
    %v505 = vsel %vm284, %v504, 0
    %507 = vmatprep.subr.mxu0 0.0
    %508 = vmatpush1.msra.mxu0 0.0
    %509 = vmatprep.subr.mxu0 0.0
    %510 = vmatpush1.msra.mxu0 0.0
    %511 = vmatprep.subr.mxu0 0.0
    %512 = vmatpush1.msra.mxu0 0.0
    %513 = vmatprep.subr.mxu0 0.0
    %514 = vmatpush1.msra.mxu0 0.0
    %515 = vmatprep.subr.mxu0 0.0
    %516 = vmatpush1.msra.mxu0 0.0
    %517 = vmatprep.subr.mxu0 0.0
    %518 = vmatpush1.msra.mxu0 0.0
    %519 = vmatprep.subr.mxu0 0.0
    %520 = vmatpush1.msra.mxu0 0.0
    %521 = vmatprep.subr.mxu0 0.0
    %522 = vmatpush1.msra.mxu0 0.0
    %523 = vmatprep.subr.mxu0 0.0
    %524 = vmatpush1.msra.mxu0 0.0
    %525 = vmatprep.subr.mxu0 0.0
    %526 = vmatpush1.msra.mxu0 0.0
    %527 = vmatprep.subr.mxu0 0.0
    %528 = vmatpush1.msra.mxu0 0.0
    %529 = vmatprep.subr.mxu0 0.0
    %530 = vmatpush1.msra.mxu0 0.0
    %531 = vmatprep.subr.mxu0 0.0
    %532 = vmatpush1.msra.mxu0 %v277
    %533 = vmatprep.subr.mxu0 0.0
    %534 = vmatpush1.msra.mxu0 %v276
    %535 = vmatprep.subr.mxu0 0.0
    %536 = vmatpush1.msra.mxu0 %v275
    %537 = vmatprep.subr.mxu0 0.0
    %538 = vmatpush1.msra.mxu0 %v274
    %539 = vmatprep.subr.mxu0 0.0
    %540 = vmatpush2.msra.mxu0 0.0
    %541 = vmatprep.subr.mxu0 0.0
    %542 = vmatpush2.msra.mxu0 0.0
    %543 = vmatprep.subr.mxu0 0.0
    %544 = vmatpush2.msra.mxu0 0.0
    %545 = vmatprep.subr.mxu0 0.0
    %546 = vmatpush2.msra.mxu0 0.0
    %547 = vmatprep.subr.mxu0 0.0
    %548 = vmatpush2.msra.mxu0 0.0
    %549 = vmatprep.subr.mxu0 0.0
    %550 = vmatpush2.msra.mxu0 0.0
    %551 = vmatprep.subr.mxu0 0.0
    %552 = vmatpush2.msra.mxu0 0.0
    %553 = vmatprep.subr.mxu0 0.0
    %554 = vmatpush2.msra.mxu0 0.0
    %555 = vmatprep.subr.mxu0 0.0
    %556 = vmatpush2.msra.mxu0 0.0
    %557 = vmatprep.subr.mxu0 0.0
    %558 = vmatpush2.msra.mxu0 0.0
    %559 = vmatprep.subr.mxu0 0.0
    %560 = vmatpush2.msra.mxu0 0.0
    %561 = vmatprep.subr.mxu0 0.0
    %562 = vmatpush2.msra.mxu0 0.0
    %563 = vmatprep.subr.mxu0 0.0
    %564 = vmatpush2.msra.mxu0 0.0
    %565 = vmatprep.subr.mxu0 0.0
    %566 = vmatpush2.msra.mxu0 0.0
    %567 = vmatprep.subr.mxu0 0.0
    %568 = vmatpush2.msra.mxu0 0.0
    %569 = vmatprep.subr.mxu0 0.0
    %570 = vmatpush2.msra.mxu0 0.0
    %571 = vmatprep.mubr.f32.mxu0 0.0
    %572 = vmatmul.mubr.f32.gmra.mxu0 %v505
    %v573 = vpop.f32.mrf.mxu0
    %v574 = vadd.f32 0.0, %v573
    %v575 = vpop.f32.mrf.mxu0
    %576 = vdwg.mxu0
    %v578 = vrot.slane %v501, 6
    %579 = vrot.lane.b32.xlu0 %v578, 96
    %v580 = vpop.permute.xlu0 %579
    %v581 = vsel %vm284, %v580, 0
    %583 = vmatprep.subr.mxu0 0.0
    %584 = vmatpush1.msra.mxu0 0.0
    %585 = vmatprep.subr.mxu0 0.0
    %586 = vmatpush1.msra.mxu0 0.0
    %587 = vmatprep.subr.mxu0 0.0
    %588 = vmatpush1.msra.mxu0 0.0
    %589 = vmatprep.subr.mxu0 0.0
    %590 = vmatpush1.msra.mxu0 0.0
    %591 = vmatprep.subr.mxu0 0.0
    %592 = vmatpush1.msra.mxu0 0.0
    %593 = vmatprep.subr.mxu0 0.0
    %594 = vmatpush1.msra.mxu0 0.0
    %595 = vmatprep.subr.mxu0 0.0
    %596 = vmatpush1.msra.mxu0 0.0
    %597 = vmatprep.subr.mxu0 0.0
    %598 = vmatpush1.msra.mxu0 0.0
    %599 = vmatprep.subr.mxu0 0.0
    %600 = vmatpush1.msra.mxu0 0.0
    %601 = vmatprep.subr.mxu0 0.0
    %602 = vmatpush1.msra.mxu0 0.0
    %603 = vmatprep.subr.mxu0 0.0
    %604 = vmatpush1.msra.mxu0 0.0
    %605 = vmatprep.subr.mxu0 0.0
    %606 = vmatpush1.msra.mxu0 0.0
    %607 = vmatprep.subr.mxu0 0.0
    %608 = vmatpush1.msra.mxu0 %v281
    %609 = vmatprep.subr.mxu0 0.0
    %610 = vmatpush1.msra.mxu0 %v280
    %611 = vmatprep.subr.mxu0 0.0
    %612 = vmatpush1.msra.mxu0 %v279
    %613 = vmatprep.subr.mxu0 0.0
    %614 = vmatpush1.msra.mxu0 %v278
    %615 = vmatprep.subr.mxu0 0.0
    %616 = vmatpush2.msra.mxu0 0.0
    %617 = vmatprep.subr.mxu0 0.0
    %618 = vmatpush2.msra.mxu0 0.0
    %619 = vmatprep.subr.mxu0 0.0
    %620 = vmatpush2.msra.mxu0 0.0
    %621 = vmatprep.subr.mxu0 0.0
    %622 = vmatpush2.msra.mxu0 0.0
    %623 = vmatprep.subr.mxu0 0.0
    %624 = vmatpush2.msra.mxu0 0.0
    %625 = vmatprep.subr.mxu0 0.0
    %626 = vmatpush2.msra.mxu0 0.0
    %627 = vmatprep.subr.mxu0 0.0
    %628 = vmatpush2.msra.mxu0 0.0
    %629 = vmatprep.subr.mxu0 0.0
    %630 = vmatpush2.msra.mxu0 0.0
    %631 = vmatprep.subr.mxu0 0.0
    %632 = vmatpush2.msra.mxu0 0.0
    %633 = vmatprep.subr.mxu0 0.0
    %634 = vmatpush2.msra.mxu0 0.0
    %635 = vmatprep.subr.mxu0 0.0
    %636 = vmatpush2.msra.mxu0 0.0
    %637 = vmatprep.subr.mxu0 0.0
    %638 = vmatpush2.msra.mxu0 0.0
    %639 = vmatprep.subr.mxu0 0.0
    %640 = vmatpush2.msra.mxu0 0.0
    %641 = vmatprep.subr.mxu0 0.0
    %642 = vmatpush2.msra.mxu0 0.0
    %643 = vmatprep.subr.mxu0 0.0
    %644 = vmatpush2.msra.mxu0 0.0
    %645 = vmatprep.subr.mxu0 0.0
    %646 = vmatpush2.msra.mxu0 0.0
    %647 = vmatprep.mubr.f32.mxu0 0.0
    %648 = vmatmul.mubr.f32.gmra.mxu0 %v581
    %v649 = vpop.f32.mrf.mxu0
    %v650 = vadd.f32 0.0, %v649
    %v651 = vpop.f32.mrf.mxu0
    %652 = vdwg.mxu0
    %v654 = vrot.slane %v574, 6
    %v656 = vadd.f32 %v212, %v654
    %v657 = vxor.u32 %v656, 2147483648
    %v658 = vmul.f32 %v657, 1.442695
    %v659 = vpow.pop %v658
    %v660 = vadd.f32 %v659, 1.0
    %v661 = vrcp.pop %v660
    %v662 = vmul.f32 1.0, %v661
    %v663 = vadd.f32 %v574, %v441
    %v665 = vrot.slane %v663, 6
    %666 = vrot.lane.b32.xlu0 %v665, 64
    %v667 = vpop.permute.xlu0 %666
    %v669 = vmul.f32 %v662, %v667
    %671 = vrot.lane.b32.xlu0 %v669, 64
    %v672 = vpop.permute.xlu0 %671
    %v674 = vadd.f32 %v212, %v672
    %v675 = vtanh.pop %v674
    %v676 = vsub.f32 1.0, %v662
    %678 = vrot.lane.b32.xlu0 %v675, 96
    %v679 = vpop.permute.xlu0 %678
    %v681 = vmul.f32 %v676, %v679
    %v682 = vrot.slane %v462, 6
    %v684 = vmul.f32 %v662, %v682
    %v685 = vadd.f32 %v681, %v684
    %v687 = vrot.slane %v650, 4
    %v689 = vadd.f32 %v271, %v687
    %v690 = vxor.u32 %v689, 2147483648
    %v691 = vmul.f32 %v690, 1.442695
    %v692 = vpow.pop %v691
    %v693 = vadd.f32 %v692, 1.0
    %v694 = vrcp.pop %v693
    %v695 = vmul.f32 1.0, %v694
    %v696 = vadd.f32 %v650, %v479
    %v698 = vrot.slane %v696, 4
    %699 = vrot.lane.b32.xlu0 %v698, 64
    %v700 = vpop.permute.xlu0 %699
    %v702 = vmul.f32 %v695, %v700
    %704 = vrot.lane.b32.xlu0 %v702, 64
    %v705 = vpop.permute.xlu0 %704
    %v707 = vadd.f32 %v271, %v705
    %v708 = vtanh.pop %v707
    %v709 = vsub.f32 1.0, %v695
    %711 = vrot.lane.b32.xlu0 %v708, 96
    %v712 = vpop.permute.xlu0 %711
    %v714 = vmul.f32 %v709, %v712
    %v715 = vrot.slane %v501, 2
    %v717 = vmul.f32 %v695, %v715
    %v718 = vadd.f32 %v714, %v717
    %v720 = vrot.slane %v685, 2
    %721 = vrot.lane.b32.xlu0 %v720, 96
    %v722 = vpop.permute.xlu0 %721
    %v723 = vsel %vm284, %v722, 0
    %725 = vmatprep.subr.mxu0 0.0
    %726 = vmatpush1.msra.mxu0 0.0
    %727 = vmatprep.subr.mxu0 0.0
    %728 = vmatpush1.msra.mxu0 0.0
    %729 = vmatprep.subr.mxu0 0.0
    %730 = vmatpush1.msra.mxu0 0.0
    %731 = vmatprep.subr.mxu0 0.0
    %732 = vmatpush1.msra.mxu0 0.0
    %733 = vmatprep.subr.mxu0 0.0
    %734 = vmatpush1.msra.mxu0 0.0
    %735 = vmatprep.subr.mxu0 0.0
    %736 = vmatpush1.msra.mxu0 0.0
    %737 = vmatprep.subr.mxu0 0.0
    %738 = vmatpush1.msra.mxu0 0.0
    %739 = vmatprep.subr.mxu0 0.0
    %740 = vmatpush1.msra.mxu0 0.0
    %741 = vmatprep.subr.mxu0 0.0
    %742 = vmatpush1.msra.mxu0 0.0
    %743 = vmatprep.subr.mxu0 0.0
    %744 = vmatpush1.msra.mxu0 0.0
    %745 = vmatprep.subr.mxu0 0.0
    %746 = vmatpush1.msra.mxu0 0.0
    %747 = vmatprep.subr.mxu0 0.0
    %748 = vmatpush1.msra.mxu0 0.0
    %749 = vmatprep.subr.mxu0 0.0
    %750 = vmatpush1.msra.mxu0 %v277
    %751 = vmatprep.subr.mxu0 0.0
    %752 = vmatpush1.msra.mxu0 %v276
    %753 = vmatprep.subr.mxu0 0.0
    %754 = vmatpush1.msra.mxu0 %v275
    %755 = vmatprep.subr.mxu0 0.0
    %756 = vmatpush1.msra.mxu0 %v274
    %757 = vmatprep.subr.mxu0 0.0
    %758 = vmatpush2.msra.mxu0 0.0
    %759 = vmatprep.subr.mxu0 0.0
    %760 = vmatpush2.msra.mxu0 0.0
    %761 = vmatprep.subr.mxu0 0.0
    %762 = vmatpush2.msra.mxu0 0.0
    %763 = vmatprep.subr.mxu0 0.0
    %764 = vmatpush2.msra.mxu0 0.0
    %765 = vmatprep.subr.mxu0 0.0
    %766 = vmatpush2.msra.mxu0 0.0
    %767 = vmatprep.subr.mxu0 0.0
    %768 = vmatpush2.msra.mxu0 0.0
    %769 = vmatprep.subr.mxu0 0.0
    %770 = vmatpush2.msra.mxu0 0.0
    %771 = vmatprep.subr.mxu0 0.0
    %772 = vmatpush2.msra.mxu0 0.0
    %773 = vmatprep.subr.mxu0 0.0
    %774 = vmatpush2.msra.mxu0 0.0
    %775 = vmatprep.subr.mxu0 0.0
    %776 = vmatpush2.msra.mxu0 0.0
    %777 = vmatprep.subr.mxu0 0.0
    %778 = vmatpush2.msra.mxu0 0.0
    %779 = vmatprep.subr.mxu0 0.0
    %780 = vmatpush2.msra.mxu0 0.0
    %781 = vmatprep.subr.mxu0 0.0
    %782 = vmatpush2.msra.mxu0 0.0
    %783 = vmatprep.subr.mxu0 0.0
    %784 = vmatpush2.msra.mxu0 0.0
    %785 = vmatprep.subr.mxu0 0.0
    %786 = vmatpush2.msra.mxu0 0.0
    %787 = vmatprep.subr.mxu0 0.0
    %788 = vmatpush2.msra.mxu0 0.0
    %789 = vmatprep.mubr.f32.mxu0 0.0
    %790 = vmatmul.mubr.f32.gmra.mxu0 %v723
    %v791 = vpop.f32.mrf.mxu0
    %v792 = vadd.f32 0.0, %v791
    %v793 = vpop.f32.mrf.mxu0
    %794 = vdwg.mxu0
    %v796 = vrot.slane %v718, 4
    %797 = vrot.lane.b32.xlu0 %v796, 96
    %v798 = vpop.permute.xlu0 %797
    %v799 = vsel %vm284, %v798, 0
    %801 = vmatprep.subr.mxu0 0.0
    %802 = vmatpush1.msra.mxu0 0.0
    %803 = vmatprep.subr.mxu0 0.0
    %804 = vmatpush1.msra.mxu0 0.0
    %805 = vmatprep.subr.mxu0 0.0
    %806 = vmatpush1.msra.mxu0 0.0
    %807 = vmatprep.subr.mxu0 0.0
    %808 = vmatpush1.msra.mxu0 0.0
    %809 = vmatprep.subr.mxu0 0.0
    %810 = vmatpush1.msra.mxu0 0.0
    %811 = vmatprep.subr.mxu0 0.0
    %812 = vmatpush1.msra.mxu0 0.0
    %813 = vmatprep.subr.mxu0 0.0
    %814 = vmatpush1.msra.mxu0 0.0
    %815 = vmatprep.subr.mxu0 0.0
    %816 = vmatpush1.msra.mxu0 0.0
    %817 = vmatprep.subr.mxu0 0.0
    %818 = vmatpush1.msra.mxu0 0.0
    %819 = vmatprep.subr.mxu0 0.0
    %820 = vmatpush1.msra.mxu0 0.0
    %821 = vmatprep.subr.mxu0 0.0
    %822 = vmatpush1.msra.mxu0 0.0
    %823 = vmatprep.subr.mxu0 0.0
    %824 = vmatpush1.msra.mxu0 0.0
    %825 = vmatprep.subr.mxu0 0.0
    %826 = vmatpush1.msra.mxu0 %v281
    %827 = vmatprep.subr.mxu0 0.0
    %828 = vmatpush1.msra.mxu0 %v280
    %829 = vmatprep.subr.mxu0 0.0
    %830 = vmatpush1.msra.mxu0 %v279
    %831 = vmatprep.subr.mxu0 0.0
    %832 = vmatpush1.msra.mxu0 %v278
    %833 = vmatprep.subr.mxu0 0.0
    %834 = vmatpush2.msra.mxu0 0.0
    %835 = vmatprep.subr.mxu0 0.0
    %836 = vmatpush2.msra.mxu0 0.0
    %837 = vmatprep.subr.mxu0 0.0
    %838 = vmatpush2.msra.mxu0 0.0
    %839 = vmatprep.subr.mxu0 0.0
    %840 = vmatpush2.msra.mxu0 0.0
    %841 = vmatprep.subr.mxu0 0.0
    %842 = vmatpush2.msra.mxu0 0.0
    %843 = vmatprep.subr.mxu0 0.0
    %844 = vmatpush2.msra.mxu0 0.0
    %845 = vmatprep.subr.mxu0 0.0
    %846 = vmatpush2.msra.mxu0 0.0
    %847 = vmatprep.subr.mxu0 0.0
    %848 = vmatpush2.msra.mxu0 0.0
    %849 = vmatprep.subr.mxu0 0.0
    %850 = vmatpush2.msra.mxu0 0.0
    %851 = vmatprep.subr.mxu0 0.0
    %852 = vmatpush2.msra.mxu0 0.0
    %853 = vmatprep.subr.mxu0 0.0
    %854 = vmatpush2.msra.mxu0 0.0
    %855 = vmatprep.subr.mxu0 0.0
    %856 = vmatpush2.msra.mxu0 0.0
    %857 = vmatprep.subr.mxu0 0.0
    %858 = vmatpush2.msra.mxu0 0.0
    %859 = vmatprep.subr.mxu0 0.0
    %860 = vmatpush2.msra.mxu0 0.0
    %861 = vmatprep.subr.mxu0 0.0
    %862 = vmatpush2.msra.mxu0 0.0
    %863 = vmatprep.subr.mxu0 0.0
    %864 = vmatpush2.msra.mxu0 0.0
    %865 = vmatprep.mubr.f32.mxu0 0.0
    %866 = vmatmul.mubr.f32.gmra.mxu0 %v799
    %v867 = vpop.f32.mrf.mxu0
    %v868 = vadd.f32 0.0, %v867
    %v869 = vpop.f32.mrf.mxu0
    %870 = vdwg.mxu0
    %v872 = vrot.slane %v792, 4
    %v874 = vadd.f32 %v212, %v872
    %v875 = vxor.u32 %v874, 2147483648
    %v876 = vmul.f32 %v875, 1.442695
    %v877 = vpow.pop %v876
    %v878 = vadd.f32 %v877, 1.0
    %v879 = vrcp.pop %v878
    %v880 = vmul.f32 1.0, %v879
    %v881 = vadd.f32 %v792, %v441
    %v883 = vrot.slane %v881, 4
    %884 = vrot.lane.b32.xlu0 %v883, 64
    %v885 = vpop.permute.xlu0 %884
    %v887 = vmul.f32 %v880, %v885
    %889 = vrot.lane.b32.xlu0 %v887, 64
    %v890 = vpop.permute.xlu0 %889
    %v892 = vadd.f32 %v212, %v890
    %v893 = vtanh.pop %v892
    %v894 = vsub.f32 1.0, %v880
    %896 = vrot.lane.b32.xlu0 %v893, 96
    %v897 = vpop.permute.xlu0 %896
    %v899 = vmul.f32 %v894, %v897
    %v900 = vrot.slane %v685, 6
    %v902 = vmul.f32 %v880, %v900
    %v903 = vadd.f32 %v899, %v902
    %v905 = vrot.slane %v868, 6
    %v907 = vadd.f32 %v271, %v905
    %v908 = vxor.u32 %v907, 2147483648
    %v909 = vmul.f32 %v908, 1.442695
    %v910 = vpow.pop %v909
    %v911 = vadd.f32 %v910, 1.0
    %v912 = vrcp.pop %v911
    %v913 = vmul.f32 1.0, %v912
    %v914 = vadd.f32 %v868, %v479
    %v916 = vrot.slane %v914, 6
    %917 = vrot.lane.b32.xlu0 %v916, 64
    %v918 = vpop.permute.xlu0 %917
    %v920 = vmul.f32 %v913, %v918
    %922 = vrot.lane.b32.xlu0 %v920, 64
    %v923 = vpop.permute.xlu0 %922
    %v925 = vadd.f32 %v271, %v923
    %v926 = vtanh.pop %v925
    %v927 = vsub.f32 1.0, %v913
    %929 = vrot.lane.b32.xlu0 %v926, 96
    %v930 = vpop.permute.xlu0 %929
    %v932 = vmul.f32 %v927, %v930
    %v933 = vrot.slane %v718, 2
    %v935 = vmul.f32 %v913, %v933
    %v936 = vadd.f32 %v932, %v935
    %v938 = vrot.slane %v903, 4
    %939 = vrot.lane.b32.xlu0 %v938, 96
    %v940 = vpop.permute.xlu0 %939
    %v941 = vsel %vm284, %v940, 0
    %943 = vmatprep.subr.mxu0 0.0
    %944 = vmatpush1.msra.mxu0 0.0
    %945 = vmatprep.subr.mxu0 0.0
    %946 = vmatpush1.msra.mxu0 0.0
    %947 = vmatprep.subr.mxu0 0.0
    %948 = vmatpush1.msra.mxu0 0.0
    %949 = vmatprep.subr.mxu0 0.0
    %950 = vmatpush1.msra.mxu0 0.0
    %951 = vmatprep.subr.mxu0 0.0
    %952 = vmatpush1.msra.mxu0 0.0
    %953 = vmatprep.subr.mxu0 0.0
    %954 = vmatpush1.msra.mxu0 0.0
    %955 = vmatprep.subr.mxu0 0.0
    %956 = vmatpush1.msra.mxu0 0.0
    %957 = vmatprep.subr.mxu0 0.0
    %958 = vmatpush1.msra.mxu0 0.0
    %959 = vmatprep.subr.mxu0 0.0
    %960 = vmatpush1.msra.mxu0 0.0
    %961 = vmatprep.subr.mxu0 0.0
    %962 = vmatpush1.msra.mxu0 0.0
    %963 = vmatprep.subr.mxu0 0.0
    %964 = vmatpush1.msra.mxu0 0.0
    %965 = vmatprep.subr.mxu0 0.0
    %966 = vmatpush1.msra.mxu0 0.0
    %967 = vmatprep.subr.mxu0 0.0
    %968 = vmatpush1.msra.mxu0 %v277
    %969 = vmatprep.subr.mxu0 0.0
    %970 = vmatpush1.msra.mxu0 %v276
    %971 = vmatprep.subr.mxu0 0.0
    %972 = vmatpush1.msra.mxu0 %v275
    %973 = vmatprep.subr.mxu0 0.0
    %974 = vmatpush1.msra.mxu0 %v274
    %975 = vmatprep.subr.mxu0 0.0
    %976 = vmatpush2.msra.mxu0 0.0
    %977 = vmatprep.subr.mxu0 0.0
    %978 = vmatpush2.msra.mxu0 0.0
    %979 = vmatprep.subr.mxu0 0.0
    %980 = vmatpush2.msra.mxu0 0.0
    %981 = vmatprep.subr.mxu0 0.0
    %982 = vmatpush2.msra.mxu0 0.0
    %983 = vmatprep.subr.mxu0 0.0
    %984 = vmatpush2.msra.mxu0 0.0
    %985 = vmatprep.subr.mxu0 0.0
    %986 = vmatpush2.msra.mxu0 0.0
    %987 = vmatprep.subr.mxu0 0.0
    %988 = vmatpush2.msra.mxu0 0.0
    %989 = vmatprep.subr.mxu0 0.0
    %990 = vmatpush2.msra.mxu0 0.0
    %991 = vmatprep.subr.mxu0 0.0
    %992 = vmatpush2.msra.mxu0 0.0
    %993 = vmatprep.subr.mxu0 0.0
    %994 = vmatpush2.msra.mxu0 0.0
    %995 = vmatprep.subr.mxu0 0.0
    %996 = vmatpush2.msra.mxu0 0.0
    %997 = vmatprep.subr.mxu0 0.0
    %998 = vmatpush2.msra.mxu0 0.0
    %999 = vmatprep.subr.mxu0 0.0
    %1000 = vmatpush2.msra.mxu0 0.0
    %1001 = vmatprep.subr.mxu0 0.0
    %1002 = vmatpush2.msra.mxu0 0.0
    %1003 = vmatprep.subr.mxu0 0.0
    %1004 = vmatpush2.msra.mxu0 0.0
    %1005 = vmatprep.subr.mxu0 0.0
    %1006 = vmatpush2.msra.mxu0 0.0
    %1007 = vmatprep.mubr.f32.mxu0 0.0
    %1008 = vmatmul.mubr.f32.gmra.mxu0 %v941
    %v1009 = vpop.f32.mrf.mxu0
    %v1010 = vadd.f32 0.0, %v1009
    %v1011 = vpop.f32.mrf.mxu0
    %1012 = vdwg.mxu0
    %v1014 = vrot.slane %v936, 2
    %1015 = vrot.lane.b32.xlu0 %v1014, 96
    %v1016 = vpop.permute.xlu0 %1015
    %v1017 = vsel %vm284, %v1016, 0
    %1019 = vmatprep.subr.mxu0 0.0
    %1020 = vmatpush1.msra.mxu0 0.0
    %1021 = vmatprep.subr.mxu0 0.0
    %1022 = vmatpush1.msra.mxu0 0.0
    %1023 = vmatprep.subr.mxu0 0.0
    %1024 = vmatpush1.msra.mxu0 0.0
    %1025 = vmatprep.subr.mxu0 0.0
    %1026 = vmatpush1.msra.mxu0 0.0
    %1027 = vmatprep.subr.mxu0 0.0
    %1028 = vmatpush1.msra.mxu0 0.0
    %1029 = vmatprep.subr.mxu0 0.0
    %1030 = vmatpush1.msra.mxu0 0.0
    %1031 = vmatprep.subr.mxu0 0.0
    %1032 = vmatpush1.msra.mxu0 0.0
    %1033 = vmatprep.subr.mxu0 0.0
    %1034 = vmatpush1.msra.mxu0 0.0
    %1035 = vmatprep.subr.mxu0 0.0
    %1036 = vmatpush1.msra.mxu0 0.0
    %1037 = vmatprep.subr.mxu0 0.0
    %1038 = vmatpush1.msra.mxu0 0.0
    %1039 = vmatprep.subr.mxu0 0.0
    %1040 = vmatpush1.msra.mxu0 0.0
    %1041 = vmatprep.subr.mxu0 0.0
    %1042 = vmatpush1.msra.mxu0 0.0
    %1043 = vmatprep.subr.mxu0 0.0
    %1044 = vmatpush1.msra.mxu0 %v281
    %1045 = vmatprep.subr.mxu0 0.0
    %1046 = vmatpush1.msra.mxu0 %v280
    %1047 = vmatprep.subr.mxu0 0.0
    %1048 = vmatpush1.msra.mxu0 %v279
    %1049 = vmatprep.subr.mxu0 0.0
    %1050 = vmatpush1.msra.mxu0 %v278
    %1051 = vmatprep.subr.mxu0 0.0
    %1052 = vmatpush2.msra.mxu0 0.0
    %1053 = vmatprep.subr.mxu0 0.0
    %1054 = vmatpush2.msra.mxu0 0.0
    %1055 = vmatprep.subr.mxu0 0.0
    %1056 = vmatpush2.msra.mxu0 0.0
    %1057 = vmatprep.subr.mxu0 0.0
    %1058 = vmatpush2.msra.mxu0 0.0
    %1059 = vmatprep.subr.mxu0 0.0
    %1060 = vmatpush2.msra.mxu0 0.0
    %1061 = vmatprep.subr.mxu0 0.0
    %1062 = vmatpush2.msra.mxu0 0.0
    %1063 = vmatprep.subr.mxu0 0.0
    %1064 = vmatpush2.msra.mxu0 0.0
    %1065 = vmatprep.subr.mxu0 0.0
    %1066 = vmatpush2.msra.mxu0 0.0
    %1067 = vmatprep.subr.mxu0 0.0
    %1068 = vmatpush2.msra.mxu0 0.0
    %1069 = vmatprep.subr.mxu0 0.0
    %1070 = vmatpush2.msra.mxu0 0.0
    %1071 = vmatprep.subr.mxu0 0.0
    %1072 = vmatpush2.msra.mxu0 0.0
    %1073 = vmatprep.subr.mxu0 0.0
    %1074 = vmatpush2.msra.mxu0 0.0
    %1075 = vmatprep.subr.mxu0 0.0
    %1076 = vmatpush2.msra.mxu0 0.0
    %1077 = vmatprep.subr.mxu0 0.0
    %1078 = vmatpush2.msra.mxu0 0.0
    %1079 = vmatprep.subr.mxu0 0.0
    %1080 = vmatpush2.msra.mxu0 0.0
    %1081 = vmatprep.subr.mxu0 0.0
    %1082 = vmatpush2.msra.mxu0 0.0
    %1083 = vmatprep.mubr.f32.mxu0 0.0
    %1084 = vmatmul.mubr.f32.gmra.mxu0 %v1017
    %v1085 = vpop.f32.mrf.mxu0
    %v1086 = vadd.f32 0.0, %v1085
    %v1087 = vpop.f32.mrf.mxu0
    %1088 = vdwg.mxu0
    %v1090 = vrot.slane %v1010, 2
    %v1092 = vadd.f32 %v212, %v1090
    %v1093 = vxor.u32 %v1092, 2147483648
    %v1094 = vmul.f32 %v1093, 1.442695
    %v1095 = vpow.pop %v1094
    %v1096 = vadd.f32 %v1095, 1.0
    %v1097 = vrcp.pop %v1096
    %v1098 = vmul.f32 1.0, %v1097
    %v1099 = vadd.f32 %v1010, %v441
    %v1101 = vrot.slane %v1099, 2
    %1102 = vrot.lane.b32.xlu0 %v1101, 64
    %v1103 = vpop.permute.xlu0 %1102
    %v1105 = vmul.f32 %v1098, %v1103
    %1107 = vrot.lane.b32.xlu0 %v1105, 64
    %v1108 = vpop.permute.xlu0 %1107
    %v1110 = vadd.f32 %v212, %v1108
    %v1111 = vtanh.pop %v1110
    %v1112 = vsub.f32 1.0, %v1098
    %1114 = vrot.lane.b32.xlu0 %v1111, 96
    %v1115 = vpop.permute.xlu0 %1114
    %v1117 = vmul.f32 %v1112, %v1115
    %v1118 = vrot.slane %v903, 6
    %v1120 = vmul.f32 %v1098, %v1118
    %v1121 = vadd.f32 %v1117, %v1120
    %v1122 = vadd.f32 %v271, %v1086
    %v1123 = vxor.u32 %v1122, 2147483648
    %v1124 = vmul.f32 %v1123, 1.442695
    %v1125 = vpow.pop %v1124
    %v1126 = vadd.f32 %v1125, 1.0
    %v1127 = vrcp.pop %v1126
    %v1128 = vmul.f32 1.0, %v1127
    %v1129 = vadd.f32 %v1086, %v479
    %1131 = vrot.lane.b32.xlu0 %v1129, 64
    %v1132 = vpop.permute.xlu0 %1131
    %v1134 = vmul.f32 %v1128, %v1132
    %1136 = vrot.lane.b32.xlu0 %v1134, 64
    %v1137 = vpop.permute.xlu0 %1136
    %v1139 = vadd.f32 %v271, %v1137
    %v1140 = vtanh.pop %v1139
    %v1141 = vsub.f32 1.0, %v1128
    %1143 = vrot.lane.b32.xlu0 %v1140, 96
    %v1144 = vpop.permute.xlu0 %1143
    %v1146 = vmul.f32 %v1141, %v1144
    %v1148 = vmul.f32 %v1128, %v1014
    %v1149 = vadd.f32 %v1146, %v1148
    %v1151 = vrot.slane %v1121, 6
    %1152 = vrot.lane.b32.xlu0 %v1151, 96
    %v1153 = vpop.permute.xlu0 %1152
    %v1154 = vsel %vm284, %v1153, 0
    %1156 = vmatprep.subr.mxu0 0.0
    %1157 = vmatpush1.msra.mxu0 0.0
    %1158 = vmatprep.subr.mxu0 0.0
    %1159 = vmatpush1.msra.mxu0 0.0
    %1160 = vmatprep.subr.mxu0 0.0
    %1161 = vmatpush1.msra.mxu0 0.0
    %1162 = vmatprep.subr.mxu0 0.0
    %1163 = vmatpush1.msra.mxu0 0.0
    %1164 = vmatprep.subr.mxu0 0.0
    %1165 = vmatpush1.msra.mxu0 0.0
    %1166 = vmatprep.subr.mxu0 0.0
    %1167 = vmatpush1.msra.mxu0 0.0
    %1168 = vmatprep.subr.mxu0 0.0
    %1169 = vmatpush1.msra.mxu0 0.0
    %1170 = vmatprep.subr.mxu0 0.0
    %1171 = vmatpush1.msra.mxu0 0.0
    %1172 = vmatprep.subr.mxu0 0.0
    %1173 = vmatpush1.msra.mxu0 0.0
    %1174 = vmatprep.subr.mxu0 0.0
    %1175 = vmatpush1.msra.mxu0 0.0
    %1176 = vmatprep.subr.mxu0 0.0
    %1177 = vmatpush1.msra.mxu0 0.0
    %1178 = vmatprep.subr.mxu0 0.0
    %1179 = vmatpush1.msra.mxu0 0.0
    %1180 = vmatprep.subr.mxu0 0.0
    %1181 = vmatpush1.msra.mxu0 %v277
    %1182 = vmatprep.subr.mxu0 0.0
    %1183 = vmatpush1.msra.mxu0 %v276
    %1184 = vmatprep.subr.mxu0 0.0
    %1185 = vmatpush1.msra.mxu0 %v275
    %1186 = vmatprep.subr.mxu0 0.0
    %1187 = vmatpush1.msra.mxu0 %v274
    %1188 = vmatprep.subr.mxu0 0.0
    %1189 = vmatpush2.msra.mxu0 0.0
    %1190 = vmatprep.subr.mxu0 0.0
    %1191 = vmatpush2.msra.mxu0 0.0
    %1192 = vmatprep.subr.mxu0 0.0
    %1193 = vmatpush2.msra.mxu0 0.0
    %1194 = vmatprep.subr.mxu0 0.0
    %1195 = vmatpush2.msra.mxu0 0.0
    %1196 = vmatprep.subr.mxu0 0.0
    %1197 = vmatpush2.msra.mxu0 0.0
    %1198 = vmatprep.subr.mxu0 0.0
    %1199 = vmatpush2.msra.mxu0 0.0
    %1200 = vmatprep.subr.mxu0 0.0
    %1201 = vmatpush2.msra.mxu0 0.0
    %1202 = vmatprep.subr.mxu0 0.0
    %1203 = vmatpush2.msra.mxu0 0.0
    %1204 = vmatprep.subr.mxu0 0.0
    %1205 = vmatpush2.msra.mxu0 0.0
    %1206 = vmatprep.subr.mxu0 0.0
    %1207 = vmatpush2.msra.mxu0 0.0
    %1208 = vmatprep.subr.mxu0 0.0
    %1209 = vmatpush2.msra.mxu0 0.0
    %1210 = vmatprep.subr.mxu0 0.0
    %1211 = vmatpush2.msra.mxu0 0.0
    %1212 = vmatprep.subr.mxu0 0.0
    %1213 = vmatpush2.msra.mxu0 0.0
    %1214 = vmatprep.subr.mxu0 0.0
    %1215 = vmatpush2.msra.mxu0 0.0
    %1216 = vmatprep.subr.mxu0 0.0
    %1217 = vmatpush2.msra.mxu0 0.0
    %1218 = vmatprep.subr.mxu0 0.0
    %1219 = vmatpush2.msra.mxu0 0.0
    %1220 = vmatprep.mubr.f32.mxu0 0.0
    %1221 = vmatmul.mubr.f32.gmra.mxu0 %v1154
    %v1222 = vpop.f32.mrf.mxu0
    %v1223 = vadd.f32 0.0, %v1222
    %v1224 = vpop.f32.mrf.mxu0
    %1225 = vdwg.mxu0
    %1227 = vrot.lane.b32.xlu0 %v1149, 96
    %v1228 = vpop.permute.xlu0 %1227
    %v1229 = vsel %vm284, %v1228, 0
    %1231 = vmatprep.subr.mxu0 0.0
    %1232 = vmatpush1.msra.mxu0 0.0
    %1233 = vmatprep.subr.mxu0 0.0
    %1234 = vmatpush1.msra.mxu0 0.0
    %1235 = vmatprep.subr.mxu0 0.0
    %1236 = vmatpush1.msra.mxu0 0.0
    %1237 = vmatprep.subr.mxu0 0.0
    %1238 = vmatpush1.msra.mxu0 0.0
    %1239 = vmatprep.subr.mxu0 0.0
    %1240 = vmatpush1.msra.mxu0 0.0
    %1241 = vmatprep.subr.mxu0 0.0
    %1242 = vmatpush1.msra.mxu0 0.0
    %1243 = vmatprep.subr.mxu0 0.0
    %1244 = vmatpush1.msra.mxu0 0.0
    %1245 = vmatprep.subr.mxu0 0.0
    %1246 = vmatpush1.msra.mxu0 0.0
    %1247 = vmatprep.subr.mxu0 0.0
    %1248 = vmatpush1.msra.mxu0 0.0
    %1249 = vmatprep.subr.mxu0 0.0
    %1250 = vmatpush1.msra.mxu0 0.0
    %1251 = vmatprep.subr.mxu0 0.0
    %1252 = vmatpush1.msra.mxu0 0.0
    %1253 = vmatprep.subr.mxu0 0.0
    %1254 = vmatpush1.msra.mxu0 0.0
    %1255 = vmatprep.subr.mxu0 0.0
    %1256 = vmatpush1.msra.mxu0 %v281
    %1257 = vmatprep.subr.mxu0 0.0
    %1258 = vmatpush1.msra.mxu0 %v280
    %1259 = vmatprep.subr.mxu0 0.0
    %1260 = vmatpush1.msra.mxu0 %v279
    %1261 = vmatprep.subr.mxu0 0.0
    %1262 = vmatpush1.msra.mxu0 %v278
    %1263 = vmatprep.subr.mxu0 0.0
    %1264 = vmatpush2.msra.mxu0 0.0
    %1265 = vmatprep.subr.mxu0 0.0
    %1266 = vmatpush2.msra.mxu0 0.0
    %1267 = vmatprep.subr.mxu0 0.0
    %1268 = vmatpush2.msra.mxu0 0.0
    %1269 = vmatprep.subr.mxu0 0.0
    %1270 = vmatpush2.msra.mxu0 0.0
    %1271 = vmatprep.subr.mxu0 0.0
    %1272 = vmatpush2.msra.mxu0 0.0
    %1273 = vmatprep.subr.mxu0 0.0
    %1274 = vmatpush2.msra.mxu0 0.0
    %1275 = vmatprep.subr.mxu0 0.0
    %1276 = vmatpush2.msra.mxu0 0.0
    %1277 = vmatprep.subr.mxu0 0.0
    %1278 = vmatpush2.msra.mxu0 0.0
    %1279 = vmatprep.subr.mxu0 0.0
    %1280 = vmatpush2.msra.mxu0 0.0
    %1281 = vmatprep.subr.mxu0 0.0
    %1282 = vmatpush2.msra.mxu0 0.0
    %1283 = vmatprep.subr.mxu0 0.0
    %1284 = vmatpush2.msra.mxu0 0.0
    %1285 = vmatprep.subr.mxu0 0.0
    %1286 = vmatpush2.msra.mxu0 0.0
    %1287 = vmatprep.subr.mxu0 0.0
    %1288 = vmatpush2.msra.mxu0 0.0
    %1289 = vmatprep.subr.mxu0 0.0
    %1290 = vmatpush2.msra.mxu0 0.0
    %1291 = vmatprep.subr.mxu0 0.0
    %1292 = vmatpush2.msra.mxu0 0.0
    %1293 = vmatprep.subr.mxu0 0.0
    %1294 = vmatpush2.msra.mxu0 0.0
    %1295 = vmatprep.mubr.f32.mxu0 0.0
    %1296 = vmatmul.mubr.f32.gmra.mxu0 %v1229
    %v1297 = vpop.f32.mrf.mxu0
    %v1298 = vadd.f32 0.0, %v1297
    %v1299 = vpop.f32.mrf.mxu0
    %1300 = vdwg.mxu0
    %v1301 = vadd.f32 %v215, %v1223
    %v1302 = vxor.u32 %v1301, 2147483648
    %v1303 = vmul.f32 %v1302, 1.442695
    %v1304 = vpow.pop %v1303
    %v1305 = vadd.f32 %v1304, 1.0
    %v1306 = vrcp.pop %v1305
    %v1307 = vmul.f32 1.0, %v1306
    %v1308 = vadd.f32 %v1223, %v441
    %1310 = vrot.lane.b32.xlu0 %v1308, 64
    %v1311 = vpop.permute.xlu0 %1310
    %v1313 = vmul.f32 %v1307, %v1311
    %1315 = vrot.lane.b32.xlu0 %v1313, 64
    %v1316 = vpop.permute.xlu0 %1315
    %v1318 = vadd.f32 %v215, %v1316
    %v1319 = vtanh.pop %v1318
    %v1320 = vsub.f32 1.0, %v1307
    %1322 = vrot.lane.b32.xlu0 %v1319, 96
    %v1323 = vpop.permute.xlu0 %1322
    %v1325 = vmul.f32 %v1320, %v1323
    %v1327 = vmul.f32 %v1307, %v1151
    %v1328 = vadd.f32 %v1325, %v1327
    %v1330 = vrot.slane %v1298, 2
    %v1332 = vadd.f32 %v268, %v1330
    %v1333 = vxor.u32 %v1332, 2147483648
    %v1334 = vmul.f32 %v1333, 1.442695
    %v1335 = vpow.pop %v1334
    %v1336 = vadd.f32 %v1335, 1.0
    %v1337 = vrcp.pop %v1336
    %v1338 = vmul.f32 1.0, %v1337
    %v1339 = vadd.f32 %v1298, %v479
    %v1341 = vrot.slane %v1339, 2
    %1342 = vrot.lane.b32.xlu0 %v1341, 64
    %v1343 = vpop.permute.xlu0 %1342
    %v1345 = vmul.f32 %v1338, %v1343
    %1347 = vrot.lane.b32.xlu0 %v1345, 64
    %v1348 = vpop.permute.xlu0 %1347
    %v1350 = vadd.f32 %v268, %v1348
    %v1351 = vtanh.pop %v1350
    %v1352 = vsub.f32 1.0, %v1338
    %1354 = vrot.lane.b32.xlu0 %v1351, 96
    %v1355 = vpop.permute.xlu0 %1354
    %v1357 = vmul.f32 %v1352, %v1355
    %v1358 = vrot.slane %v1149, 2
    %v1360 = vmul.f32 %v1338, %v1358
    %v1361 = vadd.f32 %v1357, %v1360
    %1363 = vrot.lane.b32.xlu0 %v1328, 96
    %v1364 = vpop.permute.xlu0 %1363
    %v1365 = vsel %vm284, %v1364, 0
    %1367 = vmatprep.subr.mxu0 0.0
    %1368 = vmatpush1.msra.mxu0 0.0
    %1369 = vmatprep.subr.mxu0 0.0
    %1370 = vmatpush1.msra.mxu0 0.0
    %1371 = vmatprep.subr.mxu0 0.0
    %1372 = vmatpush1.msra.mxu0 0.0
    %1373 = vmatprep.subr.mxu0 0.0
    %1374 = vmatpush1.msra.mxu0 0.0
    %1375 = vmatprep.subr.mxu0 0.0
    %1376 = vmatpush1.msra.mxu0 0.0
    %1377 = vmatprep.subr.mxu0 0.0
    %1378 = vmatpush1.msra.mxu0 0.0
    %1379 = vmatprep.subr.mxu0 0.0
    %1380 = vmatpush1.msra.mxu0 0.0
    %1381 = vmatprep.subr.mxu0 0.0
    %1382 = vmatpush1.msra.mxu0 0.0
    %1383 = vmatprep.subr.mxu0 0.0
    %1384 = vmatpush1.msra.mxu0 0.0
    %1385 = vmatprep.subr.mxu0 0.0
    %1386 = vmatpush1.msra.mxu0 0.0
    %1387 = vmatprep.subr.mxu0 0.0
    %1388 = vmatpush1.msra.mxu0 0.0
    %1389 = vmatprep.subr.mxu0 0.0
    %1390 = vmatpush1.msra.mxu0 0.0
    %1391 = vmatprep.subr.mxu0 0.0
    %1392 = vmatpush1.msra.mxu0 %v277
    %1393 = vmatprep.subr.mxu0 0.0
    %1394 = vmatpush1.msra.mxu0 %v276
    %1395 = vmatprep.subr.mxu0 0.0
    %1396 = vmatpush1.msra.mxu0 %v275
    %1397 = vmatprep.subr.mxu0 0.0
    %1398 = vmatpush1.msra.mxu0 %v274
    %1399 = vmatprep.subr.mxu0 0.0
    %1400 = vmatpush2.msra.mxu0 0.0
    %1401 = vmatprep.subr.mxu0 0.0
    %1402 = vmatpush2.msra.mxu0 0.0
    %1403 = vmatprep.subr.mxu0 0.0
    %1404 = vmatpush2.msra.mxu0 0.0
    %1405 = vmatprep.subr.mxu0 0.0
    %1406 = vmatpush2.msra.mxu0 0.0
    %1407 = vmatprep.subr.mxu0 0.0
    %1408 = vmatpush2.msra.mxu0 0.0
    %1409 = vmatprep.subr.mxu0 0.0
    %1410 = vmatpush2.msra.mxu0 0.0
    %1411 = vmatprep.subr.mxu0 0.0
    %1412 = vmatpush2.msra.mxu0 0.0
    %1413 = vmatprep.subr.mxu0 0.0
    %1414 = vmatpush2.msra.mxu0 0.0
    %1415 = vmatprep.subr.mxu0 0.0
    %1416 = vmatpush2.msra.mxu0 0.0
    %1417 = vmatprep.subr.mxu0 0.0
    %1418 = vmatpush2.msra.mxu0 0.0
    %1419 = vmatprep.subr.mxu0 0.0
    %1420 = vmatpush2.msra.mxu0 0.0
    %1421 = vmatprep.subr.mxu0 0.0
    %1422 = vmatpush2.msra.mxu0 0.0
    %1423 = vmatprep.subr.mxu0 0.0
    %1424 = vmatpush2.msra.mxu0 0.0
    %1425 = vmatprep.subr.mxu0 0.0
    %1426 = vmatpush2.msra.mxu0 0.0
    %1427 = vmatprep.subr.mxu0 0.0
    %1428 = vmatpush2.msra.mxu0 0.0
    %1429 = vmatprep.subr.mxu0 0.0
    %1430 = vmatpush2.msra.mxu0 0.0
    %1431 = vmatprep.mubr.f32.mxu0 0.0
    %1432 = vmatmul.mubr.f32.gmra.mxu0 %v1365
    %v1433 = vpop.f32.mrf.mxu0
    %v1434 = vadd.f32 0.0, %v1433
    %v1435 = vpop.f32.mrf.mxu0
    %1436 = vdwg.mxu0
    %v1438 = vrot.slane %v1361, 6
    %1439 = vrot.lane.b32.xlu0 %v1438, 96
    %v1440 = vpop.permute.xlu0 %1439
    %v1441 = vsel %vm284, %v1440, 0
    %1443 = vmatprep.subr.mxu0 0.0
    %1444 = vmatpush1.msra.mxu0 0.0
    %1445 = vmatprep.subr.mxu0 0.0
    %1446 = vmatpush1.msra.mxu0 0.0
    %1447 = vmatprep.subr.mxu0 0.0
    %1448 = vmatpush1.msra.mxu0 0.0
    %1449 = vmatprep.subr.mxu0 0.0
    %1450 = vmatpush1.msra.mxu0 0.0
    %1451 = vmatprep.subr.mxu0 0.0
    %1452 = vmatpush1.msra.mxu0 0.0
    %1453 = vmatprep.subr.mxu0 0.0
    %1454 = vmatpush1.msra.mxu0 0.0
    %1455 = vmatprep.subr.mxu0 0.0
    %1456 = vmatpush1.msra.mxu0 0.0
    %1457 = vmatprep.subr.mxu0 0.0
    %1458 = vmatpush1.msra.mxu0 0.0
    %1459 = vmatprep.subr.mxu0 0.0
    %1460 = vmatpush1.msra.mxu0 0.0
    %1461 = vmatprep.subr.mxu0 0.0
    %1462 = vmatpush1.msra.mxu0 0.0
    %1463 = vmatprep.subr.mxu0 0.0
    %1464 = vmatpush1.msra.mxu0 0.0
    %1465 = vmatprep.subr.mxu0 0.0
    %1466 = vmatpush1.msra.mxu0 0.0
    %1467 = vmatprep.subr.mxu0 0.0
    %1468 = vmatpush1.msra.mxu0 %v281
    %1469 = vmatprep.subr.mxu0 0.0
    %1470 = vmatpush1.msra.mxu0 %v280
    %1471 = vmatprep.subr.mxu0 0.0
    %1472 = vmatpush1.msra.mxu0 %v279
    %1473 = vmatprep.subr.mxu0 0.0
    %1474 = vmatpush1.msra.mxu0 %v278
    %1475 = vmatprep.subr.mxu0 0.0
    %1476 = vmatpush2.msra.mxu0 0.0
    %1477 = vmatprep.subr.mxu0 0.0
    %1478 = vmatpush2.msra.mxu0 0.0
    %1479 = vmatprep.subr.mxu0 0.0
    %1480 = vmatpush2.msra.mxu0 0.0
    %1481 = vmatprep.subr.mxu0 0.0
    %1482 = vmatpush2.msra.mxu0 0.0
    %1483 = vmatprep.subr.mxu0 0.0
    %1484 = vmatpush2.msra.mxu0 0.0
    %1485 = vmatprep.subr.mxu0 0.0
    %1486 = vmatpush2.msra.mxu0 0.0
    %1487 = vmatprep.subr.mxu0 0.0
    %1488 = vmatpush2.msra.mxu0 0.0
    %1489 = vmatprep.subr.mxu0 0.0
    %1490 = vmatpush2.msra.mxu0 0.0
    %1491 = vmatprep.subr.mxu0 0.0
    %1492 = vmatpush2.msra.mxu0 0.0
    %1493 = vmatprep.subr.mxu0 0.0
    %1494 = vmatpush2.msra.mxu0 0.0
    %1495 = vmatprep.subr.mxu0 0.0
    %1496 = vmatpush2.msra.mxu0 0.0
    %1497 = vmatprep.subr.mxu0 0.0
    %1498 = vmatpush2.msra.mxu0 0.0
    %1499 = vmatprep.subr.mxu0 0.0
    %1500 = vmatpush2.msra.mxu0 0.0
    %1501 = vmatprep.subr.mxu0 0.0
    %1502 = vmatpush2.msra.mxu0 0.0
    %1503 = vmatprep.subr.mxu0 0.0
    %1504 = vmatpush2.msra.mxu0 0.0
    %1505 = vmatprep.subr.mxu0 0.0
    %1506 = vmatpush2.msra.mxu0 0.0
    %1507 = vmatprep.mubr.f32.mxu0 0.0
    %1508 = vmatmul.mubr.f32.gmra.mxu0 %v1441
    %v1509 = vpop.f32.mrf.mxu0
    %v1510 = vadd.f32 0.0, %v1509
    %v1511 = vpop.f32.mrf.mxu0
    %1512 = vdwg.mxu0
    %v1514 = vrot.slane %v1434, 6
    %v1516 = vadd.f32 %v215, %v1514
    %v1517 = vxor.u32 %v1516, 2147483648
    %v1518 = vmul.f32 %v1517, 1.442695
    %v1519 = vpow.pop %v1518
    %v1520 = vadd.f32 %v1519, 1.0
    %v1521 = vrcp.pop %v1520
    %v1522 = vmul.f32 1.0, %v1521
    %v1523 = vadd.f32 %v1434, %v441
    %v1525 = vrot.slane %v1523, 6
    %1526 = vrot.lane.b32.xlu0 %v1525, 64
    %v1527 = vpop.permute.xlu0 %1526
    %v1529 = vmul.f32 %v1522, %v1527
    %1531 = vrot.lane.b32.xlu0 %v1529, 64
    %v1532 = vpop.permute.xlu0 %1531
    %v1534 = vadd.f32 %v215, %v1532
    %v1535 = vtanh.pop %v1534
    %v1536 = vsub.f32 1.0, %v1522
    %1538 = vrot.lane.b32.xlu0 %v1535, 96
    %v1539 = vpop.permute.xlu0 %1538
    %v1541 = vmul.f32 %v1536, %v1539
    %v1542 = vrot.slane %v1328, 6
    %v1544 = vmul.f32 %v1522, %v1542
    %v1545 = vadd.f32 %v1541, %v1544
    %v1547 = vrot.slane %v1510, 4
    %v1549 = vadd.f32 %v268, %v1547
    %v1550 = vxor.u32 %v1549, 2147483648
    %v1551 = vmul.f32 %v1550, 1.442695
    %v1552 = vpow.pop %v1551
    %v1553 = vadd.f32 %v1552, 1.0
    %v1554 = vrcp.pop %v1553
    %v1555 = vmul.f32 1.0, %v1554
    %v1556 = vadd.f32 %v1510, %v479
    %v1558 = vrot.slane %v1556, 4
    %1559 = vrot.lane.b32.xlu0 %v1558, 64
    %v1560 = vpop.permute.xlu0 %1559
    %v1562 = vmul.f32 %v1555, %v1560
    %1564 = vrot.lane.b32.xlu0 %v1562, 64
    %v1565 = vpop.permute.xlu0 %1564
    %v1567 = vadd.f32 %v268, %v1565
    %v1568 = vtanh.pop %v1567
    %v1569 = vsub.f32 1.0, %v1555
    %1571 = vrot.lane.b32.xlu0 %v1568, 96
    %v1572 = vpop.permute.xlu0 %1571
    %v1574 = vmul.f32 %v1569, %v1572
    %v1575 = vrot.slane %v1361, 2
    %v1577 = vmul.f32 %v1555, %v1575
    %v1578 = vadd.f32 %v1574, %v1577
    %v1580 = vrot.slane %v1545, 2
    %1581 = vrot.lane.b32.xlu0 %v1580, 96
    %v1582 = vpop.permute.xlu0 %1581
    %v1583 = vsel %vm284, %v1582, 0
    %1585 = vmatprep.subr.mxu0 0.0
    %1586 = vmatpush1.msra.mxu0 0.0
    %1587 = vmatprep.subr.mxu0 0.0
    %1588 = vmatpush1.msra.mxu0 0.0
    %1589 = vmatprep.subr.mxu0 0.0
    %1590 = vmatpush1.msra.mxu0 0.0
    %1591 = vmatprep.subr.mxu0 0.0
    %1592 = vmatpush1.msra.mxu0 0.0
    %1593 = vmatprep.subr.mxu0 0.0
    %1594 = vmatpush1.msra.mxu0 0.0
    %1595 = vmatprep.subr.mxu0 0.0
    %1596 = vmatpush1.msra.mxu0 0.0
    %1597 = vmatprep.subr.mxu0 0.0
    %1598 = vmatpush1.msra.mxu0 0.0
    %1599 = vmatprep.subr.mxu0 0.0
    %1600 = vmatpush1.msra.mxu0 0.0
    %1601 = vmatprep.subr.mxu0 0.0
    %1602 = vmatpush1.msra.mxu0 0.0
    %1603 = vmatprep.subr.mxu0 0.0
    %1604 = vmatpush1.msra.mxu0 0.0
    %1605 = vmatprep.subr.mxu0 0.0
    %1606 = vmatpush1.msra.mxu0 0.0
    %1607 = vmatprep.subr.mxu0 0.0
    %1608 = vmatpush1.msra.mxu0 0.0
    %1609 = vmatprep.subr.mxu0 0.0
    %1610 = vmatpush1.msra.mxu0 %v277
    %1611 = vmatprep.subr.mxu0 0.0
    %1612 = vmatpush1.msra.mxu0 %v276
    %1613 = vmatprep.subr.mxu0 0.0
    %1614 = vmatpush1.msra.mxu0 %v275
    %1615 = vmatprep.subr.mxu0 0.0
    %1616 = vmatpush1.msra.mxu0 %v274
    %1617 = vmatprep.subr.mxu0 0.0
    %1618 = vmatpush2.msra.mxu0 0.0
    %1619 = vmatprep.subr.mxu0 0.0
    %1620 = vmatpush2.msra.mxu0 0.0
    %1621 = vmatprep.subr.mxu0 0.0
    %1622 = vmatpush2.msra.mxu0 0.0
    %1623 = vmatprep.subr.mxu0 0.0
    %1624 = vmatpush2.msra.mxu0 0.0
    %1625 = vmatprep.subr.mxu0 0.0
    %1626 = vmatpush2.msra.mxu0 0.0
    %1627 = vmatprep.subr.mxu0 0.0
    %1628 = vmatpush2.msra.mxu0 0.0
    %1629 = vmatprep.subr.mxu0 0.0
    %1630 = vmatpush2.msra.mxu0 0.0
    %1631 = vmatprep.subr.mxu0 0.0
    %1632 = vmatpush2.msra.mxu0 0.0
    %1633 = vmatprep.subr.mxu0 0.0
    %1634 = vmatpush2.msra.mxu0 0.0
    %1635 = vmatprep.subr.mxu0 0.0
    %1636 = vmatpush2.msra.mxu0 0.0
    %1637 = vmatprep.subr.mxu0 0.0
    %1638 = vmatpush2.msra.mxu0 0.0
    %1639 = vmatprep.subr.mxu0 0.0
    %1640 = vmatpush2.msra.mxu0 0.0
    %1641 = vmatprep.subr.mxu0 0.0
    %1642 = vmatpush2.msra.mxu0 0.0
    %1643 = vmatprep.subr.mxu0 0.0
    %1644 = vmatpush2.msra.mxu0 0.0
    %1645 = vmatprep.subr.mxu0 0.0
    %1646 = vmatpush2.msra.mxu0 0.0
    %1647 = vmatprep.subr.mxu0 0.0
    %1648 = vmatpush2.msra.mxu0 0.0
    %1649 = vmatprep.mubr.f32.mxu0 0.0
    %1650 = vmatmul.mubr.f32.gmra.mxu0 %v1583
    %v1651 = vpop.f32.mrf.mxu0
    %v1652 = vadd.f32 0.0, %v1651
    %v1653 = vpop.f32.mrf.mxu0
    %1654 = vdwg.mxu0
    %v1656 = vrot.slane %v1578, 4
    %1657 = vrot.lane.b32.xlu0 %v1656, 96
    %v1658 = vpop.permute.xlu0 %1657
    %v1659 = vsel %vm284, %v1658, 0
    %1661 = vmatprep.subr.mxu0 0.0
    %1662 = vmatpush1.msra.mxu0 0.0
    %1663 = vmatprep.subr.mxu0 0.0
    %1664 = vmatpush1.msra.mxu0 0.0
    %1665 = vmatprep.subr.mxu0 0.0
    %1666 = vmatpush1.msra.mxu0 0.0
    %1667 = vmatprep.subr.mxu0 0.0
    %1668 = vmatpush1.msra.mxu0 0.0
    %1669 = vmatprep.subr.mxu0 0.0
    %1670 = vmatpush1.msra.mxu0 0.0
    %1671 = vmatprep.subr.mxu0 0.0
    %1672 = vmatpush1.msra.mxu0 0.0
    %1673 = vmatprep.subr.mxu0 0.0
    %1674 = vmatpush1.msra.mxu0 0.0
    %1675 = vmatprep.subr.mxu0 0.0
    %1676 = vmatpush1.msra.mxu0 0.0
    %1677 = vmatprep.subr.mxu0 0.0
    %1678 = vmatpush1.msra.mxu0 0.0
    %1679 = vmatprep.subr.mxu0 0.0
    %1680 = vmatpush1.msra.mxu0 0.0
    %1681 = vmatprep.subr.mxu0 0.0
    %1682 = vmatpush1.msra.mxu0 0.0
    %1683 = vmatprep.subr.mxu0 0.0
    %1684 = vmatpush1.msra.mxu0 0.0
    %1685 = vmatprep.subr.mxu0 0.0
    %1686 = vmatpush1.msra.mxu0 %v281
    %1687 = vmatprep.subr.mxu0 0.0
    %1688 = vmatpush1.msra.mxu0 %v280
    %1689 = vmatprep.subr.mxu0 0.0
    %1690 = vmatpush1.msra.mxu0 %v279
    %1691 = vmatprep.subr.mxu0 0.0
    %1692 = vmatpush1.msra.mxu0 %v278
    %1693 = vmatprep.subr.mxu0 0.0
    %1694 = vmatpush2.msra.mxu0 0.0
    %1695 = vmatprep.subr.mxu0 0.0
    %1696 = vmatpush2.msra.mxu0 0.0
    %1697 = vmatprep.subr.mxu0 0.0
    %1698 = vmatpush2.msra.mxu0 0.0
    %1699 = vmatprep.subr.mxu0 0.0
    %1700 = vmatpush2.msra.mxu0 0.0
    %1701 = vmatprep.subr.mxu0 0.0
    %1702 = vmatpush2.msra.mxu0 0.0
    %1703 = vmatprep.subr.mxu0 0.0
    %1704 = vmatpush2.msra.mxu0 0.0
    %1705 = vmatprep.subr.mxu0 0.0
    %1706 = vmatpush2.msra.mxu0 0.0
    %1707 = vmatprep.subr.mxu0 0.0
    %1708 = vmatpush2.msra.mxu0 0.0
    %1709 = vmatprep.subr.mxu0 0.0
    %1710 = vmatpush2.msra.mxu0 0.0
    %1711 = vmatprep.subr.mxu0 0.0
    %1712 = vmatpush2.msra.mxu0 0.0
    %1713 = vmatprep.subr.mxu0 0.0
    %1714 = vmatpush2.msra.mxu0 0.0
    %1715 = vmatprep.subr.mxu0 0.0
    %1716 = vmatpush2.msra.mxu0 0.0
    %1717 = vmatprep.subr.mxu0 0.0
    %1718 = vmatpush2.msra.mxu0 0.0
    %1719 = vmatprep.subr.mxu0 0.0
    %1720 = vmatpush2.msra.mxu0 0.0
    %1721 = vmatprep.subr.mxu0 0.0
    %1722 = vmatpush2.msra.mxu0 0.0
    %1723 = vmatprep.subr.mxu0 0.0
    %1724 = vmatpush2.msra.mxu0 0.0
    %1725 = vmatprep.mubr.f32.mxu0 0.0
    %1726 = vmatmul.mubr.f32.gmra.mxu0 %v1659
    %v1727 = vpop.f32.mrf.mxu0
    %v1728 = vadd.f32 0.0, %v1727
    %v1729 = vpop.f32.mrf.mxu0
    %1730 = vdwg.mxu0
    %v1732 = vrot.slane %v1652, 4
    %v1734 = vadd.f32 %v215, %v1732
    %v1735 = vxor.u32 %v1734, 2147483648
    %v1736 = vmul.f32 %v1735, 1.442695
    %v1737 = vpow.pop %v1736
    %v1738 = vadd.f32 %v1737, 1.0
    %v1739 = vrcp.pop %v1738
    %v1740 = vmul.f32 1.0, %v1739
    %v1741 = vadd.f32 %v1652, %v441
    %v1743 = vrot.slane %v1741, 4
    %1744 = vrot.lane.b32.xlu0 %v1743, 64
    %v1745 = vpop.permute.xlu0 %1744
    %v1747 = vmul.f32 %v1740, %v1745
    %1749 = vrot.lane.b32.xlu0 %v1747, 64
    %v1750 = vpop.permute.xlu0 %1749
    %v1752 = vadd.f32 %v215, %v1750
    %v1753 = vtanh.pop %v1752
    %v1754 = vsub.f32 1.0, %v1740
    %1756 = vrot.lane.b32.xlu0 %v1753, 96
    %v1757 = vpop.permute.xlu0 %1756
    %v1759 = vmul.f32 %v1754, %v1757
    %v1760 = vrot.slane %v1545, 6
    %v1762 = vmul.f32 %v1740, %v1760
    %v1763 = vadd.f32 %v1759, %v1762
    %v1765 = vrot.slane %v1728, 6
    %v1767 = vadd.f32 %v268, %v1765
    %v1768 = vxor.u32 %v1767, 2147483648
    %v1769 = vmul.f32 %v1768, 1.442695
    %v1770 = vpow.pop %v1769
    %v1771 = vadd.f32 %v1770, 1.0
    %v1772 = vrcp.pop %v1771
    %v1773 = vmul.f32 1.0, %v1772
    %v1774 = vadd.f32 %v1728, %v479
    %v1776 = vrot.slane %v1774, 6
    %1777 = vrot.lane.b32.xlu0 %v1776, 64
    %v1778 = vpop.permute.xlu0 %1777
    %v1780 = vmul.f32 %v1773, %v1778
    %1782 = vrot.lane.b32.xlu0 %v1780, 64
    %v1783 = vpop.permute.xlu0 %1782
    %v1785 = vadd.f32 %v268, %v1783
    %v1786 = vtanh.pop %v1785
    %v1787 = vsub.f32 1.0, %v1773
    %1789 = vrot.lane.b32.xlu0 %v1786, 96
    %v1790 = vpop.permute.xlu0 %1789
    %v1792 = vmul.f32 %v1787, %v1790
    %v1793 = vrot.slane %v1578, 2
    %v1795 = vmul.f32 %v1773, %v1793
    %v1796 = vadd.f32 %v1792, %v1795
    %v1798 = vrot.slane %v1763, 4
    %1799 = vrot.lane.b32.xlu0 %v1798, 96
    %v1800 = vpop.permute.xlu0 %1799
    %v1801 = vsel %vm284, %v1800, 0
    %1803 = vmatprep.subr.mxu0 0.0
    %1804 = vmatpush1.msra.mxu0 0.0
    %1805 = vmatprep.subr.mxu0 0.0
    %1806 = vmatpush1.msra.mxu0 0.0
    %1807 = vmatprep.subr.mxu0 0.0
    %1808 = vmatpush1.msra.mxu0 0.0
    %1809 = vmatprep.subr.mxu0 0.0
    %1810 = vmatpush1.msra.mxu0 0.0
    %1811 = vmatprep.subr.mxu0 0.0
    %1812 = vmatpush1.msra.mxu0 0.0
    %1813 = vmatprep.subr.mxu0 0.0
    %1814 = vmatpush1.msra.mxu0 0.0
    %1815 = vmatprep.subr.mxu0 0.0
    %1816 = vmatpush1.msra.mxu0 0.0
    %1817 = vmatprep.subr.mxu0 0.0
    %1818 = vmatpush1.msra.mxu0 0.0
    %1819 = vmatprep.subr.mxu0 0.0
    %1820 = vmatpush1.msra.mxu0 0.0
    %1821 = vmatprep.subr.mxu0 0.0
    %1822 = vmatpush1.msra.mxu0 0.0
    %1823 = vmatprep.subr.mxu0 0.0
    %1824 = vmatpush1.msra.mxu0 0.0
    %1825 = vmatprep.subr.mxu0 0.0
    %1826 = vmatpush1.msra.mxu0 0.0
    %1827 = vmatprep.subr.mxu0 0.0
    %1828 = vmatpush1.msra.mxu0 %v277
    %1829 = vmatprep.subr.mxu0 0.0
    %1830 = vmatpush1.msra.mxu0 %v276
    %1831 = vmatprep.subr.mxu0 0.0
    %1832 = vmatpush1.msra.mxu0 %v275
    %1833 = vmatprep.subr.mxu0 0.0
    %1834 = vmatpush1.msra.mxu0 %v274
    %1835 = vmatprep.subr.mxu0 0.0
    %1836 = vmatpush2.msra.mxu0 0.0
    %1837 = vmatprep.subr.mxu0 0.0
    %1838 = vmatpush2.msra.mxu0 0.0
    %1839 = vmatprep.subr.mxu0 0.0
    %1840 = vmatpush2.msra.mxu0 0.0
    %1841 = vmatprep.subr.mxu0 0.0
    %1842 = vmatpush2.msra.mxu0 0.0
    %1843 = vmatprep.subr.mxu0 0.0
    %1844 = vmatpush2.msra.mxu0 0.0
    %1845 = vmatprep.subr.mxu0 0.0
    %1846 = vmatpush2.msra.mxu0 0.0
    %1847 = vmatprep.subr.mxu0 0.0
    %1848 = vmatpush2.msra.mxu0 0.0
    %1849 = vmatprep.subr.mxu0 0.0
    %1850 = vmatpush2.msra.mxu0 0.0
    %1851 = vmatprep.subr.mxu0 0.0
    %1852 = vmatpush2.msra.mxu0 0.0
    %1853 = vmatprep.subr.mxu0 0.0
    %1854 = vmatpush2.msra.mxu0 0.0
    %1855 = vmatprep.subr.mxu0 0.0
    %1856 = vmatpush2.msra.mxu0 0.0
    %1857 = vmatprep.subr.mxu0 0.0
    %1858 = vmatpush2.msra.mxu0 0.0
    %1859 = vmatprep.subr.mxu0 0.0
    %1860 = vmatpush2.msra.mxu0 0.0
    %1861 = vmatprep.subr.mxu0 0.0
    %1862 = vmatpush2.msra.mxu0 0.0
    %1863 = vmatprep.subr.mxu0 0.0
    %1864 = vmatpush2.msra.mxu0 0.0
    %1865 = vmatprep.subr.mxu0 0.0
    %1866 = vmatpush2.msra.mxu0 0.0
    %1867 = vmatprep.mubr.f32.mxu0 0.0
    %1868 = vmatmul.mubr.f32.gmra.mxu0 %v1801
    %v1869 = vpop.f32.mrf.mxu0
    %v1870 = vadd.f32 0.0, %v1869
    %v1871 = vpop.f32.mrf.mxu0
    %1872 = vdwg.mxu0
    %v1874 = vrot.slane %v1796, 2
    %1875 = vrot.lane.b32.xlu0 %v1874, 96
    %v1876 = vpop.permute.xlu0 %1875
    %v1877 = vsel %vm284, %v1876, 0
    %1879 = vmatprep.subr.mxu0 0.0
    %1880 = vmatpush1.msra.mxu0 0.0
    %1881 = vmatprep.subr.mxu0 0.0
    %1882 = vmatpush1.msra.mxu0 0.0
    %1883 = vmatprep.subr.mxu0 0.0
    %1884 = vmatpush1.msra.mxu0 0.0
    %1885 = vmatprep.subr.mxu0 0.0
    %1886 = vmatpush1.msra.mxu0 0.0
    %1887 = vmatprep.subr.mxu0 0.0
    %1888 = vmatpush1.msra.mxu0 0.0
    %1889 = vmatprep.subr.mxu0 0.0
    %1890 = vmatpush1.msra.mxu0 0.0
    %1891 = vmatprep.subr.mxu0 0.0
    %1892 = vmatpush1.msra.mxu0 0.0
    %1893 = vmatprep.subr.mxu0 0.0
    %1894 = vmatpush1.msra.mxu0 0.0
    %1895 = vmatprep.subr.mxu0 0.0
    %1896 = vmatpush1.msra.mxu0 0.0
    %1897 = vmatprep.subr.mxu0 0.0
    %1898 = vmatpush1.msra.mxu0 0.0
    %1899 = vmatprep.subr.mxu0 0.0
    %1900 = vmatpush1.msra.mxu0 0.0
    %1901 = vmatprep.subr.mxu0 0.0
    %1902 = vmatpush1.msra.mxu0 0.0
    %1903 = vmatprep.subr.mxu0 0.0
    %1904 = vmatpush1.msra.mxu0 %v281
    %1905 = vmatprep.subr.mxu0 0.0
    %1906 = vmatpush1.msra.mxu0 %v280
    %1907 = vmatprep.subr.mxu0 0.0
    %1908 = vmatpush1.msra.mxu0 %v279
    %1909 = vmatprep.subr.mxu0 0.0
    %1910 = vmatpush1.msra.mxu0 %v278
    %1911 = vmatprep.subr.mxu0 0.0
    %1912 = vmatpush2.msra.mxu0 0.0
    %1913 = vmatprep.subr.mxu0 0.0
    %1914 = vmatpush2.msra.mxu0 0.0
    %1915 = vmatprep.subr.mxu0 0.0
    %1916 = vmatpush2.msra.mxu0 0.0
    %1917 = vmatprep.subr.mxu0 0.0
    %1918 = vmatpush2.msra.mxu0 0.0
    %1919 = vmatprep.subr.mxu0 0.0
    %1920 = vmatpush2.msra.mxu0 0.0
    %1921 = vmatprep.subr.mxu0 0.0
    %1922 = vmatpush2.msra.mxu0 0.0
    %1923 = vmatprep.subr.mxu0 0.0
    %1924 = vmatpush2.msra.mxu0 0.0
    %1925 = vmatprep.subr.mxu0 0.0
    %1926 = vmatpush2.msra.mxu0 0.0
    %1927 = vmatprep.subr.mxu0 0.0
    %1928 = vmatpush2.msra.mxu0 0.0
    %1929 = vmatprep.subr.mxu0 0.0
    %1930 = vmatpush2.msra.mxu0 0.0
    %1931 = vmatprep.subr.mxu0 0.0
    %1932 = vmatpush2.msra.mxu0 0.0
    %1933 = vmatprep.subr.mxu0 0.0
    %1934 = vmatpush2.msra.mxu0 0.0
    %1935 = vmatprep.subr.mxu0 0.0
    %1936 = vmatpush2.msra.mxu0 0.0
    %1937 = vmatprep.subr.mxu0 0.0
    %1938 = vmatpush2.msra.mxu0 0.0
    %1939 = vmatprep.subr.mxu0 0.0
    %1940 = vmatpush2.msra.mxu0 0.0
    %1941 = vmatprep.subr.mxu0 0.0
    %1942 = vmatpush2.msra.mxu0 0.0
    %1943 = vmatprep.mubr.f32.mxu0 0.0
    %1944 = vmatmul.mubr.f32.gmra.mxu0 %v1877
    %v1945 = vpop.f32.mrf.mxu0
    %v1946 = vadd.f32 0.0, %v1945
    %v1947 = vpop.f32.mrf.mxu0
    %1948 = vdwg.mxu0
    %v1950 = vrot.slane %v1870, 2
    %v1952 = vadd.f32 %v215, %v1950
    %v1953 = vxor.u32 %v1952, 2147483648
    %v1954 = vmul.f32 %v1953, 1.442695
    %v1955 = vpow.pop %v1954
    %v1956 = vadd.f32 %v1955, 1.0
    %v1957 = vrcp.pop %v1956
    %v1958 = vmul.f32 1.0, %v1957
    %v1959 = vadd.f32 %v1870, %v441
    %v1961 = vrot.slane %v1959, 2
    %1962 = vrot.lane.b32.xlu0 %v1961, 64
    %v1963 = vpop.permute.xlu0 %1962
    %v1965 = vmul.f32 %v1958, %v1963
    %1967 = vrot.lane.b32.xlu0 %v1965, 64
    %v1968 = vpop.permute.xlu0 %1967
    %v1970 = vadd.f32 %v215, %v1968
    %v1971 = vtanh.pop %v1970
    %v1972 = vsub.f32 1.0, %v1958
    %1974 = vrot.lane.b32.xlu0 %v1971, 96
    %v1975 = vpop.permute.xlu0 %1974
    %v1977 = vmul.f32 %v1972, %v1975
    %v1978 = vrot.slane %v1763, 6
    %v1980 = vmul.f32 %v1958, %v1978
    %v1981 = vadd.f32 %v1977, %v1980
    %v1982 = vadd.f32 %v268, %v1946
    %v1983 = vxor.u32 %v1982, 2147483648
    %v1984 = vmul.f32 %v1983, 1.442695
    %v1985 = vpow.pop %v1984
    %v1986 = vadd.f32 %v1985, 1.0
    %v1987 = vrcp.pop %v1986
    %v1988 = vmul.f32 1.0, %v1987
    %v1989 = vadd.f32 %v1946, %v479
    %1991 = vrot.lane.b32.xlu0 %v1989, 64
    %v1992 = vpop.permute.xlu0 %1991
    %v1994 = vmul.f32 %v1988, %v1992
    %1996 = vrot.lane.b32.xlu0 %v1994, 64
    %v1997 = vpop.permute.xlu0 %1996
    %v1999 = vadd.f32 %v268, %v1997
    %v2000 = vtanh.pop %v1999
    %v2001 = vsub.f32 1.0, %v1988
    %2003 = vrot.lane.b32.xlu0 %v2000, 96
    %v2004 = vpop.permute.xlu0 %2003
    %v2006 = vmul.f32 %v2001, %v2004
    %v2008 = vmul.f32 %v1988, %v1874
    %v2009 = vadd.f32 %v2006, %v2008
    %2011 = vrot.lane.b32.xlu0 %v1981, 96
    %v2012 = vpop.permute.xlu0 %2011
    %vm2014 = vcmask 261126
    %2015 = vst.msk [vmem:[#allocation15 - $0x6] sm:$0xc0] %vm2014, %v2012
    %2017 = vrot.lane.b32.xlu0 %v2009, 96
    %v2018 = vpop.permute.xlu0 %2017
    %s2020 = scalar_lea.vmem [#allocation15], 2
    %vm2021 = vcmask 254976
    %2022 = vst.msk [vmem:[%s2020] sm:$0x3] %vm2021, %v2018
    %vm2023 = vcmask 1041408
    %v2024 = vsel %vm2023, %v462, %v685
    %vm2025 = vcmask 1043456
    %v2026 = vsel %vm2025, %v2024, %v903
    %vm2027 = vcmask 1045504
    %v2028 = vsel %vm2027, %v2026, %v1121
    %v2029 = vsel %vm2023, %v1328, %v1545
    %v2030 = vsel %vm2025, %v2029, %v1763
    %v2031 = vsel %vm2027, %v2030, %v1981
    %v2032 = vsel %vm2023, %v2009, %v1796
    %v2033 = vsel %vm2025, %v2032, %v1578
    %v2034 = vsel %vm2027, %v2033, %v1361
    %v2035 = vsel %vm2023, %v1149, %v936
    %v2036 = vsel %vm2025, %v2035, %v718
    %v2037 = vsel %vm2027, %v2036, %v501
    %2040 = vrot.lane.b32.xlu0 %v2028, 96
    %v2041 = vpop.permute.xlu0 %2040
    %2042 = vrot.lane.b32.xlu0 %v2031, 96
    %v2043 = vpop.permute.xlu0 %2042
    %v2046 = vsel %vm284, %v2041, 0.0
    %2047 = vadd.xlane.f32.xlu0 %v2046
    %v2048 = vpop.xlane.xlu0 %2047
    %v2049 = vsel %vm284, %v2043, 0.0
    %2050 = vadd.xlane.f32.xlu0 %v2049
    %v2051 = vpop.xlane.xlu0 %2050
    %2054 = vrot.lane.b32.xlu0 %v2034, 96
    %v2055 = vpop.permute.xlu0 %2054
    %2056 = vrot.lane.b32.xlu0 %v2037, 96
    %v2057 = vpop.permute.xlu0 %2056
    %v2060 = vsel %vm284, %v2055, 0.0
    %2061 = vadd.xlane.f32.xlu0 %v2060
    %v2062 = vpop.xlane.xlu0 %2061
    %v2063 = vsel %vm284, %v2057, 0.0
    %2064 = vadd.xlane.f32.xlu0 %v2063
    %v2065 = vpop.xlane.xlu0 %2064
    %v2066 = vadd.f32 %v2048, %v2062
    %v2067 = vadd.f32 %v2051, %v2065
    %v2068 = vmul.f32 %v2066, 0.015625
    %v2069 = vmul.f32 %v2067, 0.015625
    %v2070 = vsub.f32 %v2028, %v2068
    %v2071 = vsub.f32 %v2031, %v2069
    %v2072 = vsub.f32 %v2034, %v2068
    %v2073 = vsub.f32 %v2037, %v2069
    %v2074 = vmul.f32 %v2070, %v2070
    %v2075 = vmul.f32 %v2071, %v2071
    %2078 = vrot.lane.b32.xlu0 %v2074, 96
    %v2079 = vpop.permute.xlu0 %2078
    %2080 = vrot.lane.b32.xlu0 %v2075, 96
    %v2081 = vpop.permute.xlu0 %2080
    %v2084 = vsel %vm284, %v2079, 0.0
    %2085 = vadd.xlane.f32.xlu0 %v2084
    %v2086 = vpop.xlane.xlu0 %2085
    %v2087 = vsel %vm284, %v2081, 0.0
    %2088 = vadd.xlane.f32.xlu0 %v2087
    %v2089 = vpop.xlane.xlu0 %2088
    %v2090 = vmul.f32 %v2072, %v2072
    %v2091 = vmul.f32 %v2073, %v2073
    %2094 = vrot.lane.b32.xlu0 %v2090, 96
    %v2095 = vpop.permute.xlu0 %2094
    %2096 = vrot.lane.b32.xlu0 %v2091, 96
    %v2097 = vpop.permute.xlu0 %2096
    %v2100 = vsel %vm284, %v2095, 0.0
    %2101 = vadd.xlane.f32.xlu0 %v2100
    %v2102 = vpop.xlane.xlu0 %2101
    %v2103 = vsel %vm284, %v2097, 0.0
    %2104 = vadd.xlane.f32.xlu0 %v2103
    %v2105 = vpop.xlane.xlu0 %2104
    %v2106 = vadd.f32 %v2086, %v2102
    %v2107 = vadd.f32 %v2089, %v2105
    %v2108 = vmul.f32 %v2106, 0.015625
    %v2109 = vmul.f32 %v2107, 0.015625
    %v2110 = vadd.f32 %v2108, 1e-05
    %v2111 = vadd.f32 %v2109, 1e-05
    %v2112 = vrsqrt.pop %v2110
    %v2113 = vrsqrt.pop %v2111
    %v2114 = vmul.f32 %v2070, %v2112
    %v2115 = vmul.f32 %v2071, %v2113
    %v2116 = vld [vmem:[%s9] sm:$0x1]
    %v2118 = vlaneseq
    %v2119 = vshrl.u32 %v2118, 7
    %v2120 = vsub.s32 0, %v2119
    %v2121 = vrot.slane %v2116, %v2120
    %2122 = vrot.lane.b32.xlu0 %v2121, 32
    %v2123 = vpop.permute.xlu0 %2122
    %v2125 = vmul.f32 %v2114, %v2123
    %v2126 = vmul.f32 %v2115, %v2123
    %v2127 = vld [vmem:[%s11] sm:$0x1]
    %v2129 = vlaneseq
    %v2130 = vshrl.u32 %v2129, 7
    %v2131 = vsub.s32 0, %v2130
    %v2132 = vrot.slane %v2127, %v2131
    %2133 = vrot.lane.b32.xlu0 %v2132, 32
    %v2134 = vpop.permute.xlu0 %2133
    %v2136 = vadd.f32 %v2125, %v2134
    %v2137 = vadd.f32 %v2126, %v2134
    %v2138 = vmul.f32 %v2072, %v2112
    %v2139 = vmul.f32 %v2073, %v2113
    %v2140 = vld [vmem:[%s10] sm:$0x1]
    %v2142 = vlaneseq
    %v2143 = vshrl.u32 %v2142, 7
    %v2144 = vsub.s32 0, %v2143
    %v2145 = vrot.slane %v2140, %v2144
    %2146 = vrot.lane.b32.xlu0 %v2145, 32
    %v2147 = vpop.permute.xlu0 %2146
    %v2149 = vmul.f32 %v2138, %v2147
    %v2150 = vmul.f32 %v2139, %v2147
    %v2151 = vld [vmem:[#allocation11] sm:$0x1]
    %v2153 = vlaneseq
    %v2154 = vshrl.u32 %v2153, 7
    %v2155 = vsub.s32 0, %v2154
    %v2156 = vrot.slane %v2151, %v2155
    %2157 = vrot.lane.b32.xlu0 %v2156, 32
    %v2158 = vpop.permute.xlu0 %2157
    %v2160 = vadd.f32 %v2149, %v2158
    %v2161 = vadd.f32 %v2150, %v2158
    %v2162 = vpack.c.bf16 %v2137, %v2136
    %v2163 = vld [vmem:[%s13] sm:$0xf]
    %v2164 = vld [vmem:[%s13 + $0x4] sm:$0xf]
    %v2165 = vld [vmem:[%s13 + $0x8] sm:$0xf]
    %v2166 = vld [vmem:[%s13 + $0xc] sm:$0xf]
    %v2167 = vpack.c.bf16 %v2161, %v2160
    %v2168 = vld [vmem:[#allocation13] sm:$0xf]
    %v2169 = vld [vmem:[#allocation13 + $0x4] sm:$0xf]
    %v2170 = vld [vmem:[#allocation13 + $0x8] sm:$0xf]
    %v2171 = vld [vmem:[#allocation13 + $0xc] sm:$0xf]
    %2173 = vrot.lane.b32.xlu0 %v2167, 96
    %v2174 = vpop.permute.xlu0 %2173
    %v2179 = vunpack.c.l.b16 %v2168
    %v2180 = vunpack.c.l.b16 %v2169
    %v2181 = vunpack.c.l.b16 %v2170
    %v2182 = vunpack.c.l.b16 %v2171
    %v2183 = vpack.c.b16 %v2180, %v2179
    %v2184 = vpack.c.b16 %v2182, %v2181
    %v2188 = vsel %vm284, %v2174, 0
    %2190 = vmatprep.subr.bf16.mxu0 0
    %2191 = vmatpush1.bf16.msra.mxu0 0
    %2192 = vmatprep.subr.bf16.mxu0 0
    %2193 = vmatpush1.bf16.msra.mxu0 0
    %2194 = vmatprep.subr.bf16.mxu0 0
    %2195 = vmatpush1.bf16.msra.mxu0 0
    %2196 = vmatprep.subr.bf16.mxu0 0
    %2197 = vmatpush1.bf16.msra.mxu0 0
    %2198 = vmatprep.subr.bf16.mxu0 0
    %2199 = vmatpush1.bf16.msra.mxu0 0
    %2200 = vmatprep.subr.bf16.mxu0 0
    %2201 = vmatpush1.bf16.msra.mxu0 0
    %2202 = vmatprep.subr.bf16.mxu0 0
    %2203 = vmatpush1.bf16.msra.mxu0 %v2184
    %2204 = vmatprep.subr.bf16.mxu0 0
    %2205 = vmatpush1.bf16.msra.mxu0 %v2183
    %2206 = vmatprep.subr.bf16.mxu0 0
    %2207 = vmatpush2.bf16.msra.mxu0 0
    %2208 = vmatprep.subr.bf16.mxu0 0
    %2209 = vmatpush2.bf16.msra.mxu0 0
    %2210 = vmatprep.subr.bf16.mxu0 0
    %2211 = vmatpush2.bf16.msra.mxu0 0
    %2212 = vmatprep.subr.bf16.mxu0 0
    %2213 = vmatpush2.bf16.msra.mxu0 0
    %2214 = vmatprep.subr.bf16.mxu0 0
    %2215 = vmatpush2.bf16.msra.mxu0 0
    %2216 = vmatprep.subr.bf16.mxu0 0
    %2217 = vmatpush2.bf16.msra.mxu0 0
    %2218 = vmatprep.subr.bf16.mxu0 0
    %2219 = vmatpush2.bf16.msra.mxu0 0
    %2220 = vmatprep.subr.bf16.mxu0 0
    %2221 = vmatpush2.bf16.msra.mxu0 0
    %2222 = vmatprep.mubr.bf16.mxu0 0
    %2223 = vmatmul.mubr.bf16.gmra.mxu0 %v2188
    %v2224 = vpop.f32.mrf.mxu0
    %v2225 = vadd.f32 0.0, %v2224
    %v2226 = vpop.f32.mrf.mxu0
    %v2227 = vpop.f32.mrf.mxu0
    %v2228 = vadd.f32 0.0, %v2227
    %v2229 = vpop.f32.mrf.mxu0
    %2230 = vdwg.mxu0
    %2232 = vrot.lane.b32.xlu0 %v2162, 96
    %v2233 = vpop.permute.xlu0 %2232
    %v2238 = vunpack.c.l.b16 %v2163
    %v2239 = vunpack.c.l.b16 %v2164
    %v2240 = vunpack.c.l.b16 %v2165
    %v2241 = vunpack.c.l.b16 %v2166
    %v2242 = vpack.c.b16 %v2239, %v2238
    %v2243 = vpack.c.b16 %v2241, %v2240
    %v2247 = vsel %vm284, %v2233, 0
    %2249 = vmatprep.subr.bf16.mxu0 0
    %2250 = vmatpush1.bf16.msra.mxu0 0
    %2251 = vmatprep.subr.bf16.mxu0 0
    %2252 = vmatpush1.bf16.msra.mxu0 0
    %2253 = vmatprep.subr.bf16.mxu0 0
    %2254 = vmatpush1.bf16.msra.mxu0 0
    %2255 = vmatprep.subr.bf16.mxu0 0
    %2256 = vmatpush1.bf16.msra.mxu0 0
    %2257 = vmatprep.subr.bf16.mxu0 0
    %2258 = vmatpush1.bf16.msra.mxu0 0
    %2259 = vmatprep.subr.bf16.mxu0 0
    %2260 = vmatpush1.bf16.msra.mxu0 0
    %2261 = vmatprep.subr.bf16.mxu0 0
    %2262 = vmatpush1.bf16.msra.mxu0 %v2243
    %2263 = vmatprep.subr.bf16.mxu0 0
    %2264 = vmatpush1.bf16.msra.mxu0 %v2242
    %2265 = vmatprep.subr.bf16.mxu0 0
    %2266 = vmatpush2.bf16.msra.mxu0 0
    %2267 = vmatprep.subr.bf16.mxu0 0
    %2268 = vmatpush2.bf16.msra.mxu0 0
    %2269 = vmatprep.subr.bf16.mxu0 0
    %2270 = vmatpush2.bf16.msra.mxu0 0
    %2271 = vmatprep.subr.bf16.mxu0 0
    %2272 = vmatpush2.bf16.msra.mxu0 0
    %2273 = vmatprep.subr.bf16.mxu0 0
    %2274 = vmatpush2.bf16.msra.mxu0 0
    %2275 = vmatprep.subr.bf16.mxu0 0
    %2276 = vmatpush2.bf16.msra.mxu0 0
    %2277 = vmatprep.subr.bf16.mxu0 0
    %2278 = vmatpush2.bf16.msra.mxu0 0
    %2279 = vmatprep.subr.bf16.mxu0 0
    %2280 = vmatpush2.bf16.msra.mxu0 0
    %2281 = vmatprep.mubr.bf16.mxu0 0
    %2282 = vmatmul.mubr.bf16.gmra.mxu0 %v2247
    %v2283 = vpop.f32.mrf.mxu0
    %v2284 = vadd.f32 %v2225, %v2283
    %v2285 = vpop.f32.mrf.mxu0
    %v2286 = vpop.f32.mrf.mxu0
    %v2287 = vadd.f32 %v2228, %v2286
    %v2288 = vpop.f32.mrf.mxu0
    %2289 = vdwg.mxu0
    %v2290 = vld [vmem:[%s15] sm:$0x1]
    %v2292 = vlaneseq
    %v2293 = vshrl.u32 %v2292, 7
    %v2294 = vsub.s32 0, %v2293
    %v2295 = vrot.slane %v2290, %v2294
    %v2297 = vadd.f32 %v2284, %v2295
    %v2298 = vadd.f32 %v2287, %v2295
    %2299 = vst.msk [vmem:[#allocation14] sm:$0xff] %vm284, %v2297
    %2300 = vst.msk [vmem:[#allocation14 + $0x8] sm:$0xff] %vm284, %v2298
    // Predicated region
    $region94: #{tpu_custom_call.1} parent=1 // pred_check
      _
    $region95: #{tpu_custom_call.1} parent=1 // pred_check_branch
      %2302 = sbr.rel (0) target = $region97
    $region96: #{tpu_custom_call.1} parent=1 // pred_region
      %s2304 = ssub.s32 256, 256
      %2305 = vsyncadd [#allocation4], %s2304
      %s2306 = sshll.u32 [#allocation14], 4
      %s2307 = int_to_ptr.vmem [resolvable:$true] %s2306
      %2312 = dma.vmem_to_hbm [thread:$0]  %s2307, 256, %s16, [#allocation4], 128, 128, 8
    $region97: #{tpu_custom_call.1} parent=1 // pred_fallthru
      _
    // Predicated region
    $region98: #{tpu_custom_call.1} parent=1 // pred_check
      _
    $region99: #{tpu_custom_call.1} parent=1 // pred_check_branch
      %2314 = sbr.rel (0) target = $region101
    $region100: #{tpu_custom_call.1} parent=1 // pred_region
      %s2316 = ssub.s32 64, 64
      %2317 = vsyncadd [#allocation16], %s2316
      %s2318 = sshll.u32 [#allocation15], 4
      %s2319 = int_to_ptr.vmem [resolvable:$true] %s2318
      %2324 = dma.vmem_to_hbm [thread:$0]  %s2319, 64, %s17, [#allocation16], 32, 32, 2
    $region101: #{tpu_custom_call.1} parent=1 // pred_fallthru
      _
    // Predicated region
    $region102: #{tpu_custom_call.1} parent=1 // pred_check
      _
    $region103: #{tpu_custom_call.1} parent=1 // pred_check_branch
      %2326 = sbr.rel (0) target = $region105
    $region104: #{tpu_custom_call.1} parent=1 // pred_region
      %2327 = dma.done [#allocation4], 256
    $region105: #{tpu_custom_call.1} parent=1 // pred_fallthru
      _
    // Predicated region
    $region106: #{tpu_custom_call.1} parent=1 // pred_check
      _
    $region107: #{tpu_custom_call.1} parent=1 // pred_check_branch
      %2329 = sbr.rel (0) target = $region109
    $region108: #{tpu_custom_call.1} parent=1 // pred_region
      %2330 = dma.done [#allocation16], 64
    $region109: #{tpu_custom_call.1} parent=1 // pred_fallthru
      _
    %2331 = vsyncpa [#allocation3], 1
    %2332 = vsyncpa [#allocation6], 1
    %2333 = vsyncpa [#allocation9], 1
    %2334 = vsyncpa [#allocation12], 1
    %2335 = vsyncpa [#allocation4], 1
    %2336 = vsyncpa [#allocation16], 1

</llo_original>
